<compile_context>
chip_gen: v7x
topology: tpu7x:2x2x1
jax: 0.10.0
libtpu: 0.0.40
codegen_flags: <defaults>
</compile_context>

<pallas_src>
import math

import jax
import jax.numpy as jnp
from jax.experimental import pallas as pl
from jax.experimental.pallas import tpu as pltpu


def _sigmoid(x):
    # exp lands on the EUP; the f32 divide lowers to EUP reciprocal + Newton
    # refinement.  Deliberately NOT pl.reciprocal(approx=True) here: its
    # ~2^-12 relative error would accumulate over the T recurrent steps.
    return 1.0 / (1.0 + jnp.exp(-x))


def _make_kernel(n_layers, seq_len, batch, hidden_dim):
    """Fused (stacked GRU + dense1 + ReLU + dense2 + softmax) kernel."""
    T, B, H = seq_len, batch, hidden_dim

    def kernel(*refs):
        # ---- unpack refs: inputs, outputs, scratch (in that order) ----
        x_ref, h0_ref = refs[0], refs[1]
        p = 2
        layer_refs = []
        for _ in range(n_layers):
            layer_refs.append(refs[p:p + 4])  # (wih_f, whh_f, b_x, b_hn)
            p += 4
        w1_ref, b1_ref, w2_ref, b2_ref = refs[p:p + 4]
        p += 4
        out_ref, hn_ref = refs[p], refs[p + 1]
        p += 2
        scratch = refs[p:]  # ping-pong (T*B, H) f32 VMEM buffers

        # ---- stacked GRU layers ----
        for l in range(n_layers):
            wih_ref, whh_ref, bx_ref, bhn_ref = layer_refs[l]
            w_ih = wih_ref[...]   # (D_in, 3H), gate order (r, z, n)
            w_hh = whh_ref[...]   # (H, 3H)
            b_x = bx_ref[...]     # (1, 3H)  pre-folded biases
            b_hn = bhn_ref[...]   # (1, H)

            in_val = x_ref[...] if l == 0 else scratch[(l - 1) % 2][...]
            out_scr = scratch[l % 2]

            # Batched input projection: one MXU matmul for all T*B rows pulls
            # 3 of the 6 per-step matmuls off the sequential dependency chain.
            xp = jnp.dot(in_val, w_ih,
                         preferred_element_type=jnp.float32) + b_x  # (T*B, 3H)

            # Fully unrolled time loop (T is small & static): only the fused
            # h @ W_hh matmul + gate math remains per step.
            h = h0_ref[l]  # (B, H)
            for t in range(T):
                xp_t = xp[t * B:(t + 1) * B, :]                    # (B, 3H)
                hp = jnp.dot(h, w_hh,
                             preferred_element_type=jnp.float32)   # (B, 3H)
                rz = _sigmoid(xp_t[:, :2 * H] + hp[:, :2 * H])     # (B, 2H)
                r = rz[:, :H]
                z = rz[:, H:]
                n = jnp.tanh(xp_t[:, 2 * H:] + r * (hp[:, 2 * H:] + b_hn))
                h = (1.0 - z) * n + z * h
                out_scr[pl.ds(t * B, B), :] = h
            hn_ref[l] = h

        # ---- dense head on the flat (T*B, H) hidden sequence (no relayout) --
        o = scratch[(n_layers - 1) % 2][...]                       # (T*B, H)
        d1 = jnp.maximum(
            jnp.dot(o, w1_ref[...], preferred_element_type=jnp.float32)
            + b1_ref[...], 0.0)                                    # (T*B, 64)
        d2 = (jnp.dot(d1, w2_ref[...], preferred_element_type=jnp.float32)
              + b2_ref[...])                                       # (T*B, C)
        m = jnp.max(d2, axis=-1, keepdims=True)
        e = jnp.exp(d2 - m)
        denom = jnp.sum(e, axis=-1, keepdims=True)
        out_ref[...] = e * pl.reciprocal(denom, approx=True)

    return kernel


def pack_params(params):
    """Fuse per-gate GRU weights and fold biases (wrapper-side, one time)."""
    layers = []
    for (wih, whh, bih, bhh) in params["layers"]:
        wih_f = jnp.concatenate([wih[0], wih[1], wih[2]], axis=-1)  # (D_in,3H)
        whh_f = jnp.concatenate([whh[0], whh[1], whh[2]], axis=-1)  # (H, 3H)
        # b_ir + b_hr, b_iz + b_hz, b_in  (b_hn stays separate)
        b_x = jnp.concatenate([bih[0] + bhh[0], bih[1] + bhh[1], bih[2]],
                              axis=-1)                              # (1, 3H)
        b_hn = bhh[2]                                               # (1, H)
        layers.append((wih_f, whh_f, b_x, b_hn))
    return {"layers": layers, "w1": params["w1"], "b1": params["b1"],
            "w2": params["w2"], "b2": params["b2"]}


def gru_forward(packed, h_t_prev, x_t):
    """Equivalent of GatedRecurrentUnit.forward(h_t_prev, x_t) -> (out, h)."""
    B, T, D = x_t.shape
    n_layers = len(packed["layers"])
    H = packed["layers"][0][1].shape[0]
    C = packed["w2"].shape[-1]

    # Time-major flatten: row t*B + b holds x_t[b, t, :].
    x_flat = jnp.transpose(x_t.astype(jnp.float32), (1, 0, 2)).reshape(T * B, D)

    flat_layer_params = []
    for lp in packed["layers"]:
        flat_layer_params += list(lp)
    inputs = ([x_flat, h_t_prev.astype(jnp.float32)] + flat_layer_params
              + [packed["w1"], packed["b1"], packed["w2"], packed["b2"]])

    n_scratch = min(n_layers, 2)  # ping-pong buffers
    kernel = _make_kernel(n_layers, T, B, H)
    out_flat, h_n = pl.pallas_call(
        kernel,
        out_shape=(jax.ShapeDtypeStruct((T * B, C), jnp.float32),
                   jax.ShapeDtypeStruct((n_layers, B, H), jnp.float32)),
        in_specs=[pl.BlockSpec(memory_space=pltpu.MemorySpace.VMEM)
                  for _ in inputs],
        out_specs=(pl.BlockSpec(memory_space=pltpu.MemorySpace.VMEM),
                   pl.BlockSpec(memory_space=pltpu.MemorySpace.VMEM)),
        scratch_shapes=[pltpu.VMEM((T * B, H), jnp.float32)
                        for _ in range(n_scratch)],
    )(*inputs)

    # Back to PyTorch's batch_first layout.
    out = out_flat.reshape(T, B, C).transpose(1, 0, 2)  # (B, T, C)
    return out, h_n


def init_params(key, input_dim, hidden_dim, output_dim, n_layers):
    """Deterministic synthetic parameters (PyTorch-style uniform init)."""
    H = hidden_dim
    bound = 1.0 / math.sqrt(H)
    layers = []
    for l in range(n_layers):
        d_in = input_dim if l == 0 else H
        key, k1, k2, k3, k4 = jax.random.split(key, 5)
        wih = jax.random.uniform(k1, (3, d_in, H), jnp.float32, -bound, bound)
        whh = jax.random.uniform(k2, (3, H, H), jnp.float32, -bound, bound)
        bih = jax.random.uniform(k3, (3, 1, H), jnp.float32, -bound, bound)
        bhh = jax.random.uniform(k4, (3, 1, H), jnp.float32, -bound, bound)
        layers.append((wih, whh, bih, bhh))
    key, k1, k2, k3, k4 = jax.random.split(key, 5)
    b1_bound = 1.0 / math.sqrt(H)
    w1 = jax.random.uniform(k1, (H, 64), jnp.float32, -b1_bound, b1_bound)
    b1 = jax.random.uniform(k2, (1, 64), jnp.float32, -b1_bound, b1_bound)
    b2_bound = 1.0 / math.sqrt(64)
    w2 = jax.random.uniform(k3, (64, output_dim), jnp.float32, -b2_bound, b2_bound)
    b2 = jax.random.uniform(k4, (1, output_dim), jnp.float32, -b2_bound, b2_bound)
    return {"layers": layers, "w1": w1, "b1": b1, "w2": w2, "b2": b2}


def reference_forward(params, h_t_prev, x_t):
    """Pure-JAX reference mirroring torch.nn.GRU + dense head semantics."""
    _, T, _ = x_t.shape
    layer_in = x_t.astype(jnp.float32)
    h_finals = []
    for l, (wih, whh, bih, bhh) in enumerate(params["layers"]):
        h = h_t_prev[l].astype(jnp.float32)
        outs = []
        for t in range(T):
            xt = layer_in[:, t, :]
            r = jax.nn.sigmoid(xt @ wih[0] + bih[0] + h @ whh[0] + bhh[0])
            z = jax.nn.sigmoid(xt @ wih[1] + bih[1] + h @ whh[1] + bhh[1])
            n = jnp.tanh(xt @ wih[2] + bih[2] + r * (h @ whh[2] + bhh[2]))
            h = (1.0 - z) * n + z * h
            outs.append(h)
        layer_in = jnp.stack(outs, axis=1)
        h_finals.append(h)
    d1 = jax.nn.relu(layer_in @ params["w1"] + params["b1"][0])
    d2 = d1 @ params["w2"] + params["b2"][0]
    return jax.nn.softmax(d2, axis=-1), jnp.stack(h_finals, axis=0)


if __name__ == "__main__":
    # Small shapes implied by the module: (batch, seq, input_dim) features,
    # (n_layers, batch, hidden_dim) previous hidden state.
    BATCH, SEQ, INPUT_DIM, HIDDEN_DIM, OUTPUT_DIM, N_LAYERS = 2, 8, 32, 32, 2, 2

    key = jax.random.PRNGKey(0)
    kp, kx, kh = jax.random.split(key, 3)
    params = init_params(kp, INPUT_DIM, HIDDEN_DIM, OUTPUT_DIM, N_LAYERS)
    packed = pack_params(params)
    x_t = jax.random.normal(kx, (BATCH, SEQ, INPUT_DIM), jnp.float32)
    h_t_prev = jax.random.normal(kh, (N_LAYERS, BATCH, HIDDEN_DIM), jnp.float32)

    out, h = gru_forward(packed, h_t_prev, x_t)
    out, h = jax.block_until_ready((out, h))

    ref_out, ref_h = reference_forward(params, h_t_prev, x_t)
    assert out.shape == (BATCH, SEQ, OUTPUT_DIM)
    assert h.shape == (N_LAYERS, BATCH, HIDDEN_DIM)
    assert out.dtype == jnp.float32 and h.dtype == jnp.float32
    assert jnp.allclose(out, ref_out, atol=1e-3, rtol=1e-3)
    assert jnp.allclose(h, ref_h, atol=1e-3, rtol=1e-3)

    print("KERNEL_OK")
</pallas_src>

<mosaic_0001>
module attributes {stable_mosaic.version = 11 : i64} {
  func.func @kernel(%arg0: memref<16x32xf32, #tpu.memory_space<vmem>>, %arg1: memref<2x2x32xf32, #tpu.memory_space<vmem>>, %arg2: memref<32x96xf32, #tpu.memory_space<vmem>>, %arg3: memref<32x96xf32, #tpu.memory_space<vmem>>, %arg4: memref<1x96xf32, #tpu.memory_space<vmem>>, %arg5: memref<1x32xf32, #tpu.memory_space<vmem>>, %arg6: memref<32x96xf32, #tpu.memory_space<vmem>>, %arg7: memref<32x96xf32, #tpu.memory_space<vmem>>, %arg8: memref<1x96xf32, #tpu.memory_space<vmem>>, %arg9: memref<1x32xf32, #tpu.memory_space<vmem>>, %arg10: memref<32x64xf32, #tpu.memory_space<vmem>>, %arg11: memref<1x64xf32, #tpu.memory_space<vmem>>, %arg12: memref<64x2xf32, #tpu.memory_space<vmem>>, %arg13: memref<1x2xf32, #tpu.memory_space<vmem>>, %arg14: memref<16x2xf32, #tpu.memory_space<vmem>>, %arg15: memref<2x2x32xf32, #tpu.memory_space<vmem>>, %arg16: memref<16x32xf32, #tpu.memory_space<vmem>>, %arg17: memref<16x32xf32, #tpu.memory_space<vmem>>) attributes {dimension_semantics = [], scalar_prefetch = 0 : i64, scratch_operands = 2 : i64, tpu.core_type = #tpu.core_type<tc>} {
    %c0 = arith.constant 0 : index
    %c0_0 = arith.constant 0 : index
    %0 = vector.load %arg2[%c0, %c0_0] : memref<32x96xf32, #tpu.memory_space<vmem>>, vector<32x96xf32>
    %c0_1 = arith.constant 0 : index
    %c0_2 = arith.constant 0 : index
    %1 = vector.load %arg3[%c0_1, %c0_2] : memref<32x96xf32, #tpu.memory_space<vmem>>, vector<32x96xf32>
    %c0_3 = arith.constant 0 : index
    %c0_4 = arith.constant 0 : index
    %2 = vector.load %arg4[%c0_3, %c0_4] : memref<1x96xf32, #tpu.memory_space<vmem>>, vector<1x96xf32>
    %c0_5 = arith.constant 0 : index
    %c0_6 = arith.constant 0 : index
    %3 = vector.load %arg5[%c0_5, %c0_6] : memref<1x32xf32, #tpu.memory_space<vmem>>, vector<1x32xf32>
    %c0_7 = arith.constant 0 : index
    %c0_8 = arith.constant 0 : index
    %4 = vector.load %arg0[%c0_7, %c0_8] : memref<16x32xf32, #tpu.memory_space<vmem>>, vector<16x32xf32>
    %cst = arith.constant dense<0.000000e+00> : vector<16x96xf32>
    %5 = tpu.matmul %4, %0, %cst {dimension_numbers = #tpu.dot_dimension_numbers<[1], [0], [0], [1], [0, 0, 1, 1], [], []>} : vector<16x32xf32>, vector<32x96xf32>, vector<16x96xf32> -> vector<16x96xf32>
    %6 = vector.broadcast %2 : vector<1x96xf32> to vector<16x96xf32>
    %7 = arith.addf %5, %6 : vector<16x96xf32>
    %c0_9 = arith.constant 0 : index
    %c0_10 = arith.constant 0 : index
    %c0_11 = arith.constant 0 : index
    %8 = vector.load %arg1[%c0_9, %c0_10, %c0_11] : memref<2x2x32xf32, #tpu.memory_space<vmem>>, vector<1x2x32xf32>
    %9 = vector.shape_cast %8 : vector<1x2x32xf32> to vector<2x32xf32>
    %10 = vector.extract_strided_slice %7 {offsets = [0, 0], sizes = [2, 96], strides = [1, 1]} : vector<16x96xf32> to vector<2x96xf32>
    %cst_12 = arith.constant dense<0.000000e+00> : vector<2x96xf32>
    %11 = tpu.matmul %9, %1, %cst_12 {dimension_numbers = #tpu.dot_dimension_numbers<[1], [0], [0], [1], [0, 0, 1, 1], [], []>} : vector<2x32xf32>, vector<32x96xf32>, vector<2x96xf32> -> vector<2x96xf32>
    %12 = vector.extract_strided_slice %10 {offsets = [0, 0], sizes = [2, 64], strides = [1, 1]} : vector<2x96xf32> to vector<2x64xf32>
    %13 = vector.extract_strided_slice %11 {offsets = [0, 0], sizes = [2, 64], strides = [1, 1]} : vector<2x96xf32> to vector<2x64xf32>
    %14 = arith.addf %12, %13 : vector<2x64xf32>
    %cst_13 = arith.constant 0.000000e+00 : f32
    %15 = vector.broadcast %cst_13 : f32 to vector<2x64xf32>
    %16 = arith.subf %15, %14 : vector<2x64xf32>
    %17 = math.exp %16 : vector<2x64xf32>
    %cst_14 = arith.constant 1.000000e+00 : f32
    %18 = vector.broadcast %cst_14 : f32 to vector<2x64xf32>
    %19 = arith.addf %18, %17 : vector<2x64xf32>
    %cst_15 = arith.constant 1.000000e+00 : f32
    %20 = vector.broadcast %cst_15 : f32 to vector<2x64xf32>
    %21 = arith.divf %20, %19 : vector<2x64xf32>
    %22 = vector.extract_strided_slice %21 {offsets = [0, 0], sizes = [2, 32], strides = [1, 1]} : vector<2x64xf32> to vector<2x32xf32>
    %23 = vector.extract_strided_slice %21 {offsets = [0, 32], sizes = [2, 32], strides = [1, 1]} : vector<2x64xf32> to vector<2x32xf32>
    %24 = vector.extract_strided_slice %10 {offsets = [0, 64], sizes = [2, 32], strides = [1, 1]} : vector<2x96xf32> to vector<2x32xf32>
    %25 = vector.extract_strided_slice %11 {offsets = [0, 64], sizes = [2, 32], strides = [1, 1]} : vector<2x96xf32> to vector<2x32xf32>
    %26 = vector.broadcast %3 : vector<1x32xf32> to vector<2x32xf32>
    %27 = arith.addf %25, %26 : vector<2x32xf32>
    %28 = arith.mulf %22, %27 : vector<2x32xf32>
    %29 = arith.addf %24, %28 : vector<2x32xf32>
    %30 = math.tanh %29 : vector<2x32xf32>
    %cst_16 = arith.constant 1.000000e+00 : f32
    %31 = vector.broadcast %cst_16 : f32 to vector<2x32xf32>
    %32 = arith.subf %31, %23 : vector<2x32xf32>
    %33 = arith.mulf %32, %30 : vector<2x32xf32>
    %34 = arith.mulf %23, %9 : vector<2x32xf32>
    %35 = arith.addf %33, %34 : vector<2x32xf32>
    %c0_17 = arith.constant 0 : index
    %c0_18 = arith.constant 0 : index
    %36 = vector.load %arg16[%c0_17, %c0_18] : memref<16x32xf32, #tpu.memory_space<vmem>>, vector<2x32xf32>
    tpu.vector_store %arg16[%c0_17, %c0_18], %35 {strides = array<i32>} : memref<16x32xf32, #tpu.memory_space<vmem>>, vector<2x32xf32>,
    %37 = vector.extract_strided_slice %7 {offsets = [2, 0], sizes = [2, 96], strides = [1, 1]} : vector<16x96xf32> to vector<2x96xf32>
    %cst_19 = arith.constant dense<0.000000e+00> : vector<2x96xf32>
    %38 = tpu.matmul %35, %1, %cst_19 {dimension_numbers = #tpu.dot_dimension_numbers<[1], [0], [0], [1], [0, 0, 1, 1], [], []>} : vector<2x32xf32>, vector<32x96xf32>, vector<2x96xf32> -> vector<2x96xf32>
    %39 = vector.extract_strided_slice %37 {offsets = [0, 0], sizes = [2, 64], strides = [1, 1]} : vector<2x96xf32> to vector<2x64xf32>
    %40 = vector.extract_strided_slice %38 {offsets = [0, 0], sizes = [2, 64], strides = [1, 1]} : vector<2x96xf32> to vector<2x64xf32>
    %41 = arith.addf %39, %40 : vector<2x64xf32>
    %cst_20 = arith.constant 0.000000e+00 : f32
    %42 = vector.broadcast %cst_20 : f32 to vector<2x64xf32>
    %43 = arith.subf %42, %41 : vector<2x64xf32>
    %44 = math.exp %43 : vector<2x64xf32>
    %cst_21 = arith.constant 1.000000e+00 : f32
    %45 = vector.broadcast %cst_21 : f32 to vector<2x64xf32>
    %46 = arith.addf %45, %44 : vector<2x64xf32>
    %cst_22 = arith.constant 1.000000e+00 : f32
    %47 = vector.broadcast %cst_22 : f32 to vector<2x64xf32>
    %48 = arith.divf %47, %46 : vector<2x64xf32>
    %49 = vector.extract_strided_slice %48 {offsets = [0, 0], sizes = [2, 32], strides = [1, 1]} : vector<2x64xf32> to vector<2x32xf32>
    %50 = vector.extract_strided_slice %48 {offsets = [0, 32], sizes = [2, 32], strides = [1, 1]} : vector<2x64xf32> to vector<2x32xf32>
    %51 = vector.extract_strided_slice %37 {offsets = [0, 64], sizes = [2, 32], strides = [1, 1]} : vector<2x96xf32> to vector<2x32xf32>
    %52 = vector.extract_strided_slice %38 {offsets = [0, 64], sizes = [2, 32], strides = [1, 1]} : vector<2x96xf32> to vector<2x32xf32>
    %53 = vector.broadcast %3 : vector<1x32xf32> to vector<2x32xf32>
    %54 = arith.addf %52, %53 : vector<2x32xf32>
    %55 = arith.mulf %49, %54 : vector<2x32xf32>
    %56 = arith.addf %51, %55 : vector<2x32xf32>
    %57 = math.tanh %56 : vector<2x32xf32>
    %cst_23 = arith.constant 1.000000e+00 : f32
    %58 = vector.broadcast %cst_23 : f32 to vector<2x32xf32>
    %59 = arith.subf %58, %50 : vector<2x32xf32>
    %60 = arith.mulf %59, %57 : vector<2x32xf32>
    %61 = arith.mulf %50, %35 : vector<2x32xf32>
    %62 = arith.addf %60, %61 : vector<2x32xf32>
    %c2 = arith.constant 2 : index
    %c0_24 = arith.constant 0 : index
    %63 = vector.load %arg16[%c2, %c0_24] : memref<16x32xf32, #tpu.memory_space<vmem>>, vector<2x32xf32>
    tpu.vector_store %arg16[%c2, %c0_24], %62 {strides = array<i32>} : memref<16x32xf32, #tpu.memory_space<vmem>>, vector<2x32xf32>,
    %64 = vector.extract_strided_slice %7 {offsets = [4, 0], sizes = [2, 96], strides = [1, 1]} : vector<16x96xf32> to vector<2x96xf32>
    %cst_25 = arith.constant dense<0.000000e+00> : vector<2x96xf32>
    %65 = tpu.matmul %62, %1, %cst_25 {dimension_numbers = #tpu.dot_dimension_numbers<[1], [0], [0], [1], [0, 0, 1, 1], [], []>} : vector<2x32xf32>, vector<32x96xf32>, vector<2x96xf32> -> vector<2x96xf32>
    %66 = vector.extract_strided_slice %64 {offsets = [0, 0], sizes = [2, 64], strides = [1, 1]} : vector<2x96xf32> to vector<2x64xf32>
    %67 = vector.extract_strided_slice %65 {offsets = [0, 0], sizes = [2, 64], strides = [1, 1]} : vector<2x96xf32> to vector<2x64xf32>
    %68 = arith.addf %66, %67 : vector<2x64xf32>
    %cst_26 = arith.constant 0.000000e+00 : f32
    %69 = vector.broadcast %cst_26 : f32 to vector<2x64xf32>
    %70 = arith.subf %69, %68 : vector<2x64xf32>
    %71 = math.exp %70 : vector<2x64xf32>
    %cst_27 = arith.constant 1.000000e+00 : f32
    %72 = vector.broadcast %cst_27 : f32 to vector<2x64xf32>
    %73 = arith.addf %72, %71 : vector<2x64xf32>
    %cst_28 = arith.constant 1.000000e+00 : f32
    %74 = vector.broadcast %cst_28 : f32 to vector<2x64xf32>
    %75 = arith.divf %74, %73 : vector<2x64xf32>
    %76 = vector.extract_strided_slice %75 {offsets = [0, 0], sizes = [2, 32], strides = [1, 1]} : vector<2x64xf32> to vector<2x32xf32>
    %77 = vector.extract_strided_slice %75 {offsets = [0, 32], sizes = [2, 32], strides = [1, 1]} : vector<2x64xf32> to vector<2x32xf32>
    %78 = vector.extract_strided_slice %64 {offsets = [0, 64], sizes = [2, 32], strides = [1, 1]} : vector<2x96xf32> to vector<2x32xf32>
    %79 = vector.extract_strided_slice %65 {offsets = [0, 64], sizes = [2, 32], strides = [1, 1]} : vector<2x96xf32> to vector<2x32xf32>
    %80 = vector.broadcast %3 : vector<1x32xf32> to vector<2x32xf32>
    %81 = arith.addf %79, %80 : vector<2x32xf32>
    %82 = arith.mulf %76, %81 : vector<2x32xf32>
    %83 = arith.addf %78, %82 : vector<2x32xf32>
    %84 = math.tanh %83 : vector<2x32xf32>
    %cst_29 = arith.constant 1.000000e+00 : f32
    %85 = vector.broadcast %cst_29 : f32 to vector<2x32xf32>
    %86 = arith.subf %85, %77 : vector<2x32xf32>
    %87 = arith.mulf %86, %84 : vector<2x32xf32>
    %88 = arith.mulf %77, %62 : vector<2x32xf32>
    %89 = arith.addf %87, %88 : vector<2x32xf32>
    %c4 = arith.constant 4 : index
    %c0_30 = arith.constant 0 : index
    %90 = vector.load %arg16[%c4, %c0_30] : memref<16x32xf32, #tpu.memory_space<vmem>>, vector<2x32xf32>
    tpu.vector_store %arg16[%c4, %c0_30], %89 {strides = array<i32>} : memref<16x32xf32, #tpu.memory_space<vmem>>, vector<2x32xf32>,
    %91 = vector.extract_strided_slice %7 {offsets = [6, 0], sizes = [2, 96], strides = [1, 1]} : vector<16x96xf32> to vector<2x96xf32>
    %cst_31 = arith.constant dense<0.000000e+00> : vector<2x96xf32>
    %92 = tpu.matmul %89, %1, %cst_31 {dimension_numbers = #tpu.dot_dimension_numbers<[1], [0], [0], [1], [0, 0, 1, 1], [], []>} : vector<2x32xf32>, vector<32x96xf32>, vector<2x96xf32> -> vector<2x96xf32>
    %93 = vector.extract_strided_slice %91 {offsets = [0, 0], sizes = [2, 64], strides = [1, 1]} : vector<2x96xf32> to vector<2x64xf32>
    %94 = vector.extract_strided_slice %92 {offsets = [0, 0], sizes = [2, 64], strides = [1, 1]} : vector<2x96xf32> to vector<2x64xf32>
    %95 = arith.addf %93, %94 : vector<2x64xf32>
    %cst_32 = arith.constant 0.000000e+00 : f32
    %96 = vector.broadcast %cst_32 : f32 to vector<2x64xf32>
    %97 = arith.subf %96, %95 : vector<2x64xf32>
    %98 = math.exp %97 : vector<2x64xf32>
    %cst_33 = arith.constant 1.000000e+00 : f32
    %99 = vector.broadcast %cst_33 : f32 to vector<2x64xf32>
    %100 = arith.addf %99, %98 : vector<2x64xf32>
    %cst_34 = arith.constant 1.000000e+00 : f32
    %101 = vector.broadcast %cst_34 : f32 to vector<2x64xf32>
    %102 = arith.divf %101, %100 : vector<2x64xf32>
    %103 = vector.extract_strided_slice %102 {offsets = [0, 0], sizes = [2, 32], strides = [1, 1]} : vector<2x64xf32> to vector<2x32xf32>
    %104 = vector.extract_strided_slice %102 {offsets = [0, 32], sizes = [2, 32], strides = [1, 1]} : vector<2x64xf32> to vector<2x32xf32>
    %105 = vector.extract_strided_slice %91 {offsets = [0, 64], sizes = [2, 32], strides = [1, 1]} : vector<2x96xf32> to vector<2x32xf32>
    %106 = vector.extract_strided_slice %92 {offsets = [0, 64], sizes = [2, 32], strides = [1, 1]} : vector<2x96xf32> to vector<2x32xf32>
    %107 = vector.broadcast %3 : vector<1x32xf32> to vector<2x32xf32>
    %108 = arith.addf %106, %107 : vector<2x32xf32>
    %109 = arith.mulf %103, %108 : vector<2x32xf32>
    %110 = arith.addf %105, %109 : vector<2x32xf32>
    %111 = math.tanh %110 : vector<2x32xf32>
    %cst_35 = arith.constant 1.000000e+00 : f32
    %112 = vector.broadcast %cst_35 : f32 to vector<2x32xf32>
    %113 = arith.subf %112, %104 : vector<2x32xf32>
    %114 = arith.mulf %113, %111 : vector<2x32xf32>
    %115 = arith.mulf %104, %89 : vector<2x32xf32>
    %116 = arith.addf %114, %115 : vector<2x32xf32>
    %c6 = arith.constant 6 : index
    %c0_36 = arith.constant 0 : index
    %117 = vector.load %arg16[%c6, %c0_36] : memref<16x32xf32, #tpu.memory_space<vmem>>, vector<2x32xf32>
    tpu.vector_store %arg16[%c6, %c0_36], %116 {strides = array<i32>} : memref<16x32xf32, #tpu.memory_space<vmem>>, vector<2x32xf32>,
    %118 = vector.extract_strided_slice %7 {offsets = [8, 0], sizes = [2, 96], strides = [1, 1]} : vector<16x96xf32> to vector<2x96xf32>
    %cst_37 = arith.constant dense<0.000000e+00> : vector<2x96xf32>
    %119 = tpu.matmul %116, %1, %cst_37 {dimension_numbers = #tpu.dot_dimension_numbers<[1], [0], [0], [1], [0, 0, 1, 1], [], []>} : vector<2x32xf32>, vector<32x96xf32>, vector<2x96xf32> -> vector<2x96xf32>
    %120 = vector.extract_strided_slice %118 {offsets = [0, 0], sizes = [2, 64], strides = [1, 1]} : vector<2x96xf32> to vector<2x64xf32>
    %121 = vector.extract_strided_slice %119 {offsets = [0, 0], sizes = [2, 64], strides = [1, 1]} : vector<2x96xf32> to vector<2x64xf32>
    %122 = arith.addf %120, %121 : vector<2x64xf32>
    %cst_38 = arith.constant 0.000000e+00 : f32
    %123 = vector.broadcast %cst_38 : f32 to vector<2x64xf32>
    %124 = arith.subf %123, %122 : vector<2x64xf32>
    %125 = math.exp %124 : vector<2x64xf32>
    %cst_39 = arith.constant 1.000000e+00 : f32
    %126 = vector.broadcast %cst_39 : f32 to vector<2x64xf32>
    %127 = arith.addf %126, %125 : vector<2x64xf32>
    %cst_40 = arith.constant 1.000000e+00 : f32
    %128 = vector.broadcast %cst_40 : f32 to vector<2x64xf32>
    %129 = arith.divf %128, %127 : vector<2x64xf32>
    %130 = vector.extract_strided_slice %129 {offsets = [0, 0], sizes = [2, 32], strides = [1, 1]} : vector<2x64xf32> to vector<2x32xf32>
    %131 = vector.extract_strided_slice %129 {offsets = [0, 32], sizes = [2, 32], strides = [1, 1]} : vector<2x64xf32> to vector<2x32xf32>
    %132 = vector.extract_strided_slice %118 {offsets = [0, 64], sizes = [2, 32], strides = [1, 1]} : vector<2x96xf32> to vector<2x32xf32>
    %133 = vector.extract_strided_slice %119 {offsets = [0, 64], sizes = [2, 32], strides = [1, 1]} : vector<2x96xf32> to vector<2x32xf32>
    %134 = vector.broadcast %3 : vector<1x32xf32> to vector<2x32xf32>
    %135 = arith.addf %133, %134 : vector<2x32xf32>
    %136 = arith.mulf %130, %135 : vector<2x32xf32>
    %137 = arith.addf %132, %136 : vector<2x32xf32>
    %138 = math.tanh %137 : vector<2x32xf32>
    %cst_41 = arith.constant 1.000000e+00 : f32
    %139 = vector.broadcast %cst_41 : f32 to vector<2x32xf32>
    %140 = arith.subf %139, %131 : vector<2x32xf32>
    %141 = arith.mulf %140, %138 : vector<2x32xf32>
    %142 = arith.mulf %131, %116 : vector<2x32xf32>
    %143 = arith.addf %141, %142 : vector<2x32xf32>
    %c8 = arith.constant 8 : index
    %c0_42 = arith.constant 0 : index
    %144 = vector.load %arg16[%c8, %c0_42] : memref<16x32xf32, #tpu.memory_space<vmem>>, vector<2x32xf32>
    tpu.vector_store %arg16[%c8, %c0_42], %143 {strides = array<i32>} : memref<16x32xf32, #tpu.memory_space<vmem>>, vector<2x32xf32>,
    %145 = vector.extract_strided_slice %7 {offsets = [10, 0], sizes = [2, 96], strides = [1, 1]} : vector<16x96xf32> to vector<2x96xf32>
    %cst_43 = arith.constant dense<0.000000e+00> : vector<2x96xf32>
    %146 = tpu.matmul %143, %1, %cst_43 {dimension_numbers = #tpu.dot_dimension_numbers<[1], [0], [0], [1], [0, 0, 1, 1], [], []>} : vector<2x32xf32>, vector<32x96xf32>, vector<2x96xf32> -> vector<2x96xf32>
    %147 = vector.extract_strided_slice %145 {offsets = [0, 0], sizes = [2, 64], strides = [1, 1]} : vector<2x96xf32> to vector<2x64xf32>
    %148 = vector.extract_strided_slice %146 {offsets = [0, 0], sizes = [2, 64], strides = [1, 1]} : vector<2x96xf32> to vector<2x64xf32>
    %149 = arith.addf %147, %148 : vector<2x64xf32>
    %cst_44 = arith.constant 0.000000e+00 : f32
    %150 = vector.broadcast %cst_44 : f32 to vector<2x64xf32>
    %151 = arith.subf %150, %149 : vector<2x64xf32>
    %152 = math.exp %151 : vector<2x64xf32>
    %cst_45 = arith.constant 1.000000e+00 : f32
    %153 = vector.broadcast %cst_45 : f32 to vector<2x64xf32>
    %154 = arith.addf %153, %152 : vector<2x64xf32>
    %cst_46 = arith.constant 1.000000e+00 : f32
    %155 = vector.broadcast %cst_46 : f32 to vector<2x64xf32>
    %156 = arith.divf %155, %154 : vector<2x64xf32>
    %157 = vector.extract_strided_slice %156 {offsets = [0, 0], sizes = [2, 32], strides = [1, 1]} : vector<2x64xf32> to vector<2x32xf32>
    %158 = vector.extract_strided_slice %156 {offsets = [0, 32], sizes = [2, 32], strides = [1, 1]} : vector<2x64xf32> to vector<2x32xf32>
    %159 = vector.extract_strided_slice %145 {offsets = [0, 64], sizes = [2, 32], strides = [1, 1]} : vector<2x96xf32> to vector<2x32xf32>
    %160 = vector.extract_strided_slice %146 {offsets = [0, 64], sizes = [2, 32], strides = [1, 1]} : vector<2x96xf32> to vector<2x32xf32>
    %161 = vector.broadcast %3 : vector<1x32xf32> to vector<2x32xf32>
    %162 = arith.addf %160, %161 : vector<2x32xf32>
    %163 = arith.mulf %157, %162 : vector<2x32xf32>
    %164 = arith.addf %159, %163 : vector<2x32xf32>
    %165 = math.tanh %164 : vector<2x32xf32>
    %cst_47 = arith.constant 1.000000e+00 : f32
    %166 = vector.broadcast %cst_47 : f32 to vector<2x32xf32>
    %167 = arith.subf %166, %158 : vector<2x32xf32>
    %168 = arith.mulf %167, %165 : vector<2x32xf32>
    %169 = arith.mulf %158, %143 : vector<2x32xf32>
    %170 = arith.addf %168, %169 : vector<2x32xf32>
    %c10 = arith.constant 10 : index
    %c0_48 = arith.constant 0 : index
    %171 = vector.load %arg16[%c10, %c0_48] : memref<16x32xf32, #tpu.memory_space<vmem>>, vector<2x32xf32>
    tpu.vector_store %arg16[%c10, %c0_48], %170 {strides = array<i32>} : memref<16x32xf32, #tpu.memory_space<vmem>>, vector<2x32xf32>,
    %172 = vector.extract_strided_slice %7 {offsets = [12, 0], sizes = [2, 96], strides = [1, 1]} : vector<16x96xf32> to vector<2x96xf32>
    %cst_49 = arith.constant dense<0.000000e+00> : vector<2x96xf32>
    %173 = tpu.matmul %170, %1, %cst_49 {dimension_numbers = #tpu.dot_dimension_numbers<[1], [0], [0], [1], [0, 0, 1, 1], [], []>} : vector<2x32xf32>, vector<32x96xf32>, vector<2x96xf32> -> vector<2x96xf32>
    %174 = vector.extract_strided_slice %172 {offsets = [0, 0], sizes = [2, 64], strides = [1, 1]} : vector<2x96xf32> to vector<2x64xf32>
    %175 = vector.extract_strided_slice %173 {offsets = [0, 0], sizes = [2, 64], strides = [1, 1]} : vector<2x96xf32> to vector<2x64xf32>
    %176 = arith.addf %174, %175 : vector<2x64xf32>
    %cst_50 = arith.constant 0.000000e+00 : f32
    %177 = vector.broadcast %cst_50 : f32 to vector<2x64xf32>
    %178 = arith.subf %177, %176 : vector<2x64xf32>
    %179 = math.exp %178 : vector<2x64xf32>
    %cst_51 = arith.constant 1.000000e+00 : f32
    %180 = vector.broadcast %cst_51 : f32 to vector<2x64xf32>
    %181 = arith.addf %180, %179 : vector<2x64xf32>
    %cst_52 = arith.constant 1.000000e+00 : f32
    %182 = vector.broadcast %cst_52 : f32 to vector<2x64xf32>
    %183 = arith.divf %182, %181 : vector<2x64xf32>
    %184 = vector.extract_strided_slice %183 {offsets = [0, 0], sizes = [2, 32], strides = [1, 1]} : vector<2x64xf32> to vector<2x32xf32>
    %185 = vector.extract_strided_slice %183 {offsets = [0, 32], sizes = [2, 32], strides = [1, 1]} : vector<2x64xf32> to vector<2x32xf32>
    %186 = vector.extract_strided_slice %172 {offsets = [0, 64], sizes = [2, 32], strides = [1, 1]} : vector<2x96xf32> to vector<2x32xf32>
    %187 = vector.extract_strided_slice %173 {offsets = [0, 64], sizes = [2, 32], strides = [1, 1]} : vector<2x96xf32> to vector<2x32xf32>
    %188 = vector.broadcast %3 : vector<1x32xf32> to vector<2x32xf32>
    %189 = arith.addf %187, %188 : vector<2x32xf32>
    %190 = arith.mulf %184, %189 : vector<2x32xf32>
    %191 = arith.addf %186, %190 : vector<2x32xf32>
    %192 = math.tanh %191 : vector<2x32xf32>
    %cst_53 = arith.constant 1.000000e+00 : f32
    %193 = vector.broadcast %cst_53 : f32 to vector<2x32xf32>
    %194 = arith.subf %193, %185 : vector<2x32xf32>
    %195 = arith.mulf %194, %192 : vector<2x32xf32>
    %196 = arith.mulf %185, %170 : vector<2x32xf32>
    %197 = arith.addf %195, %196 : vector<2x32xf32>
    %c12 = arith.constant 12 : index
    %c0_54 = arith.constant 0 : index
    %198 = vector.load %arg16[%c12, %c0_54] : memref<16x32xf32, #tpu.memory_space<vmem>>, vector<2x32xf32>
    tpu.vector_store %arg16[%c12, %c0_54], %197 {strides = array<i32>} : memref<16x32xf32, #tpu.memory_space<vmem>>, vector<2x32xf32>,
    %199 = vector.extract_strided_slice %7 {offsets = [14, 0], sizes = [2, 96], strides = [1, 1]} : vector<16x96xf32> to vector<2x96xf32>
    %cst_55 = arith.constant dense<0.000000e+00> : vector<2x96xf32>
    %200 = tpu.matmul %197, %1, %cst_55 {dimension_numbers = #tpu.dot_dimension_numbers<[1], [0], [0], [1], [0, 0, 1, 1], [], []>} : vector<2x32xf32>, vector<32x96xf32>, vector<2x96xf32> -> vector<2x96xf32>
    %201 = vector.extract_strided_slice %199 {offsets = [0, 0], sizes = [2, 64], strides = [1, 1]} : vector<2x96xf32> to vector<2x64xf32>
    %202 = vector.extract_strided_slice %200 {offsets = [0, 0], sizes = [2, 64], strides = [1, 1]} : vector<2x96xf32> to vector<2x64xf32>
    %203 = arith.addf %201, %202 : vector<2x64xf32>
    %cst_56 = arith.constant 0.000000e+00 : f32
    %204 = vector.broadcast %cst_56 : f32 to vector<2x64xf32>
    %205 = arith.subf %204, %203 : vector<2x64xf32>
    %206 = math.exp %205 : vector<2x64xf32>
    %cst_57 = arith.constant 1.000000e+00 : f32
    %207 = vector.broadcast %cst_57 : f32 to vector<2x64xf32>
    %208 = arith.addf %207, %206 : vector<2x64xf32>
    %cst_58 = arith.constant 1.000000e+00 : f32
    %209 = vector.broadcast %cst_58 : f32 to vector<2x64xf32>
    %210 = arith.divf %209, %208 : vector<2x64xf32>
    %211 = vector.extract_strided_slice %210 {offsets = [0, 0], sizes = [2, 32], strides = [1, 1]} : vector<2x64xf32> to vector<2x32xf32>
    %212 = vector.extract_strided_slice %210 {offsets = [0, 32], sizes = [2, 32], strides = [1, 1]} : vector<2x64xf32> to vector<2x32xf32>
    %213 = vector.extract_strided_slice %199 {offsets = [0, 64], sizes = [2, 32], strides = [1, 1]} : vector<2x96xf32> to vector<2x32xf32>
    %214 = vector.extract_strided_slice %200 {offsets = [0, 64], sizes = [2, 32], strides = [1, 1]} : vector<2x96xf32> to vector<2x32xf32>
    %215 = vector.broadcast %3 : vector<1x32xf32> to vector<2x32xf32>
    %216 = arith.addf %214, %215 : vector<2x32xf32>
    %217 = arith.mulf %211, %216 : vector<2x32xf32>
    %218 = arith.addf %213, %217 : vector<2x32xf32>
    %219 = math.tanh %218 : vector<2x32xf32>
    %cst_59 = arith.constant 1.000000e+00 : f32
    %220 = vector.broadcast %cst_59 : f32 to vector<2x32xf32>
    %221 = arith.subf %220, %212 : vector<2x32xf32>
    %222 = arith.mulf %221, %219 : vector<2x32xf32>
    %223 = arith.mulf %212, %197 : vector<2x32xf32>
    %224 = arith.addf %222, %223 : vector<2x32xf32>
    %c14 = arith.constant 14 : index
    %c0_60 = arith.constant 0 : index
    %225 = vector.load %arg16[%c14, %c0_60] : memref<16x32xf32, #tpu.memory_space<vmem>>, vector<2x32xf32>
    tpu.vector_store %arg16[%c14, %c0_60], %224 {strides = array<i32>} : memref<16x32xf32, #tpu.memory_space<vmem>>, vector<2x32xf32>,
    %c0_61 = arith.constant 0 : index
    %c0_62 = arith.constant 0 : index
    %c0_63 = arith.constant 0 : index
    %226 = vector.load %arg15[%c0_61, %c0_62, %c0_63] : memref<2x2x32xf32, #tpu.memory_space<vmem>>, vector<1x2x32xf32>
    %227 = vector.shape_cast %226 : vector<1x2x32xf32> to vector<2x32xf32>
    %228 = vector.shape_cast %224 : vector<2x32xf32> to vector<1x2x32xf32>
    tpu.vector_store %arg15[%c0_61, %c0_62, %c0_63], %228 {strides = array<i32>} : memref<2x2x32xf32, #tpu.memory_space<vmem>>, vector<1x2x32xf32>,
    %c0_64 = arith.constant 0 : index
    %c0_65 = arith.constant 0 : index
    %229 = vector.load %arg6[%c0_64, %c0_65] : memref<32x96xf32, #tpu.memory_space<vmem>>, vector<32x96xf32>
    %c0_66 = arith.constant 0 : index
    %c0_67 = arith.constant 0 : index
    %230 = vector.load %arg7[%c0_66, %c0_67] : memref<32x96xf32, #tpu.memory_space<vmem>>, vector<32x96xf32>
    %c0_68 = arith.constant 0 : index
    %c0_69 = arith.constant 0 : index
    %231 = vector.load %arg8[%c0_68, %c0_69] : memref<1x96xf32, #tpu.memory_space<vmem>>, vector<1x96xf32>
    %c0_70 = arith.constant 0 : index
    %c0_71 = arith.constant 0 : index
    %232 = vector.load %arg9[%c0_70, %c0_71] : memref<1x32xf32, #tpu.memory_space<vmem>>, vector<1x32xf32>
    %c0_72 = arith.constant 0 : index
    %c0_73 = arith.constant 0 : index
    %233 = vector.load %arg16[%c0_72, %c0_73] : memref<16x32xf32, #tpu.memory_space<vmem>>, vector<16x32xf32>
    %cst_74 = arith.constant dense<0.000000e+00> : vector<16x96xf32>
    %234 = tpu.matmul %233, %229, %cst_74 {dimension_numbers = #tpu.dot_dimension_numbers<[1], [0], [0], [1], [0, 0, 1, 1], [], []>} : vector<16x32xf32>, vector<32x96xf32>, vector<16x96xf32> -> vector<16x96xf32>
    %235 = vector.broadcast %231 : vector<1x96xf32> to vector<16x96xf32>
    %236 = arith.addf %234, %235 : vector<16x96xf32>
    %c1 = arith.constant 1 : index
    %c0_75 = arith.constant 0 : index
    %c0_76 = arith.constant 0 : index
    %237 = vector.load %arg1[%c1, %c0_75, %c0_76] : memref<2x2x32xf32, #tpu.memory_space<vmem>>, vector<1x2x32xf32>
    %238 = vector.shape_cast %237 : vector<1x2x32xf32> to vector<2x32xf32>
    %239 = vector.extract_strided_slice %236 {offsets = [0, 0], sizes = [2, 96], strides = [1, 1]} : vector<16x96xf32> to vector<2x96xf32>
    %cst_77 = arith.constant dense<0.000000e+00> : vector<2x96xf32>
    %240 = tpu.matmul %238, %230, %cst_77 {dimension_numbers = #tpu.dot_dimension_numbers<[1], [0], [0], [1], [0, 0, 1, 1], [], []>} : vector<2x32xf32>, vector<32x96xf32>, vector<2x96xf32> -> vector<2x96xf32>
    %241 = vector.extract_strided_slice %239 {offsets = [0, 0], sizes = [2, 64], strides = [1, 1]} : vector<2x96xf32> to vector<2x64xf32>
    %242 = vector.extract_strided_slice %240 {offsets = [0, 0], sizes = [2, 64], strides = [1, 1]} : vector<2x96xf32> to vector<2x64xf32>
    %243 = arith.addf %241, %242 : vector<2x64xf32>
    %cst_78 = arith.constant 0.000000e+00 : f32
    %244 = vector.broadcast %cst_78 : f32 to vector<2x64xf32>
    %245 = arith.subf %244, %243 : vector<2x64xf32>
    %246 = math.exp %245 : vector<2x64xf32>
    %cst_79 = arith.constant 1.000000e+00 : f32
    %247 = vector.broadcast %cst_79 : f32 to vector<2x64xf32>
    %248 = arith.addf %247, %246 : vector<2x64xf32>
    %cst_80 = arith.constant 1.000000e+00 : f32
    %249 = vector.broadcast %cst_80 : f32 to vector<2x64xf32>
    %250 = arith.divf %249, %248 : vector<2x64xf32>
    %251 = vector.extract_strided_slice %250 {offsets = [0, 0], sizes = [2, 32], strides = [1, 1]} : vector<2x64xf32> to vector<2x32xf32>
    %252 = vector.extract_strided_slice %250 {offsets = [0, 32], sizes = [2, 32], strides = [1, 1]} : vector<2x64xf32> to vector<2x32xf32>
    %253 = vector.extract_strided_slice %239 {offsets = [0, 64], sizes = [2, 32], strides = [1, 1]} : vector<2x96xf32> to vector<2x32xf32>
    %254 = vector.extract_strided_slice %240 {offsets = [0, 64], sizes = [2, 32], strides = [1, 1]} : vector<2x96xf32> to vector<2x32xf32>
    %255 = vector.broadcast %232 : vector<1x32xf32> to vector<2x32xf32>
    %256 = arith.addf %254, %255 : vector<2x32xf32>
    %257 = arith.mulf %251, %256 : vector<2x32xf32>
    %258 = arith.addf %253, %257 : vector<2x32xf32>
    %259 = math.tanh %258 : vector<2x32xf32>
    %cst_81 = arith.constant 1.000000e+00 : f32
    %260 = vector.broadcast %cst_81 : f32 to vector<2x32xf32>
    %261 = arith.subf %260, %252 : vector<2x32xf32>
    %262 = arith.mulf %261, %259 : vector<2x32xf32>
    %263 = arith.mulf %252, %238 : vector<2x32xf32>
    %264 = arith.addf %262, %263 : vector<2x32xf32>
    %c0_82 = arith.constant 0 : index
    %c0_83 = arith.constant 0 : index
    %265 = vector.load %arg17[%c0_82, %c0_83] : memref<16x32xf32, #tpu.memory_space<vmem>>, vector<2x32xf32>
    tpu.vector_store %arg17[%c0_82, %c0_83], %264 {strides = array<i32>} : memref<16x32xf32, #tpu.memory_space<vmem>>, vector<2x32xf32>,
    %266 = vector.extract_strided_slice %236 {offsets = [2, 0], sizes = [2, 96], strides = [1, 1]} : vector<16x96xf32> to vector<2x96xf32>
    %cst_84 = arith.constant dense<0.000000e+00> : vector<2x96xf32>
    %267 = tpu.matmul %264, %230, %cst_84 {dimension_numbers = #tpu.dot_dimension_numbers<[1], [0], [0], [1], [0, 0, 1, 1], [], []>} : vector<2x32xf32>, vector<32x96xf32>, vector<2x96xf32> -> vector<2x96xf32>
    %268 = vector.extract_strided_slice %266 {offsets = [0, 0], sizes = [2, 64], strides = [1, 1]} : vector<2x96xf32> to vector<2x64xf32>
    %269 = vector.extract_strided_slice %267 {offsets = [0, 0], sizes = [2, 64], strides = [1, 1]} : vector<2x96xf32> to vector<2x64xf32>
    %270 = arith.addf %268, %269 : vector<2x64xf32>
    %cst_85 = arith.constant 0.000000e+00 : f32
    %271 = vector.broadcast %cst_85 : f32 to vector<2x64xf32>
    %272 = arith.subf %271, %270 : vector<2x64xf32>
    %273 = math.exp %272 : vector<2x64xf32>
    %cst_86 = arith.constant 1.000000e+00 : f32
    %274 = vector.broadcast %cst_86 : f32 to vector<2x64xf32>
    %275 = arith.addf %274, %273 : vector<2x64xf32>
    %cst_87 = arith.constant 1.000000e+00 : f32
    %276 = vector.broadcast %cst_87 : f32 to vector<2x64xf32>
    %277 = arith.divf %276, %275 : vector<2x64xf32>
    %278 = vector.extract_strided_slice %277 {offsets = [0, 0], sizes = [2, 32], strides = [1, 1]} : vector<2x64xf32> to vector<2x32xf32>
    %279 = vector.extract_strided_slice %277 {offsets = [0, 32], sizes = [2, 32], strides = [1, 1]} : vector<2x64xf32> to vector<2x32xf32>
    %280 = vector.extract_strided_slice %266 {offsets = [0, 64], sizes = [2, 32], strides = [1, 1]} : vector<2x96xf32> to vector<2x32xf32>
    %281 = vector.extract_strided_slice %267 {offsets = [0, 64], sizes = [2, 32], strides = [1, 1]} : vector<2x96xf32> to vector<2x32xf32>
    %282 = vector.broadcast %232 : vector<1x32xf32> to vector<2x32xf32>
    %283 = arith.addf %281, %282 : vector<2x32xf32>
    %284 = arith.mulf %278, %283 : vector<2x32xf32>
    %285 = arith.addf %280, %284 : vector<2x32xf32>
    %286 = math.tanh %285 : vector<2x32xf32>
    %cst_88 = arith.constant 1.000000e+00 : f32
    %287 = vector.broadcast %cst_88 : f32 to vector<2x32xf32>
    %288 = arith.subf %287, %279 : vector<2x32xf32>
    %289 = arith.mulf %288, %286 : vector<2x32xf32>
    %290 = arith.mulf %279, %264 : vector<2x32xf32>
    %291 = arith.addf %289, %290 : vector<2x32xf32>
    %c2_89 = arith.constant 2 : index
    %c0_90 = arith.constant 0 : index
    %292 = vector.load %arg17[%c2_89, %c0_90] : memref<16x32xf32, #tpu.memory_space<vmem>>, vector<2x32xf32>
    tpu.vector_store %arg17[%c2_89, %c0_90], %291 {strides = array<i32>} : memref<16x32xf32, #tpu.memory_space<vmem>>, vector<2x32xf32>,
    %293 = vector.extract_strided_slice %236 {offsets = [4, 0], sizes = [2, 96], strides = [1, 1]} : vector<16x96xf32> to vector<2x96xf32>
    %cst_91 = arith.constant dense<0.000000e+00> : vector<2x96xf32>
    %294 = tpu.matmul %291, %230, %cst_91 {dimension_numbers = #tpu.dot_dimension_numbers<[1], [0], [0], [1], [0, 0, 1, 1], [], []>} : vector<2x32xf32>, vector<32x96xf32>, vector<2x96xf32> -> vector<2x96xf32>
    %295 = vector.extract_strided_slice %293 {offsets = [0, 0], sizes = [2, 64], strides = [1, 1]} : vector<2x96xf32> to vector<2x64xf32>
    %296 = vector.extract_strided_slice %294 {offsets = [0, 0], sizes = [2, 64], strides = [1, 1]} : vector<2x96xf32> to vector<2x64xf32>
    %297 = arith.addf %295, %296 : vector<2x64xf32>
    %cst_92 = arith.constant 0.000000e+00 : f32
    %298 = vector.broadcast %cst_92 : f32 to vector<2x64xf32>
    %299 = arith.subf %298, %297 : vector<2x64xf32>
    %300 = math.exp %299 : vector<2x64xf32>
    %cst_93 = arith.constant 1.000000e+00 : f32
    %301 = vector.broadcast %cst_93 : f32 to vector<2x64xf32>
    %302 = arith.addf %301, %300 : vector<2x64xf32>
    %cst_94 = arith.constant 1.000000e+00 : f32
    %303 = vector.broadcast %cst_94 : f32 to vector<2x64xf32>
    %304 = arith.divf %303, %302 : vector<2x64xf32>
    %305 = vector.extract_strided_slice %304 {offsets = [0, 0], sizes = [2, 32], strides = [1, 1]} : vector<2x64xf32> to vector<2x32xf32>
    %306 = vector.extract_strided_slice %304 {offsets = [0, 32], sizes = [2, 32], strides = [1, 1]} : vector<2x64xf32> to vector<2x32xf32>
    %307 = vector.extract_strided_slice %293 {offsets = [0, 64], sizes = [2, 32], strides = [1, 1]} : vector<2x96xf32> to vector<2x32xf32>
    %308 = vector.extract_strided_slice %294 {offsets = [0, 64], sizes = [2, 32], strides = [1, 1]} : vector<2x96xf32> to vector<2x32xf32>
    %309 = vector.broadcast %232 : vector<1x32xf32> to vector<2x32xf32>
    %310 = arith.addf %308, %309 : vector<2x32xf32>
    %311 = arith.mulf %305, %310 : vector<2x32xf32>
    %312 = arith.addf %307, %311 : vector<2x32xf32>
    %313 = math.tanh %312 : vector<2x32xf32>
    %cst_95 = arith.constant 1.000000e+00 : f32
    %314 = vector.broadcast %cst_95 : f32 to vector<2x32xf32>
    %315 = arith.subf %314, %306 : vector<2x32xf32>
    %316 = arith.mulf %315, %313 : vector<2x32xf32>
    %317 = arith.mulf %306, %291 : vector<2x32xf32>
    %318 = arith.addf %316, %317 : vector<2x32xf32>
    %c4_96 = arith.constant 4 : index
    %c0_97 = arith.constant 0 : index
    %319 = vector.load %arg17[%c4_96, %c0_97] : memref<16x32xf32, #tpu.memory_space<vmem>>, vector<2x32xf32>
    tpu.vector_store %arg17[%c4_96, %c0_97], %318 {strides = array<i32>} : memref<16x32xf32, #tpu.memory_space<vmem>>, vector<2x32xf32>,
    %320 = vector.extract_strided_slice %236 {offsets = [6, 0], sizes = [2, 96], strides = [1, 1]} : vector<16x96xf32> to vector<2x96xf32>
    %cst_98 = arith.constant dense<0.000000e+00> : vector<2x96xf32>
    %321 = tpu.matmul %318, %230, %cst_98 {dimension_numbers = #tpu.dot_dimension_numbers<[1], [0], [0], [1], [0, 0, 1, 1], [], []>} : vector<2x32xf32>, vector<32x96xf32>, vector<2x96xf32> -> vector<2x96xf32>
    %322 = vector.extract_strided_slice %320 {offsets = [0, 0], sizes = [2, 64], strides = [1, 1]} : vector<2x96xf32> to vector<2x64xf32>
    %323 = vector.extract_strided_slice %321 {offsets = [0, 0], sizes = [2, 64], strides = [1, 1]} : vector<2x96xf32> to vector<2x64xf32>
    %324 = arith.addf %322, %323 : vector<2x64xf32>
    %cst_99 = arith.constant 0.000000e+00 : f32
    %325 = vector.broadcast %cst_99 : f32 to vector<2x64xf32>
    %326 = arith.subf %325, %324 : vector<2x64xf32>
    %327 = math.exp %326 : vector<2x64xf32>
    %cst_100 = arith.constant 1.000000e+00 : f32
    %328 = vector.broadcast %cst_100 : f32 to vector<2x64xf32>
    %329 = arith.addf %328, %327 : vector<2x64xf32>
    %cst_101 = arith.constant 1.000000e+00 : f32
    %330 = vector.broadcast %cst_101 : f32 to vector<2x64xf32>
    %331 = arith.divf %330, %329 : vector<2x64xf32>
    %332 = vector.extract_strided_slice %331 {offsets = [0, 0], sizes = [2, 32], strides = [1, 1]} : vector<2x64xf32> to vector<2x32xf32>
    %333 = vector.extract_strided_slice %331 {offsets = [0, 32], sizes = [2, 32], strides = [1, 1]} : vector<2x64xf32> to vector<2x32xf32>
    %334 = vector.extract_strided_slice %320 {offsets = [0, 64], sizes = [2, 32], strides = [1, 1]} : vector<2x96xf32> to vector<2x32xf32>
    %335 = vector.extract_strided_slice %321 {offsets = [0, 64], sizes = [2, 32], strides = [1, 1]} : vector<2x96xf32> to vector<2x32xf32>
    %336 = vector.broadcast %232 : vector<1x32xf32> to vector<2x32xf32>
    %337 = arith.addf %335, %336 : vector<2x32xf32>
    %338 = arith.mulf %332, %337 : vector<2x32xf32>
    %339 = arith.addf %334, %338 : vector<2x32xf32>
    %340 = math.tanh %339 : vector<2x32xf32>
    %cst_102 = arith.constant 1.000000e+00 : f32
    %341 = vector.broadcast %cst_102 : f32 to vector<2x32xf32>
    %342 = arith.subf %341, %333 : vector<2x32xf32>
    %343 = arith.mulf %342, %340 : vector<2x32xf32>
    %344 = arith.mulf %333, %318 : vector<2x32xf32>
    %345 = arith.addf %343, %344 : vector<2x32xf32>
    %c6_103 = arith.constant 6 : index
    %c0_104 = arith.constant 0 : index
    %346 = vector.load %arg17[%c6_103, %c0_104] : memref<16x32xf32, #tpu.memory_space<vmem>>, vector<2x32xf32>
    tpu.vector_store %arg17[%c6_103, %c0_104], %345 {strides = array<i32>} : memref<16x32xf32, #tpu.memory_space<vmem>>, vector<2x32xf32>,
    %347 = vector.extract_strided_slice %236 {offsets = [8, 0], sizes = [2, 96], strides = [1, 1]} : vector<16x96xf32> to vector<2x96xf32>
    %cst_105 = arith.constant dense<0.000000e+00> : vector<2x96xf32>
    %348 = tpu.matmul %345, %230, %cst_105 {dimension_numbers = #tpu.dot_dimension_numbers<[1], [0], [0], [1], [0, 0, 1, 1], [], []>} : vector<2x32xf32>, vector<32x96xf32>, vector<2x96xf32> -> vector<2x96xf32>
    %349 = vector.extract_strided_slice %347 {offsets = [0, 0], sizes = [2, 64], strides = [1, 1]} : vector<2x96xf32> to vector<2x64xf32>
    %350 = vector.extract_strided_slice %348 {offsets = [0, 0], sizes = [2, 64], strides = [1, 1]} : vector<2x96xf32> to vector<2x64xf32>
    %351 = arith.addf %349, %350 : vector<2x64xf32>
    %cst_106 = arith.constant 0.000000e+00 : f32
    %352 = vector.broadcast %cst_106 : f32 to vector<2x64xf32>
    %353 = arith.subf %352, %351 : vector<2x64xf32>
    %354 = math.exp %353 : vector<2x64xf32>
    %cst_107 = arith.constant 1.000000e+00 : f32
    %355 = vector.broadcast %cst_107 : f32 to vector<2x64xf32>
    %356 = arith.addf %355, %354 : vector<2x64xf32>
    %cst_108 = arith.constant 1.000000e+00 : f32
    %357 = vector.broadcast %cst_108 : f32 to vector<2x64xf32>
    %358 = arith.divf %357, %356 : vector<2x64xf32>
    %359 = vector.extract_strided_slice %358 {offsets = [0, 0], sizes = [2, 32], strides = [1, 1]} : vector<2x64xf32> to vector<2x32xf32>
    %360 = vector.extract_strided_slice %358 {offsets = [0, 32], sizes = [2, 32], strides = [1, 1]} : vector<2x64xf32> to vector<2x32xf32>
    %361 = vector.extract_strided_slice %347 {offsets = [0, 64], sizes = [2, 32], strides = [1, 1]} : vector<2x96xf32> to vector<2x32xf32>
    %362 = vector.extract_strided_slice %348 {offsets = [0, 64], sizes = [2, 32], strides = [1, 1]} : vector<2x96xf32> to vector<2x32xf32>
    %363 = vector.broadcast %232 : vector<1x32xf32> to vector<2x32xf32>
    %364 = arith.addf %362, %363 : vector<2x32xf32>
    %365 = arith.mulf %359, %364 : vector<2x32xf32>
    %366 = arith.addf %361, %365 : vector<2x32xf32>
    %367 = math.tanh %366 : vector<2x32xf32>
    %cst_109 = arith.constant 1.000000e+00 : f32
    %368 = vector.broadcast %cst_109 : f32 to vector<2x32xf32>
    %369 = arith.subf %368, %360 : vector<2x32xf32>
    %370 = arith.mulf %369, %367 : vector<2x32xf32>
    %371 = arith.mulf %360, %345 : vector<2x32xf32>
    %372 = arith.addf %370, %371 : vector<2x32xf32>
    %c8_110 = arith.constant 8 : index
    %c0_111 = arith.constant 0 : index
    %373 = vector.load %arg17[%c8_110, %c0_111] : memref<16x32xf32, #tpu.memory_space<vmem>>, vector<2x32xf32>
    tpu.vector_store %arg17[%c8_110, %c0_111], %372 {strides = array<i32>} : memref<16x32xf32, #tpu.memory_space<vmem>>, vector<2x32xf32>,
    %374 = vector.extract_strided_slice %236 {offsets = [10, 0], sizes = [2, 96], strides = [1, 1]} : vector<16x96xf32> to vector<2x96xf32>
    %cst_112 = arith.constant dense<0.000000e+00> : vector<2x96xf32>
    %375 = tpu.matmul %372, %230, %cst_112 {dimension_numbers = #tpu.dot_dimension_numbers<[1], [0], [0], [1], [0, 0, 1, 1], [], []>} : vector<2x32xf32>, vector<32x96xf32>, vector<2x96xf32> -> vector<2x96xf32>
    %376 = vector.extract_strided_slice %374 {offsets = [0, 0], sizes = [2, 64], strides = [1, 1]} : vector<2x96xf32> to vector<2x64xf32>
    %377 = vector.extract_strided_slice %375 {offsets = [0, 0], sizes = [2, 64], strides = [1, 1]} : vector<2x96xf32> to vector<2x64xf32>
    %378 = arith.addf %376, %377 : vector<2x64xf32>
    %cst_113 = arith.constant 0.000000e+00 : f32
    %379 = vector.broadcast %cst_113 : f32 to vector<2x64xf32>
    %380 = arith.subf %379, %378 : vector<2x64xf32>
    %381 = math.exp %380 : vector<2x64xf32>
    %cst_114 = arith.constant 1.000000e+00 : f32
    %382 = vector.broadcast %cst_114 : f32 to vector<2x64xf32>
    %383 = arith.addf %382, %381 : vector<2x64xf32>
    %cst_115 = arith.constant 1.000000e+00 : f32
    %384 = vector.broadcast %cst_115 : f32 to vector<2x64xf32>
    %385 = arith.divf %384, %383 : vector<2x64xf32>
    %386 = vector.extract_strided_slice %385 {offsets = [0, 0], sizes = [2, 32], strides = [1, 1]} : vector<2x64xf32> to vector<2x32xf32>
    %387 = vector.extract_strided_slice %385 {offsets = [0, 32], sizes = [2, 32], strides = [1, 1]} : vector<2x64xf32> to vector<2x32xf32>
    %388 = vector.extract_strided_slice %374 {offsets = [0, 64], sizes = [2, 32], strides = [1, 1]} : vector<2x96xf32> to vector<2x32xf32>
    %389 = vector.extract_strided_slice %375 {offsets = [0, 64], sizes = [2, 32], strides = [1, 1]} : vector<2x96xf32> to vector<2x32xf32>
    %390 = vector.broadcast %232 : vector<1x32xf32> to vector<2x32xf32>
    %391 = arith.addf %389, %390 : vector<2x32xf32>
    %392 = arith.mulf %386, %391 : vector<2x32xf32>
    %393 = arith.addf %388, %392 : vector<2x32xf32>
    %394 = math.tanh %393 : vector<2x32xf32>
    %cst_116 = arith.constant 1.000000e+00 : f32
    %395 = vector.broadcast %cst_116 : f32 to vector<2x32xf32>
    %396 = arith.subf %395, %387 : vector<2x32xf32>
    %397 = arith.mulf %396, %394 : vector<2x32xf32>
    %398 = arith.mulf %387, %372 : vector<2x32xf32>
    %399 = arith.addf %397, %398 : vector<2x32xf32>
    %c10_117 = arith.constant 10 : index
    %c0_118 = arith.constant 0 : index
    %400 = vector.load %arg17[%c10_117, %c0_118] : memref<16x32xf32, #tpu.memory_space<vmem>>, vector<2x32xf32>
    tpu.vector_store %arg17[%c10_117, %c0_118], %399 {strides = array<i32>} : memref<16x32xf32, #tpu.memory_space<vmem>>, vector<2x32xf32>,
    %401 = vector.extract_strided_slice %236 {offsets = [12, 0], sizes = [2, 96], strides = [1, 1]} : vector<16x96xf32> to vector<2x96xf32>
    %cst_119 = arith.constant dense<0.000000e+00> : vector<2x96xf32>
    %402 = tpu.matmul %399, %230, %cst_119 {dimension_numbers = #tpu.dot_dimension_numbers<[1], [0], [0], [1], [0, 0, 1, 1], [], []>} : vector<2x32xf32>, vector<32x96xf32>, vector<2x96xf32> -> vector<2x96xf32>
    %403 = vector.extract_strided_slice %401 {offsets = [0, 0], sizes = [2, 64], strides = [1, 1]} : vector<2x96xf32> to vector<2x64xf32>
    %404 = vector.extract_strided_slice %402 {offsets = [0, 0], sizes = [2, 64], strides = [1, 1]} : vector<2x96xf32> to vector<2x64xf32>
    %405 = arith.addf %403, %404 : vector<2x64xf32>
    %cst_120 = arith.constant 0.000000e+00 : f32
    %406 = vector.broadcast %cst_120 : f32 to vector<2x64xf32>
    %407 = arith.subf %406, %405 : vector<2x64xf32>
    %408 = math.exp %407 : vector<2x64xf32>
    %cst_121 = arith.constant 1.000000e+00 : f32
    %409 = vector.broadcast %cst_121 : f32 to vector<2x64xf32>
    %410 = arith.addf %409, %408 : vector<2x64xf32>
    %cst_122 = arith.constant 1.000000e+00 : f32
    %411 = vector.broadcast %cst_122 : f32 to vector<2x64xf32>
    %412 = arith.divf %411, %410 : vector<2x64xf32>
    %413 = vector.extract_strided_slice %412 {offsets = [0, 0], sizes = [2, 32], strides = [1, 1]} : vector<2x64xf32> to vector<2x32xf32>
    %414 = vector.extract_strided_slice %412 {offsets = [0, 32], sizes = [2, 32], strides = [1, 1]} : vector<2x64xf32> to vector<2x32xf32>
    %415 = vector.extract_strided_slice %401 {offsets = [0, 64], sizes = [2, 32], strides = [1, 1]} : vector<2x96xf32> to vector<2x32xf32>
    %416 = vector.extract_strided_slice %402 {offsets = [0, 64], sizes = [2, 32], strides = [1, 1]} : vector<2x96xf32> to vector<2x32xf32>
    %417 = vector.broadcast %232 : vector<1x32xf32> to vector<2x32xf32>
    %418 = arith.addf %416, %417 : vector<2x32xf32>
    %419 = arith.mulf %413, %418 : vector<2x32xf32>
    %420 = arith.addf %415, %419 : vector<2x32xf32>
    %421 = math.tanh %420 : vector<2x32xf32>
    %cst_123 = arith.constant 1.000000e+00 : f32
    %422 = vector.broadcast %cst_123 : f32 to vector<2x32xf32>
    %423 = arith.subf %422, %414 : vector<2x32xf32>
    %424 = arith.mulf %423, %421 : vector<2x32xf32>
    %425 = arith.mulf %414, %399 : vector<2x32xf32>
    %426 = arith.addf %424, %425 : vector<2x32xf32>
    %c12_124 = arith.constant 12 : index
    %c0_125 = arith.constant 0 : index
    %427 = vector.load %arg17[%c12_124, %c0_125] : memref<16x32xf32, #tpu.memory_space<vmem>>, vector<2x32xf32>
    tpu.vector_store %arg17[%c12_124, %c0_125], %426 {strides = array<i32>} : memref<16x32xf32, #tpu.memory_space<vmem>>, vector<2x32xf32>,
    %428 = vector.extract_strided_slice %236 {offsets = [14, 0], sizes = [2, 96], strides = [1, 1]} : vector<16x96xf32> to vector<2x96xf32>
    %cst_126 = arith.constant dense<0.000000e+00> : vector<2x96xf32>
    %429 = tpu.matmul %426, %230, %cst_126 {dimension_numbers = #tpu.dot_dimension_numbers<[1], [0], [0], [1], [0, 0, 1, 1], [], []>} : vector<2x32xf32>, vector<32x96xf32>, vector<2x96xf32> -> vector<2x96xf32>
    %430 = vector.extract_strided_slice %428 {offsets = [0, 0], sizes = [2, 64], strides = [1, 1]} : vector<2x96xf32> to vector<2x64xf32>
    %431 = vector.extract_strided_slice %429 {offsets = [0, 0], sizes = [2, 64], strides = [1, 1]} : vector<2x96xf32> to vector<2x64xf32>
    %432 = arith.addf %430, %431 : vector<2x64xf32>
    %cst_127 = arith.constant 0.000000e+00 : f32
    %433 = vector.broadcast %cst_127 : f32 to vector<2x64xf32>
    %434 = arith.subf %433, %432 : vector<2x64xf32>
    %435 = math.exp %434 : vector<2x64xf32>
    %cst_128 = arith.constant 1.000000e+00 : f32
    %436 = vector.broadcast %cst_128 : f32 to vector<2x64xf32>
    %437 = arith.addf %436, %435 : vector<2x64xf32>
    %cst_129 = arith.constant 1.000000e+00 : f32
    %438 = vector.broadcast %cst_129 : f32 to vector<2x64xf32>
    %439 = arith.divf %438, %437 : vector<2x64xf32>
    %440 = vector.extract_strided_slice %439 {offsets = [0, 0], sizes = [2, 32], strides = [1, 1]} : vector<2x64xf32> to vector<2x32xf32>
    %441 = vector.extract_strided_slice %439 {offsets = [0, 32], sizes = [2, 32], strides = [1, 1]} : vector<2x64xf32> to vector<2x32xf32>
    %442 = vector.extract_strided_slice %428 {offsets = [0, 64], sizes = [2, 32], strides = [1, 1]} : vector<2x96xf32> to vector<2x32xf32>
    %443 = vector.extract_strided_slice %429 {offsets = [0, 64], sizes = [2, 32], strides = [1, 1]} : vector<2x96xf32> to vector<2x32xf32>
    %444 = vector.broadcast %232 : vector<1x32xf32> to vector<2x32xf32>
    %445 = arith.addf %443, %444 : vector<2x32xf32>
    %446 = arith.mulf %440, %445 : vector<2x32xf32>
    %447 = arith.addf %442, %446 : vector<2x32xf32>
    %448 = math.tanh %447 : vector<2x32xf32>
    %cst_130 = arith.constant 1.000000e+00 : f32
    %449 = vector.broadcast %cst_130 : f32 to vector<2x32xf32>
    %450 = arith.subf %449, %441 : vector<2x32xf32>
    %451 = arith.mulf %450, %448 : vector<2x32xf32>
    %452 = arith.mulf %441, %426 : vector<2x32xf32>
    %453 = arith.addf %451, %452 : vector<2x32xf32>
    %c14_131 = arith.constant 14 : index
    %c0_132 = arith.constant 0 : index
    %454 = vector.load %arg17[%c14_131, %c0_132] : memref<16x32xf32, #tpu.memory_space<vmem>>, vector<2x32xf32>
    tpu.vector_store %arg17[%c14_131, %c0_132], %453 {strides = array<i32>} : memref<16x32xf32, #tpu.memory_space<vmem>>, vector<2x32xf32>,
    %c1_133 = arith.constant 1 : index
    %c0_134 = arith.constant 0 : index
    %c0_135 = arith.constant 0 : index
    %455 = vector.load %arg15[%c1_133, %c0_134, %c0_135] : memref<2x2x32xf32, #tpu.memory_space<vmem>>, vector<1x2x32xf32>
    %456 = vector.shape_cast %455 : vector<1x2x32xf32> to vector<2x32xf32>
    %457 = vector.shape_cast %453 : vector<2x32xf32> to vector<1x2x32xf32>
    tpu.vector_store %arg15[%c1_133, %c0_134, %c0_135], %457 {strides = array<i32>} : memref<2x2x32xf32, #tpu.memory_space<vmem>>, vector<1x2x32xf32>,
    %c0_136 = arith.constant 0 : index
    %c0_137 = arith.constant 0 : index
    %458 = vector.load %arg17[%c0_136, %c0_137] : memref<16x32xf32, #tpu.memory_space<vmem>>, vector<16x32xf32>
    %c0_138 = arith.constant 0 : index
    %c0_139 = arith.constant 0 : index
    %459 = vector.load %arg10[%c0_138, %c0_139] : memref<32x64xf32, #tpu.memory_space<vmem>>, vector<32x64xf32>
    %cst_140 = arith.constant dense<0.000000e+00> : vector<16x64xf32>
    %460 = tpu.matmul %458, %459, %cst_140 {dimension_numbers = #tpu.dot_dimension_numbers<[1], [0], [0], [1], [0, 0, 1, 1], [], []>} : vector<16x32xf32>, vector<32x64xf32>, vector<16x64xf32> -> vector<16x64xf32>
    %c0_141 = arith.constant 0 : index
    %c0_142 = arith.constant 0 : index
    %461 = vector.load %arg11[%c0_141, %c0_142] : memref<1x64xf32, #tpu.memory_space<vmem>>, vector<1x64xf32>
    %462 = vector.broadcast %461 : vector<1x64xf32> to vector<16x64xf32>
    %463 = arith.addf %460, %462 : vector<16x64xf32>
    %cst_143 = arith.constant 0.000000e+00 : f32
    %464 = vector.broadcast %cst_143 : f32 to vector<16x64xf32>
    %465 = arith.maximumf %463, %464 : vector<16x64xf32>
    %c0_144 = arith.constant 0 : index
    %c0_145 = arith.constant 0 : index
    %466 = vector.load %arg12[%c0_144, %c0_145] : memref<64x2xf32, #tpu.memory_space<vmem>>, vector<64x2xf32>
    %cst_146 = arith.constant dense<0.000000e+00> : vector<16x2xf32>
    %467 = tpu.matmul %465, %466, %cst_146 {dimension_numbers = #tpu.dot_dimension_numbers<[1], [0], [0], [1], [0, 0, 1, 1], [], []>} : vector<16x64xf32>, vector<64x2xf32>, vector<16x2xf32> -> vector<16x2xf32>
    %c0_147 = arith.constant 0 : index
    %c0_148 = arith.constant 0 : index
    %468 = vector.load %arg13[%c0_147, %c0_148] : memref<1x2xf32, #tpu.memory_space<vmem>>, vector<1x2xf32>
    %469 = vector.broadcast %468 : vector<1x2xf32> to vector<16x2xf32>
    %470 = arith.addf %467, %469 : vector<16x2xf32>
    %cst_149 = arith.constant dense<0xFF800000> : vector<16xf32>
    %471 = vector.multi_reduction <maximumf>, %470, %cst_149 [1] : vector<16x2xf32> to vector<16xf32>
    %472 = vector.shape_cast %471 : vector<16xf32> to vector<16x1xf32>
    %473 = vector.broadcast %472 : vector<16x1xf32> to vector<16x2xf32>
    %474 = arith.subf %470, %473 : vector<16x2xf32>
    %475 = math.exp %474 : vector<16x2xf32>
    %cst_150 = arith.constant dense<0.000000e+00> : vector<16xf32>
    %476 = vector.multi_reduction <add>, %475, %cst_150 [1] : vector<16x2xf32> to vector<16xf32>
    %477 = vector.shape_cast %476 : vector<16xf32> to vector<16x1xf32>
    %478 = tpu.reciprocal %477 {approx = true} : vector<16x1xf32> -> vector<16x1xf32>
    %479 = vector.broadcast %478 : vector<16x1xf32> to vector<16x2xf32>
    %480 = arith.mulf %475, %479 : vector<16x2xf32>
    %c0_151 = arith.constant 0 : index
    %c0_152 = arith.constant 0 : index
    %481 = vector.load %arg14[%c0_151, %c0_152] : memref<16x2xf32, #tpu.memory_space<vmem>>, vector<16x2xf32>
    tpu.vector_store %arg14[%c0_151, %c0_152], %480 {strides = array<i32>} : memref<16x2xf32, #tpu.memory_space<vmem>>, vector<16x2xf32>,
    return
  }
}

</mosaic_0001>

<llo_original>
// kernel: tpu_custom_call.1
$region0: #{tpu_custom_call.1}
  #allocation0 [shape = 'u32[]', space=smem, size = 0x4, offset = 0x4, fixed_abs, tag = 'smem constant byte address 0x4 - core index']
  #allocation1 [shape = 'u32[144,128]{1,0:T(1,128)}', space=vmem, size = 0x12000, scoped, tag = 'internal scratch']
  #allocation2 [shape = 'f32[16,32]{1,0:T(8,128)}', space=vmem, size = 0x2000, scoped, tag = 'scratch operand']
  #allocation3 [shape = 'f32[16,32]{1,0:T(8,128)}', space=vmem, size = 0x2000, scoped, tag = 'scratch operand']
  %s0 = inlined_call_operand.hbm [shape: f32[16,32], index: 0, kind: input, shape index: {}]
  %s1 = inlined_call_operand.hbm [shape: f32[2,2,32], index: 1, kind: input, shape index: {}]
  %s2 = inlined_call_operand.vmem [shape: f32[32,96], index: 2, kind: input, shape index: {}]
  %s3 = inlined_call_operand.vmem [shape: f32[32,96], index: 3, kind: input, shape index: {}]
  %s4 = inlined_call_operand.hbm [shape: f32[1,96], index: 4, kind: input, shape index: {}]
  %s5 = inlined_call_operand.hbm [shape: f32[1,32], index: 5, kind: input, shape index: {}]
  %s6 = inlined_call_operand.hbm [shape: f32[32,96], index: 6, kind: input, shape index: {}]
  %s7 = inlined_call_operand.hbm [shape: f32[32,96], index: 7, kind: input, shape index: {}]
  %s8 = inlined_call_operand.hbm [shape: f32[1,96], index: 8, kind: input, shape index: {}]
  %s9 = inlined_call_operand.vmem [shape: f32[1,32], index: 9, kind: input, shape index: {}]
  %s10 = inlined_call_operand.vmem [shape: f32[32,64], index: 10, kind: input, shape index: {}]
  %s11 = inlined_call_operand.vmem [shape: f32[1,64], index: 11, kind: input, shape index: {}]
  %s12 = inlined_call_operand.vmem [shape: f32[64,2], index: 12, kind: input, shape index: {}]
  %s13 = inlined_call_operand.vmem [shape: f32[1,2], index: 13, kind: input, shape index: {}]
  %s14 = inlined_call_operand.vmem [shape: f32[16,2], index: 14, kind: output, shape index: {0}]
  %s15 = inlined_call_operand.hbm [shape: f32[2,2,32], index: 15, kind: output, shape index: {1}]
  %16 = xla_tuple %s14, %s15
  %s17 = sld [smem:[#allocation0]]
  $region102: #{tpu_custom_call.1} parent=0
    _
  %s19 = ssub.s32 1, %s17
  %s20 = scalar_select 0, %s19, %s17
  $region1: #{tpu_custom_call.1} parent=0
    #allocation4 [shape = 'u8[8192]{0}', space=vmem, size = 0x2000, scoped, tag = 'input window, operand 0, single buffered']
    #allocation5 [shape = 's32[1]{0}', space=sflag, size = 0x4, scoped, tag = 'scoped memory for tpu_custom_call.1']
    #allocation6 [shape = 's32[1]{0}', space=sflag, size = 0x4, scoped, tag = 'scoped memory for tpu_custom_call.1']
    #allocation7 [shape = 'u8[2048]{0}', space=vmem, size = 0x800, scoped, tag = 'input window, operand 1, single buffered']
    #allocation8 [shape = 's32[1]{0}', space=sflag, size = 0x4, scoped, tag = 'scoped memory for tpu_custom_call.1']
    #allocation9 [shape = 'u8[512]{0}', space=vmem, size = 0x400, scoped, tag = 'input window, operand 4, single buffered']
    #allocation10 [shape = 'u8[512]{0}', space=vmem, size = 0x400, scoped, tag = 'input window, operand 5, single buffered']
    #allocation11 [shape = 's32[1]{0}', space=sflag, size = 0x4, scoped, tag = 'scoped memory for tpu_custom_call.1']
    #allocation12 [shape = 'u8[16384]{0}', space=vmem, size = 0x4000, scoped, tag = 'input window, operand 6, single buffered']
    #allocation13 [shape = 'u8[16384]{0}', space=vmem, size = 0x4000, scoped, tag = 'input window, operand 7, single buffered']
    #allocation14 [shape = 's32[1]{0}', space=sflag, size = 0x4, scoped, tag = 'scoped memory for tpu_custom_call.1']
    #allocation15 [shape = 'u8[512]{0}', space=vmem, size = 0x400, scoped, tag = 'input window, operand 8, single buffered']
    #allocation16 [shape = 'u8[2048]{0}', space=vmem, size = 0x800, scoped, tag = 'output window, operand 1, single buffered']
    %21 = vsyncpa [#allocation5], 0
    %22 = vsyncpa [#allocation8], 0
    %23 = vsyncpa [#allocation11], 0
    %24 = vsyncpa [#allocation14], 0
    %25 = vsyncpa [#allocation6], 0
    // Predicated region
    $region2: #{tpu_custom_call.1} parent=1 // pred_check
      _
    $region3: #{tpu_custom_call.1} parent=1 // pred_check_branch
      %27 = sbr.rel (0) target = $region5
    $region4: #{tpu_custom_call.1} parent=1 // pred_region
      %s29 = ssub.s32 256, 256
      %30 = vsyncadd [#allocation5], %s29
      %s31 = sshll.u32 [#allocation4], 4
      %s32 = int_to_ptr.vmem [resolvable:$true] %s31
      %37 = dma.hbm_to_vmem [thread:$0]  %s0, 256, %s32, [#allocation5], 128, 128, 8
    $region5: #{tpu_custom_call.1} parent=1 // pred_fallthru
      _
    // Predicated region
    $region6: #{tpu_custom_call.1} parent=1 // pred_check
      _
    $region7: #{tpu_custom_call.1} parent=1 // pred_check_branch
      %39 = sbr.rel (0) target = $region9
    $region8: #{tpu_custom_call.1} parent=1 // pred_region
      %s41 = ssub.s32 64, 64
      %42 = vsyncadd [#allocation8], %s41
      %s43 = sshll.u32 [#allocation7], 4
      %s44 = int_to_ptr.vmem [resolvable:$true] %s43
      %49 = dma.hbm_to_vmem [thread:$0]  %s1, 64, %s44, [#allocation8], 32, 32, 2
    $region9: #{tpu_custom_call.1} parent=1 // pred_fallthru
      _
    // Predicated region
    $region10: #{tpu_custom_call.1} parent=1 // pred_check
      _
    $region11: #{tpu_custom_call.1} parent=1 // pred_check_branch
      %51 = sbr.rel (0) target = $region13
    $region12: #{tpu_custom_call.1} parent=1 // pred_region
      _
    $region13: #{tpu_custom_call.1} parent=1 // pred_fallthru
      _
    // Predicated region
    $region14: #{tpu_custom_call.1} parent=1 // pred_check
      _
    $region15: #{tpu_custom_call.1} parent=1 // pred_check_branch
      %53 = sbr.rel (0) target = $region17
    $region16: #{tpu_custom_call.1} parent=1 // pred_region
      _
    $region17: #{tpu_custom_call.1} parent=1 // pred_fallthru
      _
    // Predicated region
    $region18: #{tpu_custom_call.1} parent=1 // pred_check
      _
    $region19: #{tpu_custom_call.1} parent=1 // pred_check_branch
      %55 = sbr.rel (0) target = $region21
    $region20: #{tpu_custom_call.1} parent=1 // pred_region
      %s57 = ssub.s32 16, 16
      %58 = vsyncadd [#allocation8], %s57
      %s60 = sshll.u32 [#allocation9], 4
      %s61 = int_to_ptr.vmem [resolvable:$true] %s60
      %63 = dma.hbm_to_vmem [thread:$0]  %s4, 16, %s61, [#allocation8]
    $region21: #{tpu_custom_call.1} parent=1 // pred_fallthru
      _
    // Predicated region
    $region22: #{tpu_custom_call.1} parent=1 // pred_check
      _
    $region23: #{tpu_custom_call.1} parent=1 // pred_check_branch
      %65 = sbr.rel (0) target = $region25
    $region24: #{tpu_custom_call.1} parent=1 // pred_region
      %s67 = ssub.s32 16, 16
      %68 = vsyncadd [#allocation11], %s67
      %s70 = sshll.u32 [#allocation10], 4
      %s71 = int_to_ptr.vmem [resolvable:$true] %s70
      %73 = dma.hbm_to_vmem [thread:$0]  %s5, 16, %s71, [#allocation11]
    $region25: #{tpu_custom_call.1} parent=1 // pred_fallthru
      _
    // Predicated region
    $region26: #{tpu_custom_call.1} parent=1 // pred_check
      _
    $region27: #{tpu_custom_call.1} parent=1 // pred_check_branch
      %75 = sbr.rel (0) target = $region29
    $region28: #{tpu_custom_call.1} parent=1 // pred_region
      %s77 = ssub.s32 512, 512
      %78 = vsyncadd [#allocation11], %s77
      %s79 = sshll.u32 [#allocation12], 4
      %s80 = int_to_ptr.vmem [resolvable:$true] %s79
      %85 = dma.hbm_to_vmem [thread:$0]  %s6, 512, %s80, [#allocation11], 128, 128, 8
    $region29: #{tpu_custom_call.1} parent=1 // pred_fallthru
      _
    // Predicated region
    $region30: #{tpu_custom_call.1} parent=1 // pred_check
      _
    $region31: #{tpu_custom_call.1} parent=1 // pred_check_branch
      %87 = sbr.rel (0) target = $region33
    $region32: #{tpu_custom_call.1} parent=1 // pred_region
      %s89 = ssub.s32 512, 512
      %90 = vsyncadd [#allocation14], %s89
      %s91 = sshll.u32 [#allocation13], 4
      %s92 = int_to_ptr.vmem [resolvable:$true] %s91
      %97 = dma.hbm_to_vmem [thread:$0]  %s7, 512, %s92, [#allocation14], 128, 128, 8
    $region33: #{tpu_custom_call.1} parent=1 // pred_fallthru
      _
    // Predicated region
    $region34: #{tpu_custom_call.1} parent=1 // pred_check
      _
    $region35: #{tpu_custom_call.1} parent=1 // pred_check_branch
      %99 = sbr.rel (0) target = $region37
    $region36: #{tpu_custom_call.1} parent=1 // pred_region
      %s101 = ssub.s32 16, 16
      %102 = vsyncadd [#allocation14], %s101
      %s104 = sshll.u32 [#allocation15], 4
      %s105 = int_to_ptr.vmem [resolvable:$true] %s104
      %107 = dma.hbm_to_vmem [thread:$0]  %s8, 16, %s105, [#allocation14]
    $region37: #{tpu_custom_call.1} parent=1 // pred_fallthru
      _
    // Predicated region
    $region38: #{tpu_custom_call.1} parent=1 // pred_check
      _
    $region39: #{tpu_custom_call.1} parent=1 // pred_check_branch
      %109 = sbr.rel (0) target = $region41
    $region40: #{tpu_custom_call.1} parent=1 // pred_region
      _
    $region41: #{tpu_custom_call.1} parent=1 // pred_fallthru
      _
    // Predicated region
    $region42: #{tpu_custom_call.1} parent=1 // pred_check
      _
    $region43: #{tpu_custom_call.1} parent=1 // pred_check_branch
      %111 = sbr.rel (0) target = $region45
    $region44: #{tpu_custom_call.1} parent=1 // pred_region
      _
    $region45: #{tpu_custom_call.1} parent=1 // pred_fallthru
      _
    // Predicated region
    $region46: #{tpu_custom_call.1} parent=1 // pred_check
      _
    $region47: #{tpu_custom_call.1} parent=1 // pred_check_branch
      %113 = sbr.rel (0) target = $region49
    $region48: #{tpu_custom_call.1} parent=1 // pred_region
      _
    $region49: #{tpu_custom_call.1} parent=1 // pred_fallthru
      _
    // Predicated region
    $region50: #{tpu_custom_call.1} parent=1 // pred_check
      _
    $region51: #{tpu_custom_call.1} parent=1 // pred_check_branch
      %115 = sbr.rel (0) target = $region53
    $region52: #{tpu_custom_call.1} parent=1 // pred_region
      _
    $region53: #{tpu_custom_call.1} parent=1 // pred_fallthru
      _
    // Predicated region
    $region54: #{tpu_custom_call.1} parent=1 // pred_check
      _
    $region55: #{tpu_custom_call.1} parent=1 // pred_check_branch
      %117 = sbr.rel (0) target = $region57
    $region56: #{tpu_custom_call.1} parent=1 // pred_region
      _
    $region57: #{tpu_custom_call.1} parent=1 // pred_fallthru
      _
    // Predicated region
    $region58: #{tpu_custom_call.1} parent=1 // pred_check
      _
    $region59: #{tpu_custom_call.1} parent=1 // pred_check_branch
      %119 = sbr.rel (0) target = $region61
    $region60: #{tpu_custom_call.1} parent=1 // pred_region
      %120 = dma.done [#allocation5], 256
    $region61: #{tpu_custom_call.1} parent=1 // pred_fallthru
      _
    // Predicated region
    $region62: #{tpu_custom_call.1} parent=1 // pred_check
      _
    $region63: #{tpu_custom_call.1} parent=1 // pred_check_branch
      %122 = sbr.rel (0) target = $region65
    $region64: #{tpu_custom_call.1} parent=1 // pred_region
      %123 = dma.done [#allocation8], 64
    $region65: #{tpu_custom_call.1} parent=1 // pred_fallthru
      _
    // Predicated region
    $region66: #{tpu_custom_call.1} parent=1 // pred_check
      _
    $region67: #{tpu_custom_call.1} parent=1 // pred_check_branch
      %125 = sbr.rel (0) target = $region69
    $region68: #{tpu_custom_call.1} parent=1 // pred_region
      %126 = dma.done [#allocation8], 16
    $region69: #{tpu_custom_call.1} parent=1 // pred_fallthru
      _
    // Predicated region
    $region70: #{tpu_custom_call.1} parent=1 // pred_check
      _
    $region71: #{tpu_custom_call.1} parent=1 // pred_check_branch
      %128 = sbr.rel (0) target = $region73
    $region72: #{tpu_custom_call.1} parent=1 // pred_region
      %129 = dma.done [#allocation11], 16
    $region73: #{tpu_custom_call.1} parent=1 // pred_fallthru
      _
    // Predicated region
    $region74: #{tpu_custom_call.1} parent=1 // pred_check
      _
    $region75: #{tpu_custom_call.1} parent=1 // pred_check_branch
      %131 = sbr.rel (0) target = $region77
    $region76: #{tpu_custom_call.1} parent=1 // pred_region
      %132 = dma.done [#allocation11], 512
    $region77: #{tpu_custom_call.1} parent=1 // pred_fallthru
      _
    // Predicated region
    $region78: #{tpu_custom_call.1} parent=1 // pred_check
      _
    $region79: #{tpu_custom_call.1} parent=1 // pred_check_branch
      %134 = sbr.rel (0) target = $region81
    $region80: #{tpu_custom_call.1} parent=1 // pred_region
      %135 = dma.done [#allocation14], 512
    $region81: #{tpu_custom_call.1} parent=1 // pred_fallthru
      _
    // Predicated region
    $region82: #{tpu_custom_call.1} parent=1 // pred_check
      _
    $region83: #{tpu_custom_call.1} parent=1 // pred_check_branch
      %137 = sbr.rel (0) target = $region85
    $region84: #{tpu_custom_call.1} parent=1 // pred_region
      %138 = dma.done [#allocation14], 16
    $region85: #{tpu_custom_call.1} parent=1 // pred_fallthru
      _
    %v139 = vld [vmem:[%s2] sm:$0xff]
    %v140 = vld [vmem:[%s2 + $0x8] sm:$0xff]
    %v141 = vld [vmem:[%s2 + $0x10] sm:$0xff]
    %v142 = vld [vmem:[%s2 + $0x18] sm:$0xff]
    %v143 = vld [vmem:[%s3] sm:$0xff]
    %v144 = vld [vmem:[%s3 + $0x8] sm:$0xff]
    %v145 = vld [vmem:[%s3 + $0x10] sm:$0xff]
    %v146 = vld [vmem:[%s3 + $0x18] sm:$0xff]
    %v147 = vld [vmem:[#allocation9] sm:$0x1]
    %v148 = vld [vmem:[#allocation10] sm:$0x1]
    %v149 = vld [vmem:[#allocation4] sm:$0xff]
    %v150 = vld [vmem:[#allocation4 + $0x8] sm:$0xff]
    %v152 = vlaneseq
    %v153 = vshrl.u32 %v152, 7
    %v154 = vsub.s32 0, %v153
    %v155 = vrot.slane %v147, %v154
    %vm157 = vcmask 261120
    %v159 = vsel %vm157, %v149, 0
    %v162 = vsel %vm157, %v150, 0
    %164 = vmatprep.subr.mxu0 0.0
    %165 = vmatpush1.msra.mxu0 %v139
    %166 = vmatprep.subr.mxu0 0.0
    %167 = vmatpush1.msra.mxu0 %v140
    %168 = vmatprep.subr.mxu0 0.0
    %169 = vmatpush1.msra.mxu0 %v141
    %170 = vmatprep.subr.mxu0 0.0
    %171 = vmatpush1.msra.mxu0 %v142
    %172 = vmatprep.subr.mxu0 0.0
    %173 = vmatpush1.msra.mxu0 0.0
    %174 = vmatprep.subr.mxu0 0.0
    %175 = vmatpush1.msra.mxu0 0.0
    %176 = vmatprep.subr.mxu0 0.0
    %177 = vmatpush1.msra.mxu0 0.0
    %178 = vmatprep.subr.mxu0 0.0
    %179 = vmatpush1.msra.mxu0 0.0
    %180 = vmatprep.subr.mxu0 0.0
    %181 = vmatpush1.msra.mxu0 0.0
    %182 = vmatprep.subr.mxu0 0.0
    %183 = vmatpush1.msra.mxu0 0.0
    %184 = vmatprep.subr.mxu0 0.0
    %185 = vmatpush1.msra.mxu0 0.0
    %186 = vmatprep.subr.mxu0 0.0
    %187 = vmatpush1.msra.mxu0 0.0
    %188 = vmatprep.subr.mxu0 0.0
    %189 = vmatpush1.msra.mxu0 0.0
    %190 = vmatprep.subr.mxu0 0.0
    %191 = vmatpush1.msra.mxu0 0.0
    %192 = vmatprep.subr.mxu0 0.0
    %193 = vmatpush1.msra.mxu0 0.0
    %194 = vmatprep.subr.mxu0 0.0
    %195 = vmatpush1.msra.mxu0 0.0
    %196 = vmatprep.subr.mxu0 0.0
    %197 = vmatpush1.msra.mxu0 0.0
    %198 = vmatprep.subr.mxu0 0.0
    %199 = vmatpush1.msra.mxu0 0.0
    %200 = vmatprep.subr.mxu0 0.0
    %201 = vmatpush1.msra.mxu0 0.0
    %202 = vmatprep.subr.mxu0 0.0
    %203 = vmatpush1.msra.mxu0 0.0
    %204 = vmatprep.subr.mxu0 0.0
    %205 = vmatpush1.msra.mxu0 0.0
    %206 = vmatprep.subr.mxu0 0.0
    %207 = vmatpush1.msra.mxu0 0.0
    %208 = vmatprep.subr.mxu0 0.0
    %209 = vmatpush1.msra.mxu0 0.0
    %210 = vmatprep.subr.mxu0 0.0
    %211 = vmatpush1.msra.mxu0 0.0
    %212 = vmatprep.subr.mxu0 0.0
    %213 = vmatpush1.msra.mxu0 0.0
    %214 = vmatprep.subr.mxu0 0.0
    %215 = vmatpush1.msra.mxu0 0.0
    %216 = vmatprep.subr.mxu0 0.0
    %217 = vmatpush1.msra.mxu0 0.0
    %218 = vmatprep.subr.mxu0 0.0
    %219 = vmatpush1.msra.mxu0 0.0
    %220 = vmatprep.subr.mxu0 0.0
    %221 = vmatpush1.msra.mxu0 0.0
    %222 = vmatprep.subr.mxu0 0.0
    %223 = vmatpush1.msra.mxu0 0.0
    %224 = vmatprep.subr.mxu0 0.0
    %225 = vmatpush1.msra.mxu0 0.0
    %226 = vmatprep.subr.mxu0 0.0
    %227 = vmatpush1.msra.mxu0 0.0
    %228 = vmatprep.mubr.f32.mxu0 0.0
    %229 = vmatmul.mubr.f32.gmra.mrb[0].mxu0 %v159
    %v230 = vpop.f32.mrb[0].mxu0
    %v231 = vadd.f32 %v155, %v230
    %v232 = vpop.f32.mrb[0].mxu0
    %233 = vmatprep.mubr.f32.mxu0 0.0
    %234 = vmatmul.mubr.f32.gmra.mrb[0].mxu0 %v162
    %v235 = vpop.f32.mrb[0].mxu0
    %v236 = vadd.f32 %v155, %v235
    %v237 = vpop.f32.mrb[0].mxu0
    %238 = vdwg.mxu0
    %v239 = vld [vmem:[#allocation7] sm:$0x3]
    %v241 = vsel %vm157, %v239, 0
    %243 = vmatprep.subr.mxu0 0.0
    %244 = vmatpush1.msra.mxu0 %v143
    %245 = vmatprep.subr.mxu0 0.0
    %246 = vmatpush1.msra.mxu0 %v144
    %247 = vmatprep.subr.mxu0 0.0
    %248 = vmatpush1.msra.mxu0 %v145
    %249 = vmatprep.subr.mxu0 0.0
    %250 = vmatpush1.msra.mxu0 %v146
    %251 = vmatprep.subr.mxu0 0.0
    %252 = vmatpush1.msra.mxu0 0.0
    %253 = vmatprep.subr.mxu0 0.0
    %254 = vmatpush1.msra.mxu0 0.0
    %255 = vmatprep.subr.mxu0 0.0
    %256 = vmatpush1.msra.mxu0 0.0
    %257 = vmatprep.subr.mxu0 0.0
    %258 = vmatpush1.msra.mxu0 0.0
    %259 = vmatprep.subr.mxu0 0.0
    %260 = vmatpush1.msra.mxu0 0.0
    %261 = vmatprep.subr.mxu0 0.0
    %262 = vmatpush1.msra.mxu0 0.0
    %263 = vmatprep.subr.mxu0 0.0
    %264 = vmatpush1.msra.mxu0 0.0
    %265 = vmatprep.subr.mxu0 0.0
    %266 = vmatpush1.msra.mxu0 0.0
    %267 = vmatprep.subr.mxu0 0.0
    %268 = vmatpush1.msra.mxu0 0.0
    %269 = vmatprep.subr.mxu0 0.0
    %270 = vmatpush1.msra.mxu0 0.0
    %271 = vmatprep.subr.mxu0 0.0
    %272 = vmatpush1.msra.mxu0 0.0
    %273 = vmatprep.subr.mxu0 0.0
    %274 = vmatpush1.msra.mxu0 0.0
    %275 = vmatprep.subr.mxu0 0.0
    %276 = vmatpush1.msra.mxu0 0.0
    %277 = vmatprep.subr.mxu0 0.0
    %278 = vmatpush1.msra.mxu0 0.0
    %279 = vmatprep.subr.mxu0 0.0
    %280 = vmatpush1.msra.mxu0 0.0
    %281 = vmatprep.subr.mxu0 0.0
    %282 = vmatpush1.msra.mxu0 0.0
    %283 = vmatprep.subr.mxu0 0.0
    %284 = vmatpush1.msra.mxu0 0.0
    %285 = vmatprep.subr.mxu0 0.0
    %286 = vmatpush1.msra.mxu0 0.0
    %287 = vmatprep.subr.mxu0 0.0
    %288 = vmatpush1.msra.mxu0 0.0
    %289 = vmatprep.subr.mxu0 0.0
    %290 = vmatpush1.msra.mxu0 0.0
    %291 = vmatprep.subr.mxu0 0.0
    %292 = vmatpush1.msra.mxu0 0.0
    %293 = vmatprep.subr.mxu0 0.0
    %294 = vmatpush1.msra.mxu0 0.0
    %295 = vmatprep.subr.mxu0 0.0
    %296 = vmatpush1.msra.mxu0 0.0
    %297 = vmatprep.subr.mxu0 0.0
    %298 = vmatpush1.msra.mxu0 0.0
    %299 = vmatprep.subr.mxu0 0.0
    %300 = vmatpush1.msra.mxu0 0.0
    %301 = vmatprep.subr.mxu0 0.0
    %302 = vmatpush1.msra.mxu0 0.0
    %303 = vmatprep.subr.mxu0 0.0
    %304 = vmatpush1.msra.mxu0 0.0
    %305 = vmatprep.subr.mxu0 0.0
    %306 = vmatpush1.msra.mxu0 0.0
    %307 = vmatprep.mubr.f32.mxu0 0.0
    %308 = vmatmul.mubr.f32.gmra.mrb[0].mxu0 %v241
    %v309 = vpop.f32.mrb[0].mxu0
    %v310 = vadd.f32 0.0, %v309
    %v311 = vpop.f32.mrb[0].mxu0
    %312 = vdwg.mxu0
    %v313 = vadd.f32 %v231, %v310
    %v314 = vsub.f32 0.0, %v313
    %v315 = vmul.f32 %v314, 1.442695
    %v316 = vpow.pop %v315
    %v317 = vadd.f32 %v316, 1.0
    %v318 = vrcp.pop %v317
    %v319 = vmul.f32 1.0, %v318
    %v321 = vlaneseq
    %v322 = vshrl.u32 %v321, 7
    %v323 = vsub.s32 0, %v322
    %v324 = vrot.slane %v148, %v323
    %325 = vrot.lane.b32.xlu0 %v324, 64
    %v326 = vpop.permute.xlu0 %325
    %v328 = vadd.f32 %v310, %v326
    %330 = vrot.lane.b32.xlu0 %v328, 64
    %v331 = vpop.permute.xlu0 %330
    %v333 = vmul.f32 %v319, %v331
    %335 = vrot.lane.b32.xlu0 %v333, 64
    %v336 = vpop.permute.xlu0 %335
    %v338 = vadd.f32 %v231, %v336
    %v339 = vtanh.pop %v338
    %v340 = vsub.f32 1.0, %v319
    %342 = vrot.lane.b32.xlu0 %v339, 96
    %v343 = vpop.permute.xlu0 %342
    %v345 = vmul.f32 %v340, %v343
    %346 = vrot.lane.b32.xlu0 %v239, 32
    %v347 = vpop.permute.xlu0 %346
    %v349 = vmul.f32 %v319, %v347
    %v350 = vadd.f32 %v345, %v349
    %352 = vrot.lane.b32.xlu0 %v350, 96
    %v353 = vpop.permute.xlu0 %352
    %vm355 = vcmask 254976
    %356 = vst.msk [vmem:[#allocation2] sm:$0x3] %vm355, %v353
    %v357 = vsel %vm157, %v353, 0
    %359 = vmatprep.subr.mxu0 0.0
    %360 = vmatpush1.msra.mxu0 %v143
    %361 = vmatprep.subr.mxu0 0.0
    %362 = vmatpush1.msra.mxu0 %v144
    %363 = vmatprep.subr.mxu0 0.0
    %364 = vmatpush1.msra.mxu0 %v145
    %365 = vmatprep.subr.mxu0 0.0
    %366 = vmatpush1.msra.mxu0 %v146
    %367 = vmatprep.subr.mxu0 0.0
    %368 = vmatpush1.msra.mxu0 0.0
    %369 = vmatprep.subr.mxu0 0.0
    %370 = vmatpush1.msra.mxu0 0.0
    %371 = vmatprep.subr.mxu0 0.0
    %372 = vmatpush1.msra.mxu0 0.0
    %373 = vmatprep.subr.mxu0 0.0
    %374 = vmatpush1.msra.mxu0 0.0
    %375 = vmatprep.subr.mxu0 0.0
    %376 = vmatpush1.msra.mxu0 0.0
    %377 = vmatprep.subr.mxu0 0.0
    %378 = vmatpush1.msra.mxu0 0.0
    %379 = vmatprep.subr.mxu0 0.0
    %380 = vmatpush1.msra.mxu0 0.0
    %381 = vmatprep.subr.mxu0 0.0
    %382 = vmatpush1.msra.mxu0 0.0
    %383 = vmatprep.subr.mxu0 0.0
    %384 = vmatpush1.msra.mxu0 0.0
    %385 = vmatprep.subr.mxu0 0.0
    %386 = vmatpush1.msra.mxu0 0.0
    %387 = vmatprep.subr.mxu0 0.0
    %388 = vmatpush1.msra.mxu0 0.0
    %389 = vmatprep.subr.mxu0 0.0
    %390 = vmatpush1.msra.mxu0 0.0
    %391 = vmatprep.subr.mxu0 0.0
    %392 = vmatpush1.msra.mxu0 0.0
    %393 = vmatprep.subr.mxu0 0.0
    %394 = vmatpush1.msra.mxu0 0.0
    %395 = vmatprep.subr.mxu0 0.0
    %396 = vmatpush1.msra.mxu0 0.0
    %397 = vmatprep.subr.mxu0 0.0
    %398 = vmatpush1.msra.mxu0 0.0
    %399 = vmatprep.subr.mxu0 0.0
    %400 = vmatpush1.msra.mxu0 0.0
    %401 = vmatprep.subr.mxu0 0.0
    %402 = vmatpush1.msra.mxu0 0.0
    %403 = vmatprep.subr.mxu0 0.0
    %404 = vmatpush1.msra.mxu0 0.0
    %405 = vmatprep.subr.mxu0 0.0
    %406 = vmatpush1.msra.mxu0 0.0
    %407 = vmatprep.subr.mxu0 0.0
    %408 = vmatpush1.msra.mxu0 0.0
    %409 = vmatprep.subr.mxu0 0.0
    %410 = vmatpush1.msra.mxu0 0.0
    %411 = vmatprep.subr.mxu0 0.0
    %412 = vmatpush1.msra.mxu0 0.0
    %413 = vmatprep.subr.mxu0 0.0
    %414 = vmatpush1.msra.mxu0 0.0
    %415 = vmatprep.subr.mxu0 0.0
    %416 = vmatpush1.msra.mxu0 0.0
    %417 = vmatprep.subr.mxu0 0.0
    %418 = vmatpush1.msra.mxu0 0.0
    %419 = vmatprep.subr.mxu0 0.0
    %420 = vmatpush1.msra.mxu0 0.0
    %421 = vmatprep.subr.mxu0 0.0
    %422 = vmatpush1.msra.mxu0 0.0
    %423 = vmatprep.mubr.f32.mxu0 0.0
    %424 = vmatmul.mubr.f32.gmra.mrb[0].mxu0 %v357
    %v425 = vpop.f32.mrb[0].mxu0
    %v426 = vadd.f32 0.0, %v425
    %v427 = vpop.f32.mrb[0].mxu0
    %428 = vdwg.mxu0
    %v430 = vrot.slane %v426, 6
    %v432 = vadd.f32 %v231, %v430
    %v433 = vsub.f32 0.0, %v432
    %v434 = vmul.f32 %v433, 1.442695
    %v435 = vpow.pop %v434
    %v436 = vadd.f32 %v435, 1.0
    %v437 = vrcp.pop %v436
    %v438 = vmul.f32 1.0, %v437
    %v439 = vadd.f32 %v426, %v326
    %v441 = vrot.slane %v439, 6
    %442 = vrot.lane.b32.xlu0 %v441, 64
    %v443 = vpop.permute.xlu0 %442
    %v445 = vmul.f32 %v438, %v443
    %447 = vrot.lane.b32.xlu0 %v445, 64
    %v448 = vpop.permute.xlu0 %447
    %v450 = vadd.f32 %v231, %v448
    %v451 = vtanh.pop %v450
    %v452 = vsub.f32 1.0, %v438
    %454 = vrot.lane.b32.xlu0 %v451, 96
    %v455 = vpop.permute.xlu0 %454
    %v457 = vmul.f32 %v452, %v455
    %v458 = vrot.slane %v350, 6
    %v460 = vmul.f32 %v438, %v458
    %v461 = vadd.f32 %v457, %v460
    %463 = vrot.lane.b32.xlu0 %v461, 96
    %v464 = vpop.permute.xlu0 %463
    %vm466 = vcmask 257026
    %467 = vst.msk [vmem:[#allocation2] sm:$0xc] %vm466, %v464
    %v468 = vrot.slane %v461, 2
    %469 = vrot.lane.b32.xlu0 %v468, 96
    %v470 = vpop.permute.xlu0 %469
    %v471 = vsel %vm157, %v470, 0
    %473 = vmatprep.subr.mxu0 0.0
    %474 = vmatpush1.msra.mxu0 %v143
    %475 = vmatprep.subr.mxu0 0.0
    %476 = vmatpush1.msra.mxu0 %v144
    %477 = vmatprep.subr.mxu0 0.0
    %478 = vmatpush1.msra.mxu0 %v145
    %479 = vmatprep.subr.mxu0 0.0
    %480 = vmatpush1.msra.mxu0 %v146
    %481 = vmatprep.subr.mxu0 0.0
    %482 = vmatpush1.msra.mxu0 0.0
    %483 = vmatprep.subr.mxu0 0.0
    %484 = vmatpush1.msra.mxu0 0.0
    %485 = vmatprep.subr.mxu0 0.0
    %486 = vmatpush1.msra.mxu0 0.0
    %487 = vmatprep.subr.mxu0 0.0
    %488 = vmatpush1.msra.mxu0 0.0
    %489 = vmatprep.subr.mxu0 0.0
    %490 = vmatpush1.msra.mxu0 0.0
    %491 = vmatprep.subr.mxu0 0.0
    %492 = vmatpush1.msra.mxu0 0.0
    %493 = vmatprep.subr.mxu0 0.0
    %494 = vmatpush1.msra.mxu0 0.0
    %495 = vmatprep.subr.mxu0 0.0
    %496 = vmatpush1.msra.mxu0 0.0
    %497 = vmatprep.subr.mxu0 0.0
    %498 = vmatpush1.msra.mxu0 0.0
    %499 = vmatprep.subr.mxu0 0.0
    %500 = vmatpush1.msra.mxu0 0.0
    %501 = vmatprep.subr.mxu0 0.0
    %502 = vmatpush1.msra.mxu0 0.0
    %503 = vmatprep.subr.mxu0 0.0
    %504 = vmatpush1.msra.mxu0 0.0
    %505 = vmatprep.subr.mxu0 0.0
    %506 = vmatpush1.msra.mxu0 0.0
    %507 = vmatprep.subr.mxu0 0.0
    %508 = vmatpush1.msra.mxu0 0.0
    %509 = vmatprep.subr.mxu0 0.0
    %510 = vmatpush1.msra.mxu0 0.0
    %511 = vmatprep.subr.mxu0 0.0
    %512 = vmatpush1.msra.mxu0 0.0
    %513 = vmatprep.subr.mxu0 0.0
    %514 = vmatpush1.msra.mxu0 0.0
    %515 = vmatprep.subr.mxu0 0.0
    %516 = vmatpush1.msra.mxu0 0.0
    %517 = vmatprep.subr.mxu0 0.0
    %518 = vmatpush1.msra.mxu0 0.0
    %519 = vmatprep.subr.mxu0 0.0
    %520 = vmatpush1.msra.mxu0 0.0
    %521 = vmatprep.subr.mxu0 0.0
    %522 = vmatpush1.msra.mxu0 0.0
    %523 = vmatprep.subr.mxu0 0.0
    %524 = vmatpush1.msra.mxu0 0.0
    %525 = vmatprep.subr.mxu0 0.0
    %526 = vmatpush1.msra.mxu0 0.0
    %527 = vmatprep.subr.mxu0 0.0
    %528 = vmatpush1.msra.mxu0 0.0
    %529 = vmatprep.subr.mxu0 0.0
    %530 = vmatpush1.msra.mxu0 0.0
    %531 = vmatprep.subr.mxu0 0.0
    %532 = vmatpush1.msra.mxu0 0.0
    %533 = vmatprep.subr.mxu0 0.0
    %534 = vmatpush1.msra.mxu0 0.0
    %535 = vmatprep.subr.mxu0 0.0
    %536 = vmatpush1.msra.mxu0 0.0
    %537 = vmatprep.mubr.f32.mxu0 0.0
    %538 = vmatmul.mubr.f32.gmra.mrb[0].mxu0 %v471
    %v539 = vpop.f32.mrb[0].mxu0
    %v540 = vadd.f32 0.0, %v539
    %v541 = vpop.f32.mrb[0].mxu0
    %542 = vdwg.mxu0
    %v544 = vrot.slane %v540, 4
    %v546 = vadd.f32 %v231, %v544
    %v547 = vsub.f32 0.0, %v546
    %v548 = vmul.f32 %v547, 1.442695
    %v549 = vpow.pop %v548
    %v550 = vadd.f32 %v549, 1.0
    %v551 = vrcp.pop %v550
    %v552 = vmul.f32 1.0, %v551
    %v553 = vadd.f32 %v540, %v326
    %v555 = vrot.slane %v553, 4
    %556 = vrot.lane.b32.xlu0 %v555, 64
    %v557 = vpop.permute.xlu0 %556
    %v559 = vmul.f32 %v552, %v557
    %561 = vrot.lane.b32.xlu0 %v559, 64
    %v562 = vpop.permute.xlu0 %561
    %v564 = vadd.f32 %v231, %v562
    %v565 = vtanh.pop %v564
    %v566 = vsub.f32 1.0, %v552
    %568 = vrot.lane.b32.xlu0 %v565, 96
    %v569 = vpop.permute.xlu0 %568
    %v571 = vmul.f32 %v566, %v569
    %v572 = vrot.slane %v461, 6
    %v574 = vmul.f32 %v552, %v572
    %v575 = vadd.f32 %v571, %v574
    %577 = vrot.lane.b32.xlu0 %v575, 96
    %v578 = vpop.permute.xlu0 %577
    %vm580 = vcmask 259076
    %581 = vst.msk [vmem:[#allocation2] sm:$0x30] %vm580, %v578
    %v582 = vrot.slane %v575, 4
    %583 = vrot.lane.b32.xlu0 %v582, 96
    %v584 = vpop.permute.xlu0 %583
    %v585 = vsel %vm157, %v584, 0
    %587 = vmatprep.subr.mxu0 0.0
    %588 = vmatpush1.msra.mxu0 %v143
    %589 = vmatprep.subr.mxu0 0.0
    %590 = vmatpush1.msra.mxu0 %v144
    %591 = vmatprep.subr.mxu0 0.0
    %592 = vmatpush1.msra.mxu0 %v145
    %593 = vmatprep.subr.mxu0 0.0
    %594 = vmatpush1.msra.mxu0 %v146
    %595 = vmatprep.subr.mxu0 0.0
    %596 = vmatpush1.msra.mxu0 0.0
    %597 = vmatprep.subr.mxu0 0.0
    %598 = vmatpush1.msra.mxu0 0.0
    %599 = vmatprep.subr.mxu0 0.0
    %600 = vmatpush1.msra.mxu0 0.0
    %601 = vmatprep.subr.mxu0 0.0
    %602 = vmatpush1.msra.mxu0 0.0
    %603 = vmatprep.subr.mxu0 0.0
    %604 = vmatpush1.msra.mxu0 0.0
    %605 = vmatprep.subr.mxu0 0.0
    %606 = vmatpush1.msra.mxu0 0.0
    %607 = vmatprep.subr.mxu0 0.0
    %608 = vmatpush1.msra.mxu0 0.0
    %609 = vmatprep.subr.mxu0 0.0
    %610 = vmatpush1.msra.mxu0 0.0
    %611 = vmatprep.subr.mxu0 0.0
    %612 = vmatpush1.msra.mxu0 0.0
    %613 = vmatprep.subr.mxu0 0.0
    %614 = vmatpush1.msra.mxu0 0.0
    %615 = vmatprep.subr.mxu0 0.0
    %616 = vmatpush1.msra.mxu0 0.0
    %617 = vmatprep.subr.mxu0 0.0
    %618 = vmatpush1.msra.mxu0 0.0
    %619 = vmatprep.subr.mxu0 0.0
    %620 = vmatpush1.msra.mxu0 0.0
    %621 = vmatprep.subr.mxu0 0.0
    %622 = vmatpush1.msra.mxu0 0.0
    %623 = vmatprep.subr.mxu0 0.0
    %624 = vmatpush1.msra.mxu0 0.0
    %625 = vmatprep.subr.mxu0 0.0
    %626 = vmatpush1.msra.mxu0 0.0
    %627 = vmatprep.subr.mxu0 0.0
    %628 = vmatpush1.msra.mxu0 0.0
    %629 = vmatprep.subr.mxu0 0.0
    %630 = vmatpush1.msra.mxu0 0.0
    %631 = vmatprep.subr.mxu0 0.0
    %632 = vmatpush1.msra.mxu0 0.0
    %633 = vmatprep.subr.mxu0 0.0
    %634 = vmatpush1.msra.mxu0 0.0
    %635 = vmatprep.subr.mxu0 0.0
    %636 = vmatpush1.msra.mxu0 0.0
    %637 = vmatprep.subr.mxu0 0.0
    %638 = vmatpush1.msra.mxu0 0.0
    %639 = vmatprep.subr.mxu0 0.0
    %640 = vmatpush1.msra.mxu0 0.0
    %641 = vmatprep.subr.mxu0 0.0
    %642 = vmatpush1.msra.mxu0 0.0
    %643 = vmatprep.subr.mxu0 0.0
    %644 = vmatpush1.msra.mxu0 0.0
    %645 = vmatprep.subr.mxu0 0.0
    %646 = vmatpush1.msra.mxu0 0.0
    %647 = vmatprep.subr.mxu0 0.0
    %648 = vmatpush1.msra.mxu0 0.0
    %649 = vmatprep.subr.mxu0 0.0
    %650 = vmatpush1.msra.mxu0 0.0
    %651 = vmatprep.mubr.f32.mxu0 0.0
    %652 = vmatmul.mubr.f32.gmra.mrb[0].mxu0 %v585
    %v653 = vpop.f32.mrb[0].mxu0
    %v654 = vadd.f32 0.0, %v653
    %v655 = vpop.f32.mrb[0].mxu0
    %656 = vdwg.mxu0
    %v658 = vrot.slane %v654, 2
    %v660 = vadd.f32 %v231, %v658
    %v661 = vsub.f32 0.0, %v660
    %v662 = vmul.f32 %v661, 1.442695
    %v663 = vpow.pop %v662
    %v664 = vadd.f32 %v663, 1.0
    %v665 = vrcp.pop %v664
    %v666 = vmul.f32 1.0, %v665
    %v667 = vadd.f32 %v654, %v326
    %v669 = vrot.slane %v667, 2
    %670 = vrot.lane.b32.xlu0 %v669, 64
    %v671 = vpop.permute.xlu0 %670
    %v673 = vmul.f32 %v666, %v671
    %675 = vrot.lane.b32.xlu0 %v673, 64
    %v676 = vpop.permute.xlu0 %675
    %v678 = vadd.f32 %v231, %v676
    %v679 = vtanh.pop %v678
    %v680 = vsub.f32 1.0, %v666
    %682 = vrot.lane.b32.xlu0 %v679, 96
    %v683 = vpop.permute.xlu0 %682
    %v685 = vmul.f32 %v680, %v683
    %v686 = vrot.slane %v575, 6
    %v688 = vmul.f32 %v666, %v686
    %v689 = vadd.f32 %v685, %v688
    %691 = vrot.lane.b32.xlu0 %v689, 96
    %v692 = vpop.permute.xlu0 %691
    %vm694 = vcmask 261126
    %695 = vst.msk [vmem:[#allocation2] sm:$0xc0] %vm694, %v692
    %v696 = vrot.slane %v689, 6
    %697 = vrot.lane.b32.xlu0 %v696, 96
    %v698 = vpop.permute.xlu0 %697
    %v699 = vsel %vm157, %v698, 0
    %701 = vmatprep.subr.mxu0 0.0
    %702 = vmatpush1.msra.mxu0 %v143
    %703 = vmatprep.subr.mxu0 0.0
    %704 = vmatpush1.msra.mxu0 %v144
    %705 = vmatprep.subr.mxu0 0.0
    %706 = vmatpush1.msra.mxu0 %v145
    %707 = vmatprep.subr.mxu0 0.0
    %708 = vmatpush1.msra.mxu0 %v146
    %709 = vmatprep.subr.mxu0 0.0
    %710 = vmatpush1.msra.mxu0 0.0
    %711 = vmatprep.subr.mxu0 0.0
    %712 = vmatpush1.msra.mxu0 0.0
    %713 = vmatprep.subr.mxu0 0.0
    %714 = vmatpush1.msra.mxu0 0.0
    %715 = vmatprep.subr.mxu0 0.0
    %716 = vmatpush1.msra.mxu0 0.0
    %717 = vmatprep.subr.mxu0 0.0
    %718 = vmatpush1.msra.mxu0 0.0
    %719 = vmatprep.subr.mxu0 0.0
    %720 = vmatpush1.msra.mxu0 0.0
    %721 = vmatprep.subr.mxu0 0.0
    %722 = vmatpush1.msra.mxu0 0.0
    %723 = vmatprep.subr.mxu0 0.0
    %724 = vmatpush1.msra.mxu0 0.0
    %725 = vmatprep.subr.mxu0 0.0
    %726 = vmatpush1.msra.mxu0 0.0
    %727 = vmatprep.subr.mxu0 0.0
    %728 = vmatpush1.msra.mxu0 0.0
    %729 = vmatprep.subr.mxu0 0.0
    %730 = vmatpush1.msra.mxu0 0.0
    %731 = vmatprep.subr.mxu0 0.0
    %732 = vmatpush1.msra.mxu0 0.0
    %733 = vmatprep.subr.mxu0 0.0
    %734 = vmatpush1.msra.mxu0 0.0
    %735 = vmatprep.subr.mxu0 0.0
    %736 = vmatpush1.msra.mxu0 0.0
    %737 = vmatprep.subr.mxu0 0.0
    %738 = vmatpush1.msra.mxu0 0.0
    %739 = vmatprep.subr.mxu0 0.0
    %740 = vmatpush1.msra.mxu0 0.0
    %741 = vmatprep.subr.mxu0 0.0
    %742 = vmatpush1.msra.mxu0 0.0
    %743 = vmatprep.subr.mxu0 0.0
    %744 = vmatpush1.msra.mxu0 0.0
    %745 = vmatprep.subr.mxu0 0.0
    %746 = vmatpush1.msra.mxu0 0.0
    %747 = vmatprep.subr.mxu0 0.0
    %748 = vmatpush1.msra.mxu0 0.0
    %749 = vmatprep.subr.mxu0 0.0
    %750 = vmatpush1.msra.mxu0 0.0
    %751 = vmatprep.subr.mxu0 0.0
    %752 = vmatpush1.msra.mxu0 0.0
    %753 = vmatprep.subr.mxu0 0.0
    %754 = vmatpush1.msra.mxu0 0.0
    %755 = vmatprep.subr.mxu0 0.0
    %756 = vmatpush1.msra.mxu0 0.0
    %757 = vmatprep.subr.mxu0 0.0
    %758 = vmatpush1.msra.mxu0 0.0
    %759 = vmatprep.subr.mxu0 0.0
    %760 = vmatpush1.msra.mxu0 0.0
    %761 = vmatprep.subr.mxu0 0.0
    %762 = vmatpush1.msra.mxu0 0.0
    %763 = vmatprep.subr.mxu0 0.0
    %764 = vmatpush1.msra.mxu0 0.0
    %765 = vmatprep.mubr.f32.mxu0 0.0
    %766 = vmatmul.mubr.f32.gmra.mrb[0].mxu0 %v699
    %v767 = vpop.f32.mrb[0].mxu0
    %v768 = vadd.f32 0.0, %v767
    %v769 = vpop.f32.mrb[0].mxu0
    %770 = vdwg.mxu0
    %v771 = vadd.f32 %v236, %v768
    %v772 = vsub.f32 0.0, %v771
    %v773 = vmul.f32 %v772, 1.442695
    %v774 = vpow.pop %v773
    %v775 = vadd.f32 %v774, 1.0
    %v776 = vrcp.pop %v775
    %v777 = vmul.f32 1.0, %v776
    %v778 = vadd.f32 %v768, %v326
    %780 = vrot.lane.b32.xlu0 %v778, 64
    %v781 = vpop.permute.xlu0 %780
    %v783 = vmul.f32 %v777, %v781
    %785 = vrot.lane.b32.xlu0 %v783, 64
    %v786 = vpop.permute.xlu0 %785
    %v788 = vadd.f32 %v236, %v786
    %v789 = vtanh.pop %v788
    %v790 = vsub.f32 1.0, %v777
    %792 = vrot.lane.b32.xlu0 %v789, 96
    %v793 = vpop.permute.xlu0 %792
    %v795 = vmul.f32 %v790, %v793
    %v797 = vmul.f32 %v777, %v696
    %v798 = vadd.f32 %v795, %v797
    %800 = vrot.lane.b32.xlu0 %v798, 96
    %v801 = vpop.permute.xlu0 %800
    %803 = vst.msk [vmem:[#allocation2 + $0x8] sm:$0x3] %vm355, %v801
    %v804 = vsel %vm157, %v801, 0
    %806 = vmatprep.subr.mxu0 0.0
    %807 = vmatpush1.msra.mxu0 %v143
    %808 = vmatprep.subr.mxu0 0.0
    %809 = vmatpush1.msra.mxu0 %v144
    %810 = vmatprep.subr.mxu0 0.0
    %811 = vmatpush1.msra.mxu0 %v145
    %812 = vmatprep.subr.mxu0 0.0
    %813 = vmatpush1.msra.mxu0 %v146
    %814 = vmatprep.subr.mxu0 0.0
    %815 = vmatpush1.msra.mxu0 0.0
    %816 = vmatprep.subr.mxu0 0.0
    %817 = vmatpush1.msra.mxu0 0.0
    %818 = vmatprep.subr.mxu0 0.0
    %819 = vmatpush1.msra.mxu0 0.0
    %820 = vmatprep.subr.mxu0 0.0
    %821 = vmatpush1.msra.mxu0 0.0
    %822 = vmatprep.subr.mxu0 0.0
    %823 = vmatpush1.msra.mxu0 0.0
    %824 = vmatprep.subr.mxu0 0.0
    %825 = vmatpush1.msra.mxu0 0.0
    %826 = vmatprep.subr.mxu0 0.0
    %827 = vmatpush1.msra.mxu0 0.0
    %828 = vmatprep.subr.mxu0 0.0
    %829 = vmatpush1.msra.mxu0 0.0
    %830 = vmatprep.subr.mxu0 0.0
    %831 = vmatpush1.msra.mxu0 0.0
    %832 = vmatprep.subr.mxu0 0.0
    %833 = vmatpush1.msra.mxu0 0.0
    %834 = vmatprep.subr.mxu0 0.0
    %835 = vmatpush1.msra.mxu0 0.0
    %836 = vmatprep.subr.mxu0 0.0
    %837 = vmatpush1.msra.mxu0 0.0
    %838 = vmatprep.subr.mxu0 0.0
    %839 = vmatpush1.msra.mxu0 0.0
    %840 = vmatprep.subr.mxu0 0.0
    %841 = vmatpush1.msra.mxu0 0.0
    %842 = vmatprep.subr.mxu0 0.0
    %843 = vmatpush1.msra.mxu0 0.0
    %844 = vmatprep.subr.mxu0 0.0
    %845 = vmatpush1.msra.mxu0 0.0
    %846 = vmatprep.subr.mxu0 0.0
    %847 = vmatpush1.msra.mxu0 0.0
    %848 = vmatprep.subr.mxu0 0.0
    %849 = vmatpush1.msra.mxu0 0.0
    %850 = vmatprep.subr.mxu0 0.0
    %851 = vmatpush1.msra.mxu0 0.0
    %852 = vmatprep.subr.mxu0 0.0
    %853 = vmatpush1.msra.mxu0 0.0
    %854 = vmatprep.subr.mxu0 0.0
    %855 = vmatpush1.msra.mxu0 0.0
    %856 = vmatprep.subr.mxu0 0.0
    %857 = vmatpush1.msra.mxu0 0.0
    %858 = vmatprep.subr.mxu0 0.0
    %859 = vmatpush1.msra.mxu0 0.0
    %860 = vmatprep.subr.mxu0 0.0
    %861 = vmatpush1.msra.mxu0 0.0
    %862 = vmatprep.subr.mxu0 0.0
    %863 = vmatpush1.msra.mxu0 0.0
    %864 = vmatprep.subr.mxu0 0.0
    %865 = vmatpush1.msra.mxu0 0.0
    %866 = vmatprep.subr.mxu0 0.0
    %867 = vmatpush1.msra.mxu0 0.0
    %868 = vmatprep.subr.mxu0 0.0
    %869 = vmatpush1.msra.mxu0 0.0
    %870 = vmatprep.mubr.f32.mxu0 0.0
    %871 = vmatmul.mubr.f32.gmra.mrb[0].mxu0 %v804
    %v872 = vpop.f32.mrb[0].mxu0
    %v873 = vadd.f32 0.0, %v872
    %v874 = vpop.f32.mrb[0].mxu0
    %875 = vdwg.mxu0
    %v877 = vrot.slane %v873, 6
    %v879 = vadd.f32 %v236, %v877
    %v880 = vsub.f32 0.0, %v879
    %v881 = vmul.f32 %v880, 1.442695
    %v882 = vpow.pop %v881
    %v883 = vadd.f32 %v882, 1.0
    %v884 = vrcp.pop %v883
    %v885 = vmul.f32 1.0, %v884
    %v886 = vadd.f32 %v873, %v326
    %v888 = vrot.slane %v886, 6
    %889 = vrot.lane.b32.xlu0 %v888, 64
    %v890 = vpop.permute.xlu0 %889
    %v892 = vmul.f32 %v885, %v890
    %894 = vrot.lane.b32.xlu0 %v892, 64
    %v895 = vpop.permute.xlu0 %894
    %v897 = vadd.f32 %v236, %v895
    %v898 = vtanh.pop %v897
    %v899 = vsub.f32 1.0, %v885
    %901 = vrot.lane.b32.xlu0 %v898, 96
    %v902 = vpop.permute.xlu0 %901
    %v904 = vmul.f32 %v899, %v902
    %v905 = vrot.slane %v798, 6
    %v907 = vmul.f32 %v885, %v905
    %v908 = vadd.f32 %v904, %v907
    %910 = vrot.lane.b32.xlu0 %v908, 96
    %v911 = vpop.permute.xlu0 %910
    %913 = vst.msk [vmem:[#allocation2 + $0x8] sm:$0xc] %vm466, %v911
    %v914 = vrot.slane %v908, 2
    %915 = vrot.lane.b32.xlu0 %v914, 96
    %v916 = vpop.permute.xlu0 %915
    %v917 = vsel %vm157, %v916, 0
    %919 = vmatprep.subr.mxu0 0.0
    %920 = vmatpush1.msra.mxu0 %v143
    %921 = vmatprep.subr.mxu0 0.0
    %922 = vmatpush1.msra.mxu0 %v144
    %923 = vmatprep.subr.mxu0 0.0
    %924 = vmatpush1.msra.mxu0 %v145
    %925 = vmatprep.subr.mxu0 0.0
    %926 = vmatpush1.msra.mxu0 %v146
    %927 = vmatprep.subr.mxu0 0.0
    %928 = vmatpush1.msra.mxu0 0.0
    %929 = vmatprep.subr.mxu0 0.0
    %930 = vmatpush1.msra.mxu0 0.0
    %931 = vmatprep.subr.mxu0 0.0
    %932 = vmatpush1.msra.mxu0 0.0
    %933 = vmatprep.subr.mxu0 0.0
    %934 = vmatpush1.msra.mxu0 0.0
    %935 = vmatprep.subr.mxu0 0.0
    %936 = vmatpush1.msra.mxu0 0.0
    %937 = vmatprep.subr.mxu0 0.0
    %938 = vmatpush1.msra.mxu0 0.0
    %939 = vmatprep.subr.mxu0 0.0
    %940 = vmatpush1.msra.mxu0 0.0
    %941 = vmatprep.subr.mxu0 0.0
    %942 = vmatpush1.msra.mxu0 0.0
    %943 = vmatprep.subr.mxu0 0.0
    %944 = vmatpush1.msra.mxu0 0.0
    %945 = vmatprep.subr.mxu0 0.0
    %946 = vmatpush1.msra.mxu0 0.0
    %947 = vmatprep.subr.mxu0 0.0
    %948 = vmatpush1.msra.mxu0 0.0
    %949 = vmatprep.subr.mxu0 0.0
    %950 = vmatpush1.msra.mxu0 0.0
    %951 = vmatprep.subr.mxu0 0.0
    %952 = vmatpush1.msra.mxu0 0.0
    %953 = vmatprep.subr.mxu0 0.0
    %954 = vmatpush1.msra.mxu0 0.0
    %955 = vmatprep.subr.mxu0 0.0
    %956 = vmatpush1.msra.mxu0 0.0
    %957 = vmatprep.subr.mxu0 0.0
    %958 = vmatpush1.msra.mxu0 0.0
    %959 = vmatprep.subr.mxu0 0.0
    %960 = vmatpush1.msra.mxu0 0.0
    %961 = vmatprep.subr.mxu0 0.0
    %962 = vmatpush1.msra.mxu0 0.0
    %963 = vmatprep.subr.mxu0 0.0
    %964 = vmatpush1.msra.mxu0 0.0
    %965 = vmatprep.subr.mxu0 0.0
    %966 = vmatpush1.msra.mxu0 0.0
    %967 = vmatprep.subr.mxu0 0.0
    %968 = vmatpush1.msra.mxu0 0.0
    %969 = vmatprep.subr.mxu0 0.0
    %970 = vmatpush1.msra.mxu0 0.0
    %971 = vmatprep.subr.mxu0 0.0
    %972 = vmatpush1.msra.mxu0 0.0
    %973 = vmatprep.subr.mxu0 0.0
    %974 = vmatpush1.msra.mxu0 0.0
    %975 = vmatprep.subr.mxu0 0.0
    %976 = vmatpush1.msra.mxu0 0.0
    %977 = vmatprep.subr.mxu0 0.0
    %978 = vmatpush1.msra.mxu0 0.0
    %979 = vmatprep.subr.mxu0 0.0
    %980 = vmatpush1.msra.mxu0 0.0
    %981 = vmatprep.subr.mxu0 0.0
    %982 = vmatpush1.msra.mxu0 0.0
    %983 = vmatprep.mubr.f32.mxu0 0.0
    %984 = vmatmul.mubr.f32.gmra.mrb[0].mxu0 %v917
    %v985 = vpop.f32.mrb[0].mxu0
    %v986 = vadd.f32 0.0, %v985
    %v987 = vpop.f32.mrb[0].mxu0
    %988 = vdwg.mxu0
    %v990 = vrot.slane %v986, 4
    %v992 = vadd.f32 %v236, %v990
    %v993 = vsub.f32 0.0, %v992
    %v994 = vmul.f32 %v993, 1.442695
    %v995 = vpow.pop %v994
    %v996 = vadd.f32 %v995, 1.0
    %v997 = vrcp.pop %v996
    %v998 = vmul.f32 1.0, %v997
    %v999 = vadd.f32 %v986, %v326
    %v1001 = vrot.slane %v999, 4
    %1002 = vrot.lane.b32.xlu0 %v1001, 64
    %v1003 = vpop.permute.xlu0 %1002
    %v1005 = vmul.f32 %v998, %v1003
    %1007 = vrot.lane.b32.xlu0 %v1005, 64
    %v1008 = vpop.permute.xlu0 %1007
    %v1010 = vadd.f32 %v236, %v1008
    %v1011 = vtanh.pop %v1010
    %v1012 = vsub.f32 1.0, %v998
    %1014 = vrot.lane.b32.xlu0 %v1011, 96
    %v1015 = vpop.permute.xlu0 %1014
    %v1017 = vmul.f32 %v1012, %v1015
    %v1018 = vrot.slane %v908, 6
    %v1020 = vmul.f32 %v998, %v1018
    %v1021 = vadd.f32 %v1017, %v1020
    %1023 = vrot.lane.b32.xlu0 %v1021, 96
    %v1024 = vpop.permute.xlu0 %1023
    %1026 = vst.msk [vmem:[#allocation2 + $0x8] sm:$0x30] %vm580, %v1024
    %v1027 = vrot.slane %v1021, 4
    %1028 = vrot.lane.b32.xlu0 %v1027, 96
    %v1029 = vpop.permute.xlu0 %1028
    %v1030 = vsel %vm157, %v1029, 0
    %1032 = vmatprep.subr.mxu0 0.0
    %1033 = vmatpush1.msra.mxu0 %v143
    %1034 = vmatprep.subr.mxu0 0.0
    %1035 = vmatpush1.msra.mxu0 %v144
    %1036 = vmatprep.subr.mxu0 0.0
    %1037 = vmatpush1.msra.mxu0 %v145
    %1038 = vmatprep.subr.mxu0 0.0
    %1039 = vmatpush1.msra.mxu0 %v146
    %1040 = vmatprep.subr.mxu0 0.0
    %1041 = vmatpush1.msra.mxu0 0.0
    %1042 = vmatprep.subr.mxu0 0.0
    %1043 = vmatpush1.msra.mxu0 0.0
    %1044 = vmatprep.subr.mxu0 0.0
    %1045 = vmatpush1.msra.mxu0 0.0
    %1046 = vmatprep.subr.mxu0 0.0
    %1047 = vmatpush1.msra.mxu0 0.0
    %1048 = vmatprep.subr.mxu0 0.0
    %1049 = vmatpush1.msra.mxu0 0.0
    %1050 = vmatprep.subr.mxu0 0.0
    %1051 = vmatpush1.msra.mxu0 0.0
    %1052 = vmatprep.subr.mxu0 0.0
    %1053 = vmatpush1.msra.mxu0 0.0
    %1054 = vmatprep.subr.mxu0 0.0
    %1055 = vmatpush1.msra.mxu0 0.0
    %1056 = vmatprep.subr.mxu0 0.0
    %1057 = vmatpush1.msra.mxu0 0.0
    %1058 = vmatprep.subr.mxu0 0.0
    %1059 = vmatpush1.msra.mxu0 0.0
    %1060 = vmatprep.subr.mxu0 0.0
    %1061 = vmatpush1.msra.mxu0 0.0
    %1062 = vmatprep.subr.mxu0 0.0
    %1063 = vmatpush1.msra.mxu0 0.0
    %1064 = vmatprep.subr.mxu0 0.0
    %1065 = vmatpush1.msra.mxu0 0.0
    %1066 = vmatprep.subr.mxu0 0.0
    %1067 = vmatpush1.msra.mxu0 0.0
    %1068 = vmatprep.subr.mxu0 0.0
    %1069 = vmatpush1.msra.mxu0 0.0
    %1070 = vmatprep.subr.mxu0 0.0
    %1071 = vmatpush1.msra.mxu0 0.0
    %1072 = vmatprep.subr.mxu0 0.0
    %1073 = vmatpush1.msra.mxu0 0.0
    %1074 = vmatprep.subr.mxu0 0.0
    %1075 = vmatpush1.msra.mxu0 0.0
    %1076 = vmatprep.subr.mxu0 0.0
    %1077 = vmatpush1.msra.mxu0 0.0
    %1078 = vmatprep.subr.mxu0 0.0
    %1079 = vmatpush1.msra.mxu0 0.0
    %1080 = vmatprep.subr.mxu0 0.0
    %1081 = vmatpush1.msra.mxu0 0.0
    %1082 = vmatprep.subr.mxu0 0.0
    %1083 = vmatpush1.msra.mxu0 0.0
    %1084 = vmatprep.subr.mxu0 0.0
    %1085 = vmatpush1.msra.mxu0 0.0
    %1086 = vmatprep.subr.mxu0 0.0
    %1087 = vmatpush1.msra.mxu0 0.0
    %1088 = vmatprep.subr.mxu0 0.0
    %1089 = vmatpush1.msra.mxu0 0.0
    %1090 = vmatprep.subr.mxu0 0.0
    %1091 = vmatpush1.msra.mxu0 0.0
    %1092 = vmatprep.subr.mxu0 0.0
    %1093 = vmatpush1.msra.mxu0 0.0
    %1094 = vmatprep.subr.mxu0 0.0
    %1095 = vmatpush1.msra.mxu0 0.0
    %1096 = vmatprep.mubr.f32.mxu0 0.0
    %1097 = vmatmul.mubr.f32.gmra.mrb[0].mxu0 %v1030
    %v1098 = vpop.f32.mrb[0].mxu0
    %v1099 = vadd.f32 0.0, %v1098
    %v1100 = vpop.f32.mrb[0].mxu0
    %1101 = vdwg.mxu0
    %v1103 = vrot.slane %v1099, 2
    %v1105 = vadd.f32 %v236, %v1103
    %v1106 = vsub.f32 0.0, %v1105
    %v1107 = vmul.f32 %v1106, 1.442695
    %v1108 = vpow.pop %v1107
    %v1109 = vadd.f32 %v1108, 1.0
    %v1110 = vrcp.pop %v1109
    %v1111 = vmul.f32 1.0, %v1110
    %v1112 = vadd.f32 %v1099, %v326
    %v1114 = vrot.slane %v1112, 2
    %1115 = vrot.lane.b32.xlu0 %v1114, 64
    %v1116 = vpop.permute.xlu0 %1115
    %v1118 = vmul.f32 %v1111, %v1116
    %1120 = vrot.lane.b32.xlu0 %v1118, 64
    %v1121 = vpop.permute.xlu0 %1120
    %v1123 = vadd.f32 %v236, %v1121
    %v1124 = vtanh.pop %v1123
    %v1125 = vsub.f32 1.0, %v1111
    %1127 = vrot.lane.b32.xlu0 %v1124, 96
    %v1128 = vpop.permute.xlu0 %1127
    %v1130 = vmul.f32 %v1125, %v1128
    %v1131 = vrot.slane %v1021, 6
    %v1133 = vmul.f32 %v1111, %v1131
    %v1134 = vadd.f32 %v1130, %v1133
    %1136 = vrot.lane.b32.xlu0 %v1134, 96
    %v1137 = vpop.permute.xlu0 %1136
    %1139 = vst.msk [vmem:[#allocation2 + $0x8] sm:$0xc0] %vm694, %v1137
    %1140 = vst.msk [vmem:[#allocation16 - $0x6] sm:$0xc0] %vm694, %v1137
    %v1141 = vld [vmem:[#allocation12] sm:$0xff]
    %v1142 = vld [vmem:[#allocation12 + $0x8] sm:$0xff]
    %v1143 = vld [vmem:[#allocation12 + $0x10] sm:$0xff]
    %v1144 = vld [vmem:[#allocation12 + $0x18] sm:$0xff]
    %v1145 = vld [vmem:[#allocation13] sm:$0xff]
    %v1146 = vld [vmem:[#allocation13 + $0x8] sm:$0xff]
    %v1147 = vld [vmem:[#allocation13 + $0x10] sm:$0xff]
    %v1148 = vld [vmem:[#allocation13 + $0x18] sm:$0xff]
    %v1149 = vld [vmem:[#allocation15] sm:$0x1]
    %v1150 = vld [vmem:[%s9] sm:$0x1]
    %v1151 = vld [vmem:[#allocation2] sm:$0xff]
    %v1152 = vld [vmem:[#allocation2 + $0x8] sm:$0xff]
    %v1154 = vlaneseq
    %v1155 = vshrl.u32 %v1154, 7
    %v1156 = vsub.s32 0, %v1155
    %v1157 = vrot.slane %v1149, %v1156
    %v1160 = vsel %vm157, %v1151, 0
    %v1163 = vsel %vm157, %v1152, 0
    %1165 = vmatprep.subr.mxu0 0.0
    %1166 = vmatpush1.msra.mxu0 %v1141
    %1167 = vmatprep.subr.mxu0 0.0
    %1168 = vmatpush1.msra.mxu0 %v1142
    %1169 = vmatprep.subr.mxu0 0.0
    %1170 = vmatpush1.msra.mxu0 %v1143
    %1171 = vmatprep.subr.mxu0 0.0
    %1172 = vmatpush1.msra.mxu0 %v1144
    %1173 = vmatprep.subr.mxu0 0.0
    %1174 = vmatpush1.msra.mxu0 0.0
    %1175 = vmatprep.subr.mxu0 0.0
    %1176 = vmatpush1.msra.mxu0 0.0
    %1177 = vmatprep.subr.mxu0 0.0
    %1178 = vmatpush1.msra.mxu0 0.0
    %1179 = vmatprep.subr.mxu0 0.0
    %1180 = vmatpush1.msra.mxu0 0.0
    %1181 = vmatprep.subr.mxu0 0.0
    %1182 = vmatpush1.msra.mxu0 0.0
    %1183 = vmatprep.subr.mxu0 0.0
    %1184 = vmatpush1.msra.mxu0 0.0
    %1185 = vmatprep.subr.mxu0 0.0
    %1186 = vmatpush1.msra.mxu0 0.0
    %1187 = vmatprep.subr.mxu0 0.0
    %1188 = vmatpush1.msra.mxu0 0.0
    %1189 = vmatprep.subr.mxu0 0.0
    %1190 = vmatpush1.msra.mxu0 0.0
    %1191 = vmatprep.subr.mxu0 0.0
    %1192 = vmatpush1.msra.mxu0 0.0
    %1193 = vmatprep.subr.mxu0 0.0
    %1194 = vmatpush1.msra.mxu0 0.0
    %1195 = vmatprep.subr.mxu0 0.0
    %1196 = vmatpush1.msra.mxu0 0.0
    %1197 = vmatprep.subr.mxu0 0.0
    %1198 = vmatpush1.msra.mxu0 0.0
    %1199 = vmatprep.subr.mxu0 0.0
    %1200 = vmatpush1.msra.mxu0 0.0
    %1201 = vmatprep.subr.mxu0 0.0
    %1202 = vmatpush1.msra.mxu0 0.0
    %1203 = vmatprep.subr.mxu0 0.0
    %1204 = vmatpush1.msra.mxu0 0.0
    %1205 = vmatprep.subr.mxu0 0.0
    %1206 = vmatpush1.msra.mxu0 0.0
    %1207 = vmatprep.subr.mxu0 0.0
    %1208 = vmatpush1.msra.mxu0 0.0
    %1209 = vmatprep.subr.mxu0 0.0
    %1210 = vmatpush1.msra.mxu0 0.0
    %1211 = vmatprep.subr.mxu0 0.0
    %1212 = vmatpush1.msra.mxu0 0.0
    %1213 = vmatprep.subr.mxu0 0.0
    %1214 = vmatpush1.msra.mxu0 0.0
    %1215 = vmatprep.subr.mxu0 0.0
    %1216 = vmatpush1.msra.mxu0 0.0
    %1217 = vmatprep.subr.mxu0 0.0
    %1218 = vmatpush1.msra.mxu0 0.0
    %1219 = vmatprep.subr.mxu0 0.0
    %1220 = vmatpush1.msra.mxu0 0.0
    %1221 = vmatprep.subr.mxu0 0.0
    %1222 = vmatpush1.msra.mxu0 0.0
    %1223 = vmatprep.subr.mxu0 0.0
    %1224 = vmatpush1.msra.mxu0 0.0
    %1225 = vmatprep.subr.mxu0 0.0
    %1226 = vmatpush1.msra.mxu0 0.0
    %1227 = vmatprep.subr.mxu0 0.0
    %1228 = vmatpush1.msra.mxu0 0.0
    %1229 = vmatprep.mubr.f32.mxu0 0.0
    %1230 = vmatmul.mubr.f32.gmra.mrb[0].mxu0 %v1160
    %v1231 = vpop.f32.mrb[0].mxu0
    %v1232 = vadd.f32 %v1157, %v1231
    %v1233 = vpop.f32.mrb[0].mxu0
    %1234 = vmatprep.mubr.f32.mxu0 0.0
    %1235 = vmatmul.mubr.f32.gmra.mrb[0].mxu0 %v1163
    %v1236 = vpop.f32.mrb[0].mxu0
    %v1237 = vadd.f32 %v1157, %v1236
    %v1238 = vpop.f32.mrb[0].mxu0
    %1239 = vdwg.mxu0
    %s1240 = scalar_lea.vmem [#allocation7], 2
    %v1241 = vld [vmem:[%s1240] sm:$0x3]
    %v1243 = vsel %vm157, %v1241, 0
    %1245 = vmatprep.subr.mxu0 0.0
    %1246 = vmatpush1.msra.mxu0 %v1145
    %1247 = vmatprep.subr.mxu0 0.0
    %1248 = vmatpush1.msra.mxu0 %v1146
    %1249 = vmatprep.subr.mxu0 0.0
    %1250 = vmatpush1.msra.mxu0 %v1147
    %1251 = vmatprep.subr.mxu0 0.0
    %1252 = vmatpush1.msra.mxu0 %v1148
    %1253 = vmatprep.subr.mxu0 0.0
    %1254 = vmatpush1.msra.mxu0 0.0
    %1255 = vmatprep.subr.mxu0 0.0
    %1256 = vmatpush1.msra.mxu0 0.0
    %1257 = vmatprep.subr.mxu0 0.0
    %1258 = vmatpush1.msra.mxu0 0.0
    %1259 = vmatprep.subr.mxu0 0.0
    %1260 = vmatpush1.msra.mxu0 0.0
    %1261 = vmatprep.subr.mxu0 0.0
    %1262 = vmatpush1.msra.mxu0 0.0
    %1263 = vmatprep.subr.mxu0 0.0
    %1264 = vmatpush1.msra.mxu0 0.0
    %1265 = vmatprep.subr.mxu0 0.0
    %1266 = vmatpush1.msra.mxu0 0.0
    %1267 = vmatprep.subr.mxu0 0.0
    %1268 = vmatpush1.msra.mxu0 0.0
    %1269 = vmatprep.subr.mxu0 0.0
    %1270 = vmatpush1.msra.mxu0 0.0
    %1271 = vmatprep.subr.mxu0 0.0
    %1272 = vmatpush1.msra.mxu0 0.0
    %1273 = vmatprep.subr.mxu0 0.0
    %1274 = vmatpush1.msra.mxu0 0.0
    %1275 = vmatprep.subr.mxu0 0.0
    %1276 = vmatpush1.msra.mxu0 0.0
    %1277 = vmatprep.subr.mxu0 0.0
    %1278 = vmatpush1.msra.mxu0 0.0
    %1279 = vmatprep.subr.mxu0 0.0
    %1280 = vmatpush1.msra.mxu0 0.0
    %1281 = vmatprep.subr.mxu0 0.0
    %1282 = vmatpush1.msra.mxu0 0.0
    %1283 = vmatprep.subr.mxu0 0.0
    %1284 = vmatpush1.msra.mxu0 0.0
    %1285 = vmatprep.subr.mxu0 0.0
    %1286 = vmatpush1.msra.mxu0 0.0
    %1287 = vmatprep.subr.mxu0 0.0
    %1288 = vmatpush1.msra.mxu0 0.0
    %1289 = vmatprep.subr.mxu0 0.0
    %1290 = vmatpush1.msra.mxu0 0.0
    %1291 = vmatprep.subr.mxu0 0.0
    %1292 = vmatpush1.msra.mxu0 0.0
    %1293 = vmatprep.subr.mxu0 0.0
    %1294 = vmatpush1.msra.mxu0 0.0
    %1295 = vmatprep.subr.mxu0 0.0
    %1296 = vmatpush1.msra.mxu0 0.0
    %1297 = vmatprep.subr.mxu0 0.0
    %1298 = vmatpush1.msra.mxu0 0.0
    %1299 = vmatprep.subr.mxu0 0.0
    %1300 = vmatpush1.msra.mxu0 0.0
    %1301 = vmatprep.subr.mxu0 0.0
    %1302 = vmatpush1.msra.mxu0 0.0
    %1303 = vmatprep.subr.mxu0 0.0
    %1304 = vmatpush1.msra.mxu0 0.0
    %1305 = vmatprep.subr.mxu0 0.0
    %1306 = vmatpush1.msra.mxu0 0.0
    %1307 = vmatprep.subr.mxu0 0.0
    %1308 = vmatpush1.msra.mxu0 0.0
    %1309 = vmatprep.mubr.f32.mxu0 0.0
    %1310 = vmatmul.mubr.f32.gmra.mrb[0].mxu0 %v1243
    %v1311 = vpop.f32.mrb[0].mxu0
    %v1312 = vadd.f32 0.0, %v1311
    %v1313 = vpop.f32.mrb[0].mxu0
    %1314 = vdwg.mxu0
    %v1315 = vadd.f32 %v1232, %v1312
    %v1316 = vsub.f32 0.0, %v1315
    %v1317 = vmul.f32 %v1316, 1.442695
    %v1318 = vpow.pop %v1317
    %v1319 = vadd.f32 %v1318, 1.0
    %v1320 = vrcp.pop %v1319
    %v1321 = vmul.f32 1.0, %v1320
    %v1323 = vlaneseq
    %v1324 = vshrl.u32 %v1323, 7
    %v1325 = vsub.s32 0, %v1324
    %v1326 = vrot.slane %v1150, %v1325
    %1327 = vrot.lane.b32.xlu0 %v1326, 64
    %v1328 = vpop.permute.xlu0 %1327
    %v1330 = vadd.f32 %v1312, %v1328
    %1332 = vrot.lane.b32.xlu0 %v1330, 64
    %v1333 = vpop.permute.xlu0 %1332
    %v1335 = vmul.f32 %v1321, %v1333
    %1337 = vrot.lane.b32.xlu0 %v1335, 64
    %v1338 = vpop.permute.xlu0 %1337
    %v1340 = vadd.f32 %v1232, %v1338
    %v1341 = vtanh.pop %v1340
    %v1342 = vsub.f32 1.0, %v1321
    %1344 = vrot.lane.b32.xlu0 %v1341, 96
    %v1345 = vpop.permute.xlu0 %1344
    %v1347 = vmul.f32 %v1342, %v1345
    %1348 = vrot.lane.b32.xlu0 %v1241, 32
    %v1349 = vpop.permute.xlu0 %1348
    %v1351 = vmul.f32 %v1321, %v1349
    %v1352 = vadd.f32 %v1347, %v1351
    %1354 = vrot.lane.b32.xlu0 %v1352, 96
    %v1355 = vpop.permute.xlu0 %1354
    %1357 = vst.msk [vmem:[#allocation3] sm:$0x3] %vm355, %v1355
    %v1358 = vsel %vm157, %v1355, 0
    %1360 = vmatprep.subr.mxu0 0.0
    %1361 = vmatpush1.msra.mxu0 %v1145
    %1362 = vmatprep.subr.mxu0 0.0
    %1363 = vmatpush1.msra.mxu0 %v1146
    %1364 = vmatprep.subr.mxu0 0.0
    %1365 = vmatpush1.msra.mxu0 %v1147
    %1366 = vmatprep.subr.mxu0 0.0
    %1367 = vmatpush1.msra.mxu0 %v1148
    %1368 = vmatprep.subr.mxu0 0.0
    %1369 = vmatpush1.msra.mxu0 0.0
    %1370 = vmatprep.subr.mxu0 0.0
    %1371 = vmatpush1.msra.mxu0 0.0
    %1372 = vmatprep.subr.mxu0 0.0
    %1373 = vmatpush1.msra.mxu0 0.0
    %1374 = vmatprep.subr.mxu0 0.0
    %1375 = vmatpush1.msra.mxu0 0.0
    %1376 = vmatprep.subr.mxu0 0.0
    %1377 = vmatpush1.msra.mxu0 0.0
    %1378 = vmatprep.subr.mxu0 0.0
    %1379 = vmatpush1.msra.mxu0 0.0
    %1380 = vmatprep.subr.mxu0 0.0
    %1381 = vmatpush1.msra.mxu0 0.0
    %1382 = vmatprep.subr.mxu0 0.0
    %1383 = vmatpush1.msra.mxu0 0.0
    %1384 = vmatprep.subr.mxu0 0.0
    %1385 = vmatpush1.msra.mxu0 0.0
    %1386 = vmatprep.subr.mxu0 0.0
    %1387 = vmatpush1.msra.mxu0 0.0
    %1388 = vmatprep.subr.mxu0 0.0
    %1389 = vmatpush1.msra.mxu0 0.0
    %1390 = vmatprep.subr.mxu0 0.0
    %1391 = vmatpush1.msra.mxu0 0.0
    %1392 = vmatprep.subr.mxu0 0.0
    %1393 = vmatpush1.msra.mxu0 0.0
    %1394 = vmatprep.subr.mxu0 0.0
    %1395 = vmatpush1.msra.mxu0 0.0
    %1396 = vmatprep.subr.mxu0 0.0
    %1397 = vmatpush1.msra.mxu0 0.0
    %1398 = vmatprep.subr.mxu0 0.0
    %1399 = vmatpush1.msra.mxu0 0.0
    %1400 = vmatprep.subr.mxu0 0.0
    %1401 = vmatpush1.msra.mxu0 0.0
    %1402 = vmatprep.subr.mxu0 0.0
    %1403 = vmatpush1.msra.mxu0 0.0
    %1404 = vmatprep.subr.mxu0 0.0
    %1405 = vmatpush1.msra.mxu0 0.0
    %1406 = vmatprep.subr.mxu0 0.0
    %1407 = vmatpush1.msra.mxu0 0.0
    %1408 = vmatprep.subr.mxu0 0.0
    %1409 = vmatpush1.msra.mxu0 0.0
    %1410 = vmatprep.subr.mxu0 0.0
    %1411 = vmatpush1.msra.mxu0 0.0
    %1412 = vmatprep.subr.mxu0 0.0
    %1413 = vmatpush1.msra.mxu0 0.0
    %1414 = vmatprep.subr.mxu0 0.0
    %1415 = vmatpush1.msra.mxu0 0.0
    %1416 = vmatprep.subr.mxu0 0.0
    %1417 = vmatpush1.msra.mxu0 0.0
    %1418 = vmatprep.subr.mxu0 0.0
    %1419 = vmatpush1.msra.mxu0 0.0
    %1420 = vmatprep.subr.mxu0 0.0
    %1421 = vmatpush1.msra.mxu0 0.0
    %1422 = vmatprep.subr.mxu0 0.0
    %1423 = vmatpush1.msra.mxu0 0.0
    %1424 = vmatprep.mubr.f32.mxu0 0.0
    %1425 = vmatmul.mubr.f32.gmra.mrb[0].mxu0 %v1358
    %v1426 = vpop.f32.mrb[0].mxu0
    %v1427 = vadd.f32 0.0, %v1426
    %v1428 = vpop.f32.mrb[0].mxu0
    %1429 = vdwg.mxu0
    %v1431 = vrot.slane %v1427, 6
    %v1433 = vadd.f32 %v1232, %v1431
    %v1434 = vsub.f32 0.0, %v1433
    %v1435 = vmul.f32 %v1434, 1.442695
    %v1436 = vpow.pop %v1435
    %v1437 = vadd.f32 %v1436, 1.0
    %v1438 = vrcp.pop %v1437
    %v1439 = vmul.f32 1.0, %v1438
    %v1440 = vadd.f32 %v1427, %v1328
    %v1442 = vrot.slane %v1440, 6
    %1443 = vrot.lane.b32.xlu0 %v1442, 64
    %v1444 = vpop.permute.xlu0 %1443
    %v1446 = vmul.f32 %v1439, %v1444
    %1448 = vrot.lane.b32.xlu0 %v1446, 64
    %v1449 = vpop.permute.xlu0 %1448
    %v1451 = vadd.f32 %v1232, %v1449
    %v1452 = vtanh.pop %v1451
    %v1453 = vsub.f32 1.0, %v1439
    %1455 = vrot.lane.b32.xlu0 %v1452, 96
    %v1456 = vpop.permute.xlu0 %1455
    %v1458 = vmul.f32 %v1453, %v1456
    %v1459 = vrot.slane %v1352, 6
    %v1461 = vmul.f32 %v1439, %v1459
    %v1462 = vadd.f32 %v1458, %v1461
    %1464 = vrot.lane.b32.xlu0 %v1462, 96
    %v1465 = vpop.permute.xlu0 %1464
    %1467 = vst.msk [vmem:[#allocation3] sm:$0xc] %vm466, %v1465
    %v1468 = vrot.slane %v1462, 2
    %1469 = vrot.lane.b32.xlu0 %v1468, 96
    %v1470 = vpop.permute.xlu0 %1469
    %v1471 = vsel %vm157, %v1470, 0
    %1473 = vmatprep.subr.mxu0 0.0
    %1474 = vmatpush1.msra.mxu0 %v1145
    %1475 = vmatprep.subr.mxu0 0.0
    %1476 = vmatpush1.msra.mxu0 %v1146
    %1477 = vmatprep.subr.mxu0 0.0
    %1478 = vmatpush1.msra.mxu0 %v1147
    %1479 = vmatprep.subr.mxu0 0.0
    %1480 = vmatpush1.msra.mxu0 %v1148
    %1481 = vmatprep.subr.mxu0 0.0
    %1482 = vmatpush1.msra.mxu0 0.0
    %1483 = vmatprep.subr.mxu0 0.0
    %1484 = vmatpush1.msra.mxu0 0.0
    %1485 = vmatprep.subr.mxu0 0.0
    %1486 = vmatpush1.msra.mxu0 0.0
    %1487 = vmatprep.subr.mxu0 0.0
    %1488 = vmatpush1.msra.mxu0 0.0
    %1489 = vmatprep.subr.mxu0 0.0
    %1490 = vmatpush1.msra.mxu0 0.0
    %1491 = vmatprep.subr.mxu0 0.0
    %1492 = vmatpush1.msra.mxu0 0.0
    %1493 = vmatprep.subr.mxu0 0.0
    %1494 = vmatpush1.msra.mxu0 0.0
    %1495 = vmatprep.subr.mxu0 0.0
    %1496 = vmatpush1.msra.mxu0 0.0
    %1497 = vmatprep.subr.mxu0 0.0
    %1498 = vmatpush1.msra.mxu0 0.0
    %1499 = vmatprep.subr.mxu0 0.0
    %1500 = vmatpush1.msra.mxu0 0.0
    %1501 = vmatprep.subr.mxu0 0.0
    %1502 = vmatpush1.msra.mxu0 0.0
    %1503 = vmatprep.subr.mxu0 0.0
    %1504 = vmatpush1.msra.mxu0 0.0
    %1505 = vmatprep.subr.mxu0 0.0
    %1506 = vmatpush1.msra.mxu0 0.0
    %1507 = vmatprep.subr.mxu0 0.0
    %1508 = vmatpush1.msra.mxu0 0.0
    %1509 = vmatprep.subr.mxu0 0.0
    %1510 = vmatpush1.msra.mxu0 0.0
    %1511 = vmatprep.subr.mxu0 0.0
    %1512 = vmatpush1.msra.mxu0 0.0
    %1513 = vmatprep.subr.mxu0 0.0
    %1514 = vmatpush1.msra.mxu0 0.0
    %1515 = vmatprep.subr.mxu0 0.0
    %1516 = vmatpush1.msra.mxu0 0.0
    %1517 = vmatprep.subr.mxu0 0.0
    %1518 = vmatpush1.msra.mxu0 0.0
    %1519 = vmatprep.subr.mxu0 0.0
    %1520 = vmatpush1.msra.mxu0 0.0
    %1521 = vmatprep.subr.mxu0 0.0
    %1522 = vmatpush1.msra.mxu0 0.0
    %1523 = vmatprep.subr.mxu0 0.0
    %1524 = vmatpush1.msra.mxu0 0.0
    %1525 = vmatprep.subr.mxu0 0.0
    %1526 = vmatpush1.msra.mxu0 0.0
    %1527 = vmatprep.subr.mxu0 0.0
    %1528 = vmatpush1.msra.mxu0 0.0
    %1529 = vmatprep.subr.mxu0 0.0
    %1530 = vmatpush1.msra.mxu0 0.0
    %1531 = vmatprep.subr.mxu0 0.0
    %1532 = vmatpush1.msra.mxu0 0.0
    %1533 = vmatprep.subr.mxu0 0.0
    %1534 = vmatpush1.msra.mxu0 0.0
    %1535 = vmatprep.subr.mxu0 0.0
    %1536 = vmatpush1.msra.mxu0 0.0
    %1537 = vmatprep.mubr.f32.mxu0 0.0
    %1538 = vmatmul.mubr.f32.gmra.mrb[0].mxu0 %v1471
    %v1539 = vpop.f32.mrb[0].mxu0
    %v1540 = vadd.f32 0.0, %v1539
    %v1541 = vpop.f32.mrb[0].mxu0
    %1542 = vdwg.mxu0
    %v1544 = vrot.slane %v1540, 4
    %v1546 = vadd.f32 %v1232, %v1544
    %v1547 = vsub.f32 0.0, %v1546
    %v1548 = vmul.f32 %v1547, 1.442695
    %v1549 = vpow.pop %v1548
    %v1550 = vadd.f32 %v1549, 1.0
    %v1551 = vrcp.pop %v1550
    %v1552 = vmul.f32 1.0, %v1551
    %v1553 = vadd.f32 %v1540, %v1328
    %v1555 = vrot.slane %v1553, 4
    %1556 = vrot.lane.b32.xlu0 %v1555, 64
    %v1557 = vpop.permute.xlu0 %1556
    %v1559 = vmul.f32 %v1552, %v1557
    %1561 = vrot.lane.b32.xlu0 %v1559, 64
    %v1562 = vpop.permute.xlu0 %1561
    %v1564 = vadd.f32 %v1232, %v1562
    %v1565 = vtanh.pop %v1564
    %v1566 = vsub.f32 1.0, %v1552
    %1568 = vrot.lane.b32.xlu0 %v1565, 96
    %v1569 = vpop.permute.xlu0 %1568
    %v1571 = vmul.f32 %v1566, %v1569
    %v1572 = vrot.slane %v1462, 6
    %v1574 = vmul.f32 %v1552, %v1572
    %v1575 = vadd.f32 %v1571, %v1574
    %1577 = vrot.lane.b32.xlu0 %v1575, 96
    %v1578 = vpop.permute.xlu0 %1577
    %1580 = vst.msk [vmem:[#allocation3] sm:$0x30] %vm580, %v1578
    %v1581 = vrot.slane %v1575, 4
    %1582 = vrot.lane.b32.xlu0 %v1581, 96
    %v1583 = vpop.permute.xlu0 %1582
    %v1584 = vsel %vm157, %v1583, 0
    %1586 = vmatprep.subr.mxu0 0.0
    %1587 = vmatpush1.msra.mxu0 %v1145
    %1588 = vmatprep.subr.mxu0 0.0
    %1589 = vmatpush1.msra.mxu0 %v1146
    %1590 = vmatprep.subr.mxu0 0.0
    %1591 = vmatpush1.msra.mxu0 %v1147
    %1592 = vmatprep.subr.mxu0 0.0
    %1593 = vmatpush1.msra.mxu0 %v1148
    %1594 = vmatprep.subr.mxu0 0.0
    %1595 = vmatpush1.msra.mxu0 0.0
    %1596 = vmatprep.subr.mxu0 0.0
    %1597 = vmatpush1.msra.mxu0 0.0
    %1598 = vmatprep.subr.mxu0 0.0
    %1599 = vmatpush1.msra.mxu0 0.0
    %1600 = vmatprep.subr.mxu0 0.0
    %1601 = vmatpush1.msra.mxu0 0.0
    %1602 = vmatprep.subr.mxu0 0.0
    %1603 = vmatpush1.msra.mxu0 0.0
    %1604 = vmatprep.subr.mxu0 0.0
    %1605 = vmatpush1.msra.mxu0 0.0
    %1606 = vmatprep.subr.mxu0 0.0
    %1607 = vmatpush1.msra.mxu0 0.0
    %1608 = vmatprep.subr.mxu0 0.0
    %1609 = vmatpush1.msra.mxu0 0.0
    %1610 = vmatprep.subr.mxu0 0.0
    %1611 = vmatpush1.msra.mxu0 0.0
    %1612 = vmatprep.subr.mxu0 0.0
    %1613 = vmatpush1.msra.mxu0 0.0
    %1614 = vmatprep.subr.mxu0 0.0
    %1615 = vmatpush1.msra.mxu0 0.0
    %1616 = vmatprep.subr.mxu0 0.0
    %1617 = vmatpush1.msra.mxu0 0.0
    %1618 = vmatprep.subr.mxu0 0.0
    %1619 = vmatpush1.msra.mxu0 0.0
    %1620 = vmatprep.subr.mxu0 0.0
    %1621 = vmatpush1.msra.mxu0 0.0
    %1622 = vmatprep.subr.mxu0 0.0
    %1623 = vmatpush1.msra.mxu0 0.0
    %1624 = vmatprep.subr.mxu0 0.0
    %1625 = vmatpush1.msra.mxu0 0.0
    %1626 = vmatprep.subr.mxu0 0.0
    %1627 = vmatpush1.msra.mxu0 0.0
    %1628 = vmatprep.subr.mxu0 0.0
    %1629 = vmatpush1.msra.mxu0 0.0
    %1630 = vmatprep.subr.mxu0 0.0
    %1631 = vmatpush1.msra.mxu0 0.0
    %1632 = vmatprep.subr.mxu0 0.0
    %1633 = vmatpush1.msra.mxu0 0.0
    %1634 = vmatprep.subr.mxu0 0.0
    %1635 = vmatpush1.msra.mxu0 0.0
    %1636 = vmatprep.subr.mxu0 0.0
    %1637 = vmatpush1.msra.mxu0 0.0
    %1638 = vmatprep.subr.mxu0 0.0
    %1639 = vmatpush1.msra.mxu0 0.0
    %1640 = vmatprep.subr.mxu0 0.0
    %1641 = vmatpush1.msra.mxu0 0.0
    %1642 = vmatprep.subr.mxu0 0.0
    %1643 = vmatpush1.msra.mxu0 0.0
    %1644 = vmatprep.subr.mxu0 0.0
    %1645 = vmatpush1.msra.mxu0 0.0
    %1646 = vmatprep.subr.mxu0 0.0
    %1647 = vmatpush1.msra.mxu0 0.0
    %1648 = vmatprep.subr.mxu0 0.0
    %1649 = vmatpush1.msra.mxu0 0.0
    %1650 = vmatprep.mubr.f32.mxu0 0.0
    %1651 = vmatmul.mubr.f32.gmra.mrb[0].mxu0 %v1584
    %v1652 = vpop.f32.mrb[0].mxu0
    %v1653 = vadd.f32 0.0, %v1652
    %v1654 = vpop.f32.mrb[0].mxu0
    %1655 = vdwg.mxu0
    %v1657 = vrot.slane %v1653, 2
    %v1659 = vadd.f32 %v1232, %v1657
    %v1660 = vsub.f32 0.0, %v1659
    %v1661 = vmul.f32 %v1660, 1.442695
    %v1662 = vpow.pop %v1661
    %v1663 = vadd.f32 %v1662, 1.0
    %v1664 = vrcp.pop %v1663
    %v1665 = vmul.f32 1.0, %v1664
    %v1666 = vadd.f32 %v1653, %v1328
    %v1668 = vrot.slane %v1666, 2
    %1669 = vrot.lane.b32.xlu0 %v1668, 64
    %v1670 = vpop.permute.xlu0 %1669
    %v1672 = vmul.f32 %v1665, %v1670
    %1674 = vrot.lane.b32.xlu0 %v1672, 64
    %v1675 = vpop.permute.xlu0 %1674
    %v1677 = vadd.f32 %v1232, %v1675
    %v1678 = vtanh.pop %v1677
    %v1679 = vsub.f32 1.0, %v1665
    %1681 = vrot.lane.b32.xlu0 %v1678, 96
    %v1682 = vpop.permute.xlu0 %1681
    %v1684 = vmul.f32 %v1679, %v1682
    %v1685 = vrot.slane %v1575, 6
    %v1687 = vmul.f32 %v1665, %v1685
    %v1688 = vadd.f32 %v1684, %v1687
    %1690 = vrot.lane.b32.xlu0 %v1688, 96
    %v1691 = vpop.permute.xlu0 %1690
    %1693 = vst.msk [vmem:[#allocation3] sm:$0xc0] %vm694, %v1691
    %v1694 = vrot.slane %v1688, 6
    %1695 = vrot.lane.b32.xlu0 %v1694, 96
    %v1696 = vpop.permute.xlu0 %1695
    %v1697 = vsel %vm157, %v1696, 0
    %1699 = vmatprep.subr.mxu0 0.0
    %1700 = vmatpush1.msra.mxu0 %v1145
    %1701 = vmatprep.subr.mxu0 0.0
    %1702 = vmatpush1.msra.mxu0 %v1146
    %1703 = vmatprep.subr.mxu0 0.0
    %1704 = vmatpush1.msra.mxu0 %v1147
    %1705 = vmatprep.subr.mxu0 0.0
    %1706 = vmatpush1.msra.mxu0 %v1148
    %1707 = vmatprep.subr.mxu0 0.0
    %1708 = vmatpush1.msra.mxu0 0.0
    %1709 = vmatprep.subr.mxu0 0.0
    %1710 = vmatpush1.msra.mxu0 0.0
    %1711 = vmatprep.subr.mxu0 0.0
    %1712 = vmatpush1.msra.mxu0 0.0
    %1713 = vmatprep.subr.mxu0 0.0
    %1714 = vmatpush1.msra.mxu0 0.0
    %1715 = vmatprep.subr.mxu0 0.0
    %1716 = vmatpush1.msra.mxu0 0.0
    %1717 = vmatprep.subr.mxu0 0.0
    %1718 = vmatpush1.msra.mxu0 0.0
    %1719 = vmatprep.subr.mxu0 0.0
    %1720 = vmatpush1.msra.mxu0 0.0
    %1721 = vmatprep.subr.mxu0 0.0
    %1722 = vmatpush1.msra.mxu0 0.0
    %1723 = vmatprep.subr.mxu0 0.0
    %1724 = vmatpush1.msra.mxu0 0.0
    %1725 = vmatprep.subr.mxu0 0.0
    %1726 = vmatpush1.msra.mxu0 0.0
    %1727 = vmatprep.subr.mxu0 0.0
    %1728 = vmatpush1.msra.mxu0 0.0
    %1729 = vmatprep.subr.mxu0 0.0
    %1730 = vmatpush1.msra.mxu0 0.0
    %1731 = vmatprep.subr.mxu0 0.0
    %1732 = vmatpush1.msra.mxu0 0.0
    %1733 = vmatprep.subr.mxu0 0.0
    %1734 = vmatpush1.msra.mxu0 0.0
    %1735 = vmatprep.subr.mxu0 0.0
    %1736 = vmatpush1.msra.mxu0 0.0
    %1737 = vmatprep.subr.mxu0 0.0
    %1738 = vmatpush1.msra.mxu0 0.0
    %1739 = vmatprep.subr.mxu0 0.0
    %1740 = vmatpush1.msra.mxu0 0.0
    %1741 = vmatprep.subr.mxu0 0.0
    %1742 = vmatpush1.msra.mxu0 0.0
    %1743 = vmatprep.subr.mxu0 0.0
    %1744 = vmatpush1.msra.mxu0 0.0
    %1745 = vmatprep.subr.mxu0 0.0
    %1746 = vmatpush1.msra.mxu0 0.0
    %1747 = vmatprep.subr.mxu0 0.0
    %1748 = vmatpush1.msra.mxu0 0.0
    %1749 = vmatprep.subr.mxu0 0.0
    %1750 = vmatpush1.msra.mxu0 0.0
    %1751 = vmatprep.subr.mxu0 0.0
    %1752 = vmatpush1.msra.mxu0 0.0
    %1753 = vmatprep.subr.mxu0 0.0
    %1754 = vmatpush1.msra.mxu0 0.0
    %1755 = vmatprep.subr.mxu0 0.0
    %1756 = vmatpush1.msra.mxu0 0.0
    %1757 = vmatprep.subr.mxu0 0.0
    %1758 = vmatpush1.msra.mxu0 0.0
    %1759 = vmatprep.subr.mxu0 0.0
    %1760 = vmatpush1.msra.mxu0 0.0
    %1761 = vmatprep.subr.mxu0 0.0
    %1762 = vmatpush1.msra.mxu0 0.0
    %1763 = vmatprep.mubr.f32.mxu0 0.0
    %1764 = vmatmul.mubr.f32.gmra.mrb[0].mxu0 %v1697
    %v1765 = vpop.f32.mrb[0].mxu0
    %v1766 = vadd.f32 0.0, %v1765
    %v1767 = vpop.f32.mrb[0].mxu0
    %1768 = vdwg.mxu0
    %v1769 = vadd.f32 %v1237, %v1766
    %v1770 = vsub.f32 0.0, %v1769
    %v1771 = vmul.f32 %v1770, 1.442695
    %v1772 = vpow.pop %v1771
    %v1773 = vadd.f32 %v1772, 1.0
    %v1774 = vrcp.pop %v1773
    %v1775 = vmul.f32 1.0, %v1774
    %v1776 = vadd.f32 %v1766, %v1328
    %1778 = vrot.lane.b32.xlu0 %v1776, 64
    %v1779 = vpop.permute.xlu0 %1778
    %v1781 = vmul.f32 %v1775, %v1779
    %1783 = vrot.lane.b32.xlu0 %v1781, 64
    %v1784 = vpop.permute.xlu0 %1783
    %v1786 = vadd.f32 %v1237, %v1784
    %v1787 = vtanh.pop %v1786
    %v1788 = vsub.f32 1.0, %v1775
    %1790 = vrot.lane.b32.xlu0 %v1787, 96
    %v1791 = vpop.permute.xlu0 %1790
    %v1793 = vmul.f32 %v1788, %v1791
    %v1795 = vmul.f32 %v1775, %v1694
    %v1796 = vadd.f32 %v1793, %v1795
    %1798 = vrot.lane.b32.xlu0 %v1796, 96
    %v1799 = vpop.permute.xlu0 %1798
    %1801 = vst.msk [vmem:[#allocation3 + $0x8] sm:$0x3] %vm355, %v1799
    %v1802 = vsel %vm157, %v1799, 0
    %1804 = vmatprep.subr.mxu0 0.0
    %1805 = vmatpush1.msra.mxu0 %v1145
    %1806 = vmatprep.subr.mxu0 0.0
    %1807 = vmatpush1.msra.mxu0 %v1146
    %1808 = vmatprep.subr.mxu0 0.0
    %1809 = vmatpush1.msra.mxu0 %v1147
    %1810 = vmatprep.subr.mxu0 0.0
    %1811 = vmatpush1.msra.mxu0 %v1148
    %1812 = vmatprep.subr.mxu0 0.0
    %1813 = vmatpush1.msra.mxu0 0.0
    %1814 = vmatprep.subr.mxu0 0.0
    %1815 = vmatpush1.msra.mxu0 0.0
    %1816 = vmatprep.subr.mxu0 0.0
    %1817 = vmatpush1.msra.mxu0 0.0
    %1818 = vmatprep.subr.mxu0 0.0
    %1819 = vmatpush1.msra.mxu0 0.0
    %1820 = vmatprep.subr.mxu0 0.0
    %1821 = vmatpush1.msra.mxu0 0.0
    %1822 = vmatprep.subr.mxu0 0.0
    %1823 = vmatpush1.msra.mxu0 0.0
    %1824 = vmatprep.subr.mxu0 0.0
    %1825 = vmatpush1.msra.mxu0 0.0
    %1826 = vmatprep.subr.mxu0 0.0
    %1827 = vmatpush1.msra.mxu0 0.0
    %1828 = vmatprep.subr.mxu0 0.0
    %1829 = vmatpush1.msra.mxu0 0.0
    %1830 = vmatprep.subr.mxu0 0.0
    %1831 = vmatpush1.msra.mxu0 0.0
    %1832 = vmatprep.subr.mxu0 0.0
    %1833 = vmatpush1.msra.mxu0 0.0
    %1834 = vmatprep.subr.mxu0 0.0
    %1835 = vmatpush1.msra.mxu0 0.0
    %1836 = vmatprep.subr.mxu0 0.0
    %1837 = vmatpush1.msra.mxu0 0.0
    %1838 = vmatprep.subr.mxu0 0.0
    %1839 = vmatpush1.msra.mxu0 0.0
    %1840 = vmatprep.subr.mxu0 0.0
    %1841 = vmatpush1.msra.mxu0 0.0
    %1842 = vmatprep.subr.mxu0 0.0
    %1843 = vmatpush1.msra.mxu0 0.0
    %1844 = vmatprep.subr.mxu0 0.0
    %1845 = vmatpush1.msra.mxu0 0.0
    %1846 = vmatprep.subr.mxu0 0.0
    %1847 = vmatpush1.msra.mxu0 0.0
    %1848 = vmatprep.subr.mxu0 0.0
    %1849 = vmatpush1.msra.mxu0 0.0
    %1850 = vmatprep.subr.mxu0 0.0
    %1851 = vmatpush1.msra.mxu0 0.0
    %1852 = vmatprep.subr.mxu0 0.0
    %1853 = vmatpush1.msra.mxu0 0.0
    %1854 = vmatprep.subr.mxu0 0.0
    %1855 = vmatpush1.msra.mxu0 0.0
    %1856 = vmatprep.subr.mxu0 0.0
    %1857 = vmatpush1.msra.mxu0 0.0
    %1858 = vmatprep.subr.mxu0 0.0
    %1859 = vmatpush1.msra.mxu0 0.0
    %1860 = vmatprep.subr.mxu0 0.0
    %1861 = vmatpush1.msra.mxu0 0.0
    %1862 = vmatprep.subr.mxu0 0.0
    %1863 = vmatpush1.msra.mxu0 0.0
    %1864 = vmatprep.subr.mxu0 0.0
    %1865 = vmatpush1.msra.mxu0 0.0
    %1866 = vmatprep.subr.mxu0 0.0
    %1867 = vmatpush1.msra.mxu0 0.0
    %1868 = vmatprep.mubr.f32.mxu0 0.0
    %1869 = vmatmul.mubr.f32.gmra.mrb[0].mxu0 %v1802
    %v1870 = vpop.f32.mrb[0].mxu0
    %v1871 = vadd.f32 0.0, %v1870
    %v1872 = vpop.f32.mrb[0].mxu0
    %1873 = vdwg.mxu0
    %v1875 = vrot.slane %v1871, 6
    %v1877 = vadd.f32 %v1237, %v1875
    %v1878 = vsub.f32 0.0, %v1877
    %v1879 = vmul.f32 %v1878, 1.442695
    %v1880 = vpow.pop %v1879
    %v1881 = vadd.f32 %v1880, 1.0
    %v1882 = vrcp.pop %v1881
    %v1883 = vmul.f32 1.0, %v1882
    %v1884 = vadd.f32 %v1871, %v1328
    %v1886 = vrot.slane %v1884, 6
    %1887 = vrot.lane.b32.xlu0 %v1886, 64
    %v1888 = vpop.permute.xlu0 %1887
    %v1890 = vmul.f32 %v1883, %v1888
    %1892 = vrot.lane.b32.xlu0 %v1890, 64
    %v1893 = vpop.permute.xlu0 %1892
    %v1895 = vadd.f32 %v1237, %v1893
    %v1896 = vtanh.pop %v1895
    %v1897 = vsub.f32 1.0, %v1883
    %1899 = vrot.lane.b32.xlu0 %v1896, 96
    %v1900 = vpop.permute.xlu0 %1899
    %v1902 = vmul.f32 %v1897, %v1900
    %v1903 = vrot.slane %v1796, 6
    %v1905 = vmul.f32 %v1883, %v1903
    %v1906 = vadd.f32 %v1902, %v1905
    %1908 = vrot.lane.b32.xlu0 %v1906, 96
    %v1909 = vpop.permute.xlu0 %1908
    %1911 = vst.msk [vmem:[#allocation3 + $0x8] sm:$0xc] %vm466, %v1909
    %v1912 = vrot.slane %v1906, 2
    %1913 = vrot.lane.b32.xlu0 %v1912, 96
    %v1914 = vpop.permute.xlu0 %1913
    %v1915 = vsel %vm157, %v1914, 0
    %1917 = vmatprep.subr.mxu0 0.0
    %1918 = vmatpush1.msra.mxu0 %v1145
    %1919 = vmatprep.subr.mxu0 0.0
    %1920 = vmatpush1.msra.mxu0 %v1146
    %1921 = vmatprep.subr.mxu0 0.0
    %1922 = vmatpush1.msra.mxu0 %v1147
    %1923 = vmatprep.subr.mxu0 0.0
    %1924 = vmatpush1.msra.mxu0 %v1148
    %1925 = vmatprep.subr.mxu0 0.0
    %1926 = vmatpush1.msra.mxu0 0.0
    %1927 = vmatprep.subr.mxu0 0.0
    %1928 = vmatpush1.msra.mxu0 0.0
    %1929 = vmatprep.subr.mxu0 0.0
    %1930 = vmatpush1.msra.mxu0 0.0
    %1931 = vmatprep.subr.mxu0 0.0
    %1932 = vmatpush1.msra.mxu0 0.0
    %1933 = vmatprep.subr.mxu0 0.0
    %1934 = vmatpush1.msra.mxu0 0.0
    %1935 = vmatprep.subr.mxu0 0.0
    %1936 = vmatpush1.msra.mxu0 0.0
    %1937 = vmatprep.subr.mxu0 0.0
    %1938 = vmatpush1.msra.mxu0 0.0
    %1939 = vmatprep.subr.mxu0 0.0
    %1940 = vmatpush1.msra.mxu0 0.0
    %1941 = vmatprep.subr.mxu0 0.0
    %1942 = vmatpush1.msra.mxu0 0.0
    %1943 = vmatprep.subr.mxu0 0.0
    %1944 = vmatpush1.msra.mxu0 0.0
    %1945 = vmatprep.subr.mxu0 0.0
    %1946 = vmatpush1.msra.mxu0 0.0
    %1947 = vmatprep.subr.mxu0 0.0
    %1948 = vmatpush1.msra.mxu0 0.0
    %1949 = vmatprep.subr.mxu0 0.0
    %1950 = vmatpush1.msra.mxu0 0.0
    %1951 = vmatprep.subr.mxu0 0.0
    %1952 = vmatpush1.msra.mxu0 0.0
    %1953 = vmatprep.subr.mxu0 0.0
    %1954 = vmatpush1.msra.mxu0 0.0
    %1955 = vmatprep.subr.mxu0 0.0
    %1956 = vmatpush1.msra.mxu0 0.0
    %1957 = vmatprep.subr.mxu0 0.0
    %1958 = vmatpush1.msra.mxu0 0.0
    %1959 = vmatprep.subr.mxu0 0.0
    %1960 = vmatpush1.msra.mxu0 0.0
    %1961 = vmatprep.subr.mxu0 0.0
    %1962 = vmatpush1.msra.mxu0 0.0
    %1963 = vmatprep.subr.mxu0 0.0
    %1964 = vmatpush1.msra.mxu0 0.0
    %1965 = vmatprep.subr.mxu0 0.0
    %1966 = vmatpush1.msra.mxu0 0.0
    %1967 = vmatprep.subr.mxu0 0.0
    %1968 = vmatpush1.msra.mxu0 0.0
    %1969 = vmatprep.subr.mxu0 0.0
    %1970 = vmatpush1.msra.mxu0 0.0
    %1971 = vmatprep.subr.mxu0 0.0
    %1972 = vmatpush1.msra.mxu0 0.0
    %1973 = vmatprep.subr.mxu0 0.0
    %1974 = vmatpush1.msra.mxu0 0.0
    %1975 = vmatprep.subr.mxu0 0.0
    %1976 = vmatpush1.msra.mxu0 0.0
    %1977 = vmatprep.subr.mxu0 0.0
    %1978 = vmatpush1.msra.mxu0 0.0
    %1979 = vmatprep.subr.mxu0 0.0
    %1980 = vmatpush1.msra.mxu0 0.0
    %1981 = vmatprep.mubr.f32.mxu0 0.0
    %1982 = vmatmul.mubr.f32.gmra.mrb[0].mxu0 %v1915
    %v1983 = vpop.f32.mrb[0].mxu0
    %v1984 = vadd.f32 0.0, %v1983
    %v1985 = vpop.f32.mrb[0].mxu0
    %1986 = vdwg.mxu0
    %v1988 = vrot.slane %v1984, 4
    %v1990 = vadd.f32 %v1237, %v1988
    %v1991 = vsub.f32 0.0, %v1990
    %v1992 = vmul.f32 %v1991, 1.442695
    %v1993 = vpow.pop %v1992
    %v1994 = vadd.f32 %v1993, 1.0
    %v1995 = vrcp.pop %v1994
    %v1996 = vmul.f32 1.0, %v1995
    %v1997 = vadd.f32 %v1984, %v1328
    %v1999 = vrot.slane %v1997, 4
    %2000 = vrot.lane.b32.xlu0 %v1999, 64
    %v2001 = vpop.permute.xlu0 %2000
    %v2003 = vmul.f32 %v1996, %v2001
    %2005 = vrot.lane.b32.xlu0 %v2003, 64
    %v2006 = vpop.permute.xlu0 %2005
    %v2008 = vadd.f32 %v1237, %v2006
    %v2009 = vtanh.pop %v2008
    %v2010 = vsub.f32 1.0, %v1996
    %2012 = vrot.lane.b32.xlu0 %v2009, 96
    %v2013 = vpop.permute.xlu0 %2012
    %v2015 = vmul.f32 %v2010, %v2013
    %v2016 = vrot.slane %v1906, 6
    %v2018 = vmul.f32 %v1996, %v2016
    %v2019 = vadd.f32 %v2015, %v2018
    %2021 = vrot.lane.b32.xlu0 %v2019, 96
    %v2022 = vpop.permute.xlu0 %2021
    %2024 = vst.msk [vmem:[#allocation3 + $0x8] sm:$0x30] %vm580, %v2022
    %v2025 = vrot.slane %v2019, 4
    %2026 = vrot.lane.b32.xlu0 %v2025, 96
    %v2027 = vpop.permute.xlu0 %2026
    %v2028 = vsel %vm157, %v2027, 0
    %2030 = vmatprep.subr.mxu0 0.0
    %2031 = vmatpush1.msra.mxu0 %v1145
    %2032 = vmatprep.subr.mxu0 0.0
    %2033 = vmatpush1.msra.mxu0 %v1146
    %2034 = vmatprep.subr.mxu0 0.0
    %2035 = vmatpush1.msra.mxu0 %v1147
    %2036 = vmatprep.subr.mxu0 0.0
    %2037 = vmatpush1.msra.mxu0 %v1148
    %2038 = vmatprep.subr.mxu0 0.0
    %2039 = vmatpush1.msra.mxu0 0.0
    %2040 = vmatprep.subr.mxu0 0.0
    %2041 = vmatpush1.msra.mxu0 0.0
    %2042 = vmatprep.subr.mxu0 0.0
    %2043 = vmatpush1.msra.mxu0 0.0
    %2044 = vmatprep.subr.mxu0 0.0
    %2045 = vmatpush1.msra.mxu0 0.0
    %2046 = vmatprep.subr.mxu0 0.0
    %2047 = vmatpush1.msra.mxu0 0.0
    %2048 = vmatprep.subr.mxu0 0.0
    %2049 = vmatpush1.msra.mxu0 0.0
    %2050 = vmatprep.subr.mxu0 0.0
    %2051 = vmatpush1.msra.mxu0 0.0
    %2052 = vmatprep.subr.mxu0 0.0
    %2053 = vmatpush1.msra.mxu0 0.0
    %2054 = vmatprep.subr.mxu0 0.0
    %2055 = vmatpush1.msra.mxu0 0.0
    %2056 = vmatprep.subr.mxu0 0.0
    %2057 = vmatpush1.msra.mxu0 0.0
    %2058 = vmatprep.subr.mxu0 0.0
    %2059 = vmatpush1.msra.mxu0 0.0
    %2060 = vmatprep.subr.mxu0 0.0
    %2061 = vmatpush1.msra.mxu0 0.0
    %2062 = vmatprep.subr.mxu0 0.0
    %2063 = vmatpush1.msra.mxu0 0.0
    %2064 = vmatprep.subr.mxu0 0.0
    %2065 = vmatpush1.msra.mxu0 0.0
    %2066 = vmatprep.subr.mxu0 0.0
    %2067 = vmatpush1.msra.mxu0 0.0
    %2068 = vmatprep.subr.mxu0 0.0
    %2069 = vmatpush1.msra.mxu0 0.0
    %2070 = vmatprep.subr.mxu0 0.0
    %2071 = vmatpush1.msra.mxu0 0.0
    %2072 = vmatprep.subr.mxu0 0.0
    %2073 = vmatpush1.msra.mxu0 0.0
    %2074 = vmatprep.subr.mxu0 0.0
    %2075 = vmatpush1.msra.mxu0 0.0
    %2076 = vmatprep.subr.mxu0 0.0
    %2077 = vmatpush1.msra.mxu0 0.0
    %2078 = vmatprep.subr.mxu0 0.0
    %2079 = vmatpush1.msra.mxu0 0.0
    %2080 = vmatprep.subr.mxu0 0.0
    %2081 = vmatpush1.msra.mxu0 0.0
    %2082 = vmatprep.subr.mxu0 0.0
    %2083 = vmatpush1.msra.mxu0 0.0
    %2084 = vmatprep.subr.mxu0 0.0
    %2085 = vmatpush1.msra.mxu0 0.0
    %2086 = vmatprep.subr.mxu0 0.0
    %2087 = vmatpush1.msra.mxu0 0.0
    %2088 = vmatprep.subr.mxu0 0.0
    %2089 = vmatpush1.msra.mxu0 0.0
    %2090 = vmatprep.subr.mxu0 0.0
    %2091 = vmatpush1.msra.mxu0 0.0
    %2092 = vmatprep.subr.mxu0 0.0
    %2093 = vmatpush1.msra.mxu0 0.0
    %2094 = vmatprep.mubr.f32.mxu0 0.0
    %2095 = vmatmul.mubr.f32.gmra.mrb[0].mxu0 %v2028
    %v2096 = vpop.f32.mrb[0].mxu0
    %v2097 = vadd.f32 0.0, %v2096
    %v2098 = vpop.f32.mrb[0].mxu0
    %2099 = vdwg.mxu0
    %v2101 = vrot.slane %v2097, 2
    %v2103 = vadd.f32 %v1237, %v2101
    %v2104 = vsub.f32 0.0, %v2103
    %v2105 = vmul.f32 %v2104, 1.442695
    %v2106 = vpow.pop %v2105
    %v2107 = vadd.f32 %v2106, 1.0
    %v2108 = vrcp.pop %v2107
    %v2109 = vmul.f32 1.0, %v2108
    %v2110 = vadd.f32 %v2097, %v1328
    %v2112 = vrot.slane %v2110, 2
    %2113 = vrot.lane.b32.xlu0 %v2112, 64
    %v2114 = vpop.permute.xlu0 %2113
    %v2116 = vmul.f32 %v2109, %v2114
    %2118 = vrot.lane.b32.xlu0 %v2116, 64
    %v2119 = vpop.permute.xlu0 %2118
    %v2121 = vadd.f32 %v1237, %v2119
    %v2122 = vtanh.pop %v2121
    %v2123 = vsub.f32 1.0, %v2109
    %2125 = vrot.lane.b32.xlu0 %v2122, 96
    %v2126 = vpop.permute.xlu0 %2125
    %v2128 = vmul.f32 %v2123, %v2126
    %v2129 = vrot.slane %v2019, 6
    %v2131 = vmul.f32 %v2109, %v2129
    %v2132 = vadd.f32 %v2128, %v2131
    %2134 = vrot.lane.b32.xlu0 %v2132, 96
    %v2135 = vpop.permute.xlu0 %2134
    %2137 = vst.msk [vmem:[#allocation3 + $0x8] sm:$0xc0] %vm694, %v2135
    %s2138 = scalar_lea.vmem [#allocation16], 2
    %2139 = vst.msk [vmem:[%s2138 - $0x6] sm:$0xc0] %vm694, %v2135
    %v2140 = vld [vmem:[#allocation3] sm:$0xff]
    %v2141 = vld [vmem:[#allocation3 + $0x8] sm:$0xff]
    %v2142 = vld [vmem:[%s10] sm:$0xff]
    %v2143 = vld [vmem:[%s10 + $0x8] sm:$0xff]
    %v2144 = vld [vmem:[%s10 + $0x10] sm:$0xff]
    %v2145 = vld [vmem:[%s10 + $0x18] sm:$0xff]
    %v2146 = vld [vmem:[%s11] sm:$0x1]
    %v2148 = vlaneseq
    %v2149 = vshrl.u32 %v2148, 7
    %v2150 = vsub.s32 0, %v2149
    %v2151 = vrot.slane %v2146, %v2150
    %v2154 = vsel %vm157, %v2140, 0
    %v2157 = vsel %vm157, %v2141, 0
    %2159 = vmatprep.subr.mxu0 0.0
    %2160 = vmatpush1.msra.mxu0 %v2142
    %2161 = vmatprep.subr.mxu0 0.0
    %2162 = vmatpush1.msra.mxu0 %v2143
    %2163 = vmatprep.subr.mxu0 0.0
    %2164 = vmatpush1.msra.mxu0 %v2144
    %2165 = vmatprep.subr.mxu0 0.0
    %2166 = vmatpush1.msra.mxu0 %v2145
    %2167 = vmatprep.subr.mxu0 0.0
    %2168 = vmatpush1.msra.mxu0 0.0
    %2169 = vmatprep.subr.mxu0 0.0
    %2170 = vmatpush1.msra.mxu0 0.0
    %2171 = vmatprep.subr.mxu0 0.0
    %2172 = vmatpush1.msra.mxu0 0.0
    %2173 = vmatprep.subr.mxu0 0.0
    %2174 = vmatpush1.msra.mxu0 0.0
    %2175 = vmatprep.subr.mxu0 0.0
    %2176 = vmatpush1.msra.mxu0 0.0
    %2177 = vmatprep.subr.mxu0 0.0
    %2178 = vmatpush1.msra.mxu0 0.0
    %2179 = vmatprep.subr.mxu0 0.0
    %2180 = vmatpush1.msra.mxu0 0.0
    %2181 = vmatprep.subr.mxu0 0.0
    %2182 = vmatpush1.msra.mxu0 0.0
    %2183 = vmatprep.subr.mxu0 0.0
    %2184 = vmatpush1.msra.mxu0 0.0
    %2185 = vmatprep.subr.mxu0 0.0
    %2186 = vmatpush1.msra.mxu0 0.0
    %2187 = vmatprep.subr.mxu0 0.0
    %2188 = vmatpush1.msra.mxu0 0.0
    %2189 = vmatprep.subr.mxu0 0.0
    %2190 = vmatpush1.msra.mxu0 0.0
    %2191 = vmatprep.subr.mxu0 0.0
    %2192 = vmatpush1.msra.mxu0 0.0
    %2193 = vmatprep.subr.mxu0 0.0
    %2194 = vmatpush1.msra.mxu0 0.0
    %2195 = vmatprep.subr.mxu0 0.0
    %2196 = vmatpush1.msra.mxu0 0.0
    %2197 = vmatprep.subr.mxu0 0.0
    %2198 = vmatpush1.msra.mxu0 0.0
    %2199 = vmatprep.subr.mxu0 0.0
    %2200 = vmatpush1.msra.mxu0 0.0
    %2201 = vmatprep.subr.mxu0 0.0
    %2202 = vmatpush1.msra.mxu0 0.0
    %2203 = vmatprep.subr.mxu0 0.0
    %2204 = vmatpush1.msra.mxu0 0.0
    %2205 = vmatprep.subr.mxu0 0.0
    %2206 = vmatpush1.msra.mxu0 0.0
    %2207 = vmatprep.subr.mxu0 0.0
    %2208 = vmatpush1.msra.mxu0 0.0
    %2209 = vmatprep.subr.mxu0 0.0
    %2210 = vmatpush1.msra.mxu0 0.0
    %2211 = vmatprep.subr.mxu0 0.0
    %2212 = vmatpush1.msra.mxu0 0.0
    %2213 = vmatprep.subr.mxu0 0.0
    %2214 = vmatpush1.msra.mxu0 0.0
    %2215 = vmatprep.subr.mxu0 0.0
    %2216 = vmatpush1.msra.mxu0 0.0
    %2217 = vmatprep.subr.mxu0 0.0
    %2218 = vmatpush1.msra.mxu0 0.0
    %2219 = vmatprep.subr.mxu0 0.0
    %2220 = vmatpush1.msra.mxu0 0.0
    %2221 = vmatprep.subr.mxu0 0.0
    %2222 = vmatpush1.msra.mxu0 0.0
    %2223 = vmatprep.mubr.f32.mxu0 0.0
    %2224 = vmatmul.mubr.f32.gmra.mrb[0].mxu0 %v2154
    %v2225 = vpop.f32.mrb[0].mxu0
    %v2226 = vadd.f32 %v2151, %v2225
    %v2227 = vpop.f32.mrb[0].mxu0
    %2228 = vmatprep.mubr.f32.mxu0 0.0
    %2229 = vmatmul.mubr.f32.gmra.mrb[0].mxu0 %v2157
    %v2230 = vpop.f32.mrb[0].mxu0
    %v2231 = vadd.f32 %v2151, %v2230
    %v2232 = vpop.f32.mrb[0].mxu0
    %2233 = vdwg.mxu0
    %v2234 = vmax.f32 %v2226, 0.0
    %v2235 = vmax.f32 %v2231, 0.0
    %v2236 = vld [vmem:[%s12] sm:$0xff]
    %v2237 = vld [vmem:[%s12 + $0x8] sm:$0xff]
    %v2238 = vld [vmem:[%s12 + $0x10] sm:$0xff]
    %v2239 = vld [vmem:[%s12 + $0x18] sm:$0xff]
    %v2240 = vld [vmem:[%s12 + $0x20] sm:$0xff]
    %v2241 = vld [vmem:[%s12 + $0x28] sm:$0xff]
    %v2242 = vld [vmem:[%s12 + $0x30] sm:$0xff]
    %v2243 = vld [vmem:[%s12 + $0x38] sm:$0xff]
    %v2244 = vld [vmem:[%s13] sm:$0x1]
    %v2246 = vlaneseq
    %v2247 = vshrl.u32 %v2246, 7
    %v2248 = vsub.s32 0, %v2247
    %v2249 = vrot.slane %v2244, %v2248
    %vm2251 = vcmask 523264
    %v2253 = vsel %vm2251, %v2234, 0
    %v2256 = vsel %vm2251, %v2235, 0
    %2258 = vmatprep.subr.mxu0 0.0
    %2259 = vmatpush1.msra.mxu0 %v2236
    %2260 = vmatprep.subr.mxu0 0.0
    %2261 = vmatpush1.msra.mxu0 %v2237
    %2262 = vmatprep.subr.mxu0 0.0
    %2263 = vmatpush1.msra.mxu0 %v2238
    %2264 = vmatprep.subr.mxu0 0.0
    %2265 = vmatpush1.msra.mxu0 %v2239
    %2266 = vmatprep.subr.mxu0 0.0
    %2267 = vmatpush1.msra.mxu0 %v2240
    %2268 = vmatprep.subr.mxu0 0.0
    %2269 = vmatpush1.msra.mxu0 %v2241
    %2270 = vmatprep.subr.mxu0 0.0
    %2271 = vmatpush1.msra.mxu0 %v2242
    %2272 = vmatprep.subr.mxu0 0.0
    %2273 = vmatpush1.msra.mxu0 %v2243
    %2274 = vmatprep.subr.mxu0 0.0
    %2275 = vmatpush1.msra.mxu0 0.0
    %2276 = vmatprep.subr.mxu0 0.0
    %2277 = vmatpush1.msra.mxu0 0.0
    %2278 = vmatprep.subr.mxu0 0.0
    %2279 = vmatpush1.msra.mxu0 0.0
    %2280 = vmatprep.subr.mxu0 0.0
    %2281 = vmatpush1.msra.mxu0 0.0
    %2282 = vmatprep.subr.mxu0 0.0
    %2283 = vmatpush1.msra.mxu0 0.0
    %2284 = vmatprep.subr.mxu0 0.0
    %2285 = vmatpush1.msra.mxu0 0.0
    %2286 = vmatprep.subr.mxu0 0.0
    %2287 = vmatpush1.msra.mxu0 0.0
    %2288 = vmatprep.subr.mxu0 0.0
    %2289 = vmatpush1.msra.mxu0 0.0
    %2290 = vmatprep.subr.mxu0 0.0
    %2291 = vmatpush1.msra.mxu0 0.0
    %2292 = vmatprep.subr.mxu0 0.0
    %2293 = vmatpush1.msra.mxu0 0.0
    %2294 = vmatprep.subr.mxu0 0.0
    %2295 = vmatpush1.msra.mxu0 0.0
    %2296 = vmatprep.subr.mxu0 0.0
    %2297 = vmatpush1.msra.mxu0 0.0
    %2298 = vmatprep.subr.mxu0 0.0
    %2299 = vmatpush1.msra.mxu0 0.0
    %2300 = vmatprep.subr.mxu0 0.0
    %2301 = vmatpush1.msra.mxu0 0.0
    %2302 = vmatprep.subr.mxu0 0.0
    %2303 = vmatpush1.msra.mxu0 0.0
    %2304 = vmatprep.subr.mxu0 0.0
    %2305 = vmatpush1.msra.mxu0 0.0
    %2306 = vmatprep.subr.mxu0 0.0
    %2307 = vmatpush1.msra.mxu0 0.0
    %2308 = vmatprep.subr.mxu0 0.0
    %2309 = vmatpush1.msra.mxu0 0.0
    %2310 = vmatprep.subr.mxu0 0.0
    %2311 = vmatpush1.msra.mxu0 0.0
    %2312 = vmatprep.subr.mxu0 0.0
    %2313 = vmatpush1.msra.mxu0 0.0
    %2314 = vmatprep.subr.mxu0 0.0
    %2315 = vmatpush1.msra.mxu0 0.0
    %2316 = vmatprep.subr.mxu0 0.0
    %2317 = vmatpush1.msra.mxu0 0.0
    %2318 = vmatprep.subr.mxu0 0.0
    %2319 = vmatpush1.msra.mxu0 0.0
    %2320 = vmatprep.subr.mxu0 0.0
    %2321 = vmatpush1.msra.mxu0 0.0
    %2322 = vmatprep.mubr.f32.mxu0 0.0
    %2323 = vmatmul.mubr.f32.gmra.mrb[0].mxu0 %v2253
    %v2324 = vpop.f32.mrb[0].mxu0
    %v2325 = vadd.f32 %v2249, %v2324
    %v2326 = vpop.f32.mrb[0].mxu0
    %2327 = vmatprep.mubr.f32.mxu0 0.0
    %2328 = vmatmul.mubr.f32.gmra.mrb[0].mxu0 %v2256
    %v2329 = vpop.f32.mrb[0].mxu0
    %v2330 = vadd.f32 %v2249, %v2329
    %v2331 = vpop.f32.mrb[0].mxu0
    %2332 = vdwg.mxu0
    %vm2333 = vcmask 15360
    %v2334 = vsel %vm2333, %v2325, -inf
    %2335 = vmax.xlane.f32.xlu0 %v2334
    %v2336 = vpop.xlane.xlu0 %2335
    %v2337 = vsel %vm2333, %v2330, -inf
    %2338 = vmax.xlane.f32.xlu0 %v2337
    %v2339 = vpop.xlane.xlu0 %2338
    %v2340 = vsub.f32 %v2325, %v2336
    %v2341 = vsub.f32 %v2330, %v2339
    %v2342 = vmul.f32 %v2340, 1.442695
    %v2343 = vpow.pop %v2342
    %v2344 = vmul.f32 %v2341, 1.442695
    %v2345 = vpow.pop %v2344
    %v2346 = vsel %vm2333, %v2343, 0.0
    %2347 = vadd.xlane.f32.xlu0 %v2346
    %v2348 = vpop.xlane.xlu0 %2347
    %v2349 = vsel %vm2333, %v2345, 0.0
    %2350 = vadd.xlane.f32.xlu0 %v2349
    %v2351 = vpop.xlane.xlu0 %2350
    %v2352 = vrcp.pop %v2348
    %v2353 = vrcp.pop %v2351
    %v2354 = vmul.f32 %v2343, %v2352
    %v2355 = vmul.f32 %v2345, %v2353
    %2356 = vst.msk [vmem:[%s14] sm:$0xff] %vm2333, %v2354
    %2357 = vst.msk [vmem:[%s14 + $0x8] sm:$0xff] %vm2333, %v2355
    // Predicated region
    $region86: #{tpu_custom_call.1} parent=1 // pred_check
      _
    $region87: #{tpu_custom_call.1} parent=1 // pred_check_branch
      %2359 = sbr.rel (0) target = $region89
    $region88: #{tpu_custom_call.1} parent=1 // pred_region
      _
    $region89: #{tpu_custom_call.1} parent=1 // pred_fallthru
      _
    // Predicated region
    $region90: #{tpu_custom_call.1} parent=1 // pred_check
      _
    $region91: #{tpu_custom_call.1} parent=1 // pred_check_branch
      %2361 = sbr.rel (0) target = $region93
    $region92: #{tpu_custom_call.1} parent=1 // pred_region
      %s2363 = ssub.s32 64, 64
      %2364 = vsyncadd [#allocation6], %s2363
      %s2365 = sshll.u32 [#allocation16], 4
      %s2366 = int_to_ptr.vmem [resolvable:$true] %s2365
      %2371 = dma.vmem_to_hbm [thread:$0]  %s2366, 64, %s15, [#allocation6], 32, 32, 2
    $region93: #{tpu_custom_call.1} parent=1 // pred_fallthru
      _
    // Predicated region
    $region94: #{tpu_custom_call.1} parent=1 // pred_check
      _
    $region95: #{tpu_custom_call.1} parent=1 // pred_check_branch
      %2373 = sbr.rel (0) target = $region97
    $region96: #{tpu_custom_call.1} parent=1 // pred_region
      _
    $region97: #{tpu_custom_call.1} parent=1 // pred_fallthru
      _
    // Predicated region
    $region98: #{tpu_custom_call.1} parent=1 // pred_check
      _
    $region99: #{tpu_custom_call.1} parent=1 // pred_check_branch
      %2375 = sbr.rel (0) target = $region101
    $region100: #{tpu_custom_call.1} parent=1 // pred_region
      %2376 = dma.done [#allocation6], 64
    $region101: #{tpu_custom_call.1} parent=1 // pred_fallthru
      _
    %2377 = vsyncpa [#allocation5], 1
    %2378 = vsyncpa [#allocation8], 1
    %2379 = vsyncpa [#allocation11], 1
    %2380 = vsyncpa [#allocation14], 1
    %2381 = vsyncpa [#allocation6], 1

</llo_original>
